<compile_context>
chip_gen: v5e
topology: v5e:2x2
jax: 0.10.0
libtpu: 0.0.40
codegen_flags: <defaults>
</compile_context>

<pallas_src>
import functools
import math

import jax
import jax.numpy as jnp
from jax.experimental import pallas as pl
from jax.experimental.pallas import tpu as pltpu

NEG_INF = -1e10                  # matches masked_fill(..., -10000000000.0)
COMPUTE_DTYPE = jnp.bfloat16     # MXU operand dtype (accumulation is always f32)
ATTN_OUT_DTYPE = jnp.bfloat16    # dtype of the returned (diagnostic) attention maps


def _vmem_limit_bytes():
    """~80% of physical VMEM, capped at 100 MiB (v5e/v6e ~100 MiB, v7x ~51 MiB)."""
    cap = 64 * 1024 * 1024
    try:
        cap = pltpu.get_tpu_info().vmem_capacity_bytes
    except Exception:
        pass
    return int(min(cap * 0.8, 100 * 1024 * 1024))


def _round_up(n, m):
    return ((n + m - 1) // m) * m


def _pick_batch_block(B, T, row_target=256, cap=8):
    """Largest divisor of B (<= cap) so that Bblk*T reaches ~row_target MXU rows."""
    want = max(1, min(B, cap, -(-row_target // max(T, 1))))
    for bb in range(want, 0, -1):
        if B % bb == 0:
            return bb
    return 1


# ----------------------------------------------------------------------------------------
# In-kernel helpers (traced inside the Pallas kernel body)
# ----------------------------------------------------------------------------------------
def _layer_norm(x, g, b, eps=1e-5):
    mu = jnp.mean(x, axis=-1, keepdims=True)
    var = jnp.mean(jnp.square(x - mu), axis=-1, keepdims=True)
    return (x - mu) * jax.lax.rsqrt(var + eps) * g + b


def _attn_core(Q, K, V, mask_bias, n_heads, head_dim):
    """All-heads attention for ONE batch element.

    Q: (Tq, H) f32, K/V: (Tk, H) f32, mask_bias: (1, Tk) f32 additive bias.
    Returns (ctx (Tq, H) f32, attn (n_heads, Tq, Tk) f32).
    """
    Tq, Tk = Q.shape[0], K.shape[0]
    # TODO(synk): the reshape+transpose to head-major is an XLU relayout; a middle-batch
    # 'qhd,khd->hqk' einsum would avoid it but is riskier to lower, so keep the known-good
    # leading-batch-dim form (bf16 operands halve the relayout traffic anyway).
    Qh = Q.astype(COMPUTE_DTYPE).reshape(Tq, n_heads, head_dim).transpose(1, 0, 2)
    Kh = K.astype(COMPUTE_DTYPE).reshape(Tk, n_heads, head_dim).transpose(1, 0, 2)
    Vh = V.astype(COMPUTE_DTYPE).reshape(Tk, n_heads, head_dim).transpose(1, 0, 2)

    inv_scale = 1.0 / math.sqrt(head_dim)                     # python float -> literal
    energy = jnp.einsum("hqd,hkd->hqk", Qh, Kh,
                        preferred_element_type=jnp.float32) * inv_scale
    energy = energy + mask_bias                               # (1, Tk) broadcasts
    energy = energy - jnp.max(energy, axis=-1, keepdims=True)
    p = jnp.exp(energy)
    attn = p * pl.reciprocal(jnp.sum(p, axis=-1, keepdims=True), approx=True)
    ctx = jnp.einsum("hqk,hkd->hqd", attn.astype(COMPUTE_DTYPE), Vh,
                     preferred_element_type=jnp.float32)
    ctx = ctx.transpose(1, 0, 2).reshape(Tq, n_heads * head_dim)
    return ctx, attn


# ----------------------------------------------------------------------------------------
# Pallas kernels
# ----------------------------------------------------------------------------------------
def decoder_stack_kernel(trg_ref, enc_ref, tbias_ref, sbias_ref,
                         wqkv1_ref, bqkv1_ref, wo1_ref, bo1_ref,
                         wq2_ref, bq2_ref, wkv2_ref, bkv2_ref, wo2_ref, bo2_ref,
                         ln1_g_ref, ln1_b_ref, ln2_g_ref, ln2_b_ref,
                         wf1_ref, bf1_ref, wf2_ref, bf2_ref,
                         x_ref, sattn_ref, eattn_ref,
                         *, n_heads, head_dim, b_blk):
    """Grid = (batch_blocks, layers).  x_ref is VMEM-resident across the layer axis."""
    l = pl.program_id(1)
    H = n_heads * head_dim
    T = trg_ref.shape[1]
    S = enc_ref.shape[1]

    @pl.when(l == 0)
    def _():
        # Output VMEM blocks are not prefetched from HBM, so populate x from the embedded
        # target here (its HBM buffer is aliased with the x output).
        x_ref[...] = trg_ref[...]

    x2 = x_ref[...].reshape(b_blk * T, H)           # (Bblk*T, H) f32, carried across layers
    enc2 = enc_ref[...].reshape(b_blk * S, H)       # (Bblk*S, H) bf16

    def dot(a, w_ref, b_ref):                       # bf16 operands, f32 accumulation
        return (jnp.dot(a.astype(COMPUTE_DTYPE), w_ref[0],
                        preferred_element_type=jnp.float32) + b_ref[0])

    # --- self attention: one fused QKV matmul over the whole batch block ---
    qkv = dot(x2, wqkv1_ref, bqkv1_ref)             # (Bblk*T, 3H)
    ctxs = []
    for b in range(b_blk):                          # short, unrolled per-element attention
        r = slice(b * T, (b + 1) * T)
        ctx_b, attn_b = _attn_core(qkv[r, :H], qkv[r, H:2 * H], qkv[r, 2 * H:],
                                   tbias_ref[b], n_heads, head_dim)
        sattn_ref[b] = attn_b.astype(sattn_ref.dtype)    # lane-dense bf16 store, all heads
        ctxs.append(ctx_b)
    sa = dot(jnp.concatenate(ctxs, axis=0), wo1_ref, bo1_ref)
    x2 = _layer_norm(x2 + sa, ln1_g_ref[0], ln1_b_ref[0])

    # --- encoder (cross) attention: one fused KV matmul over the whole batch block ---
    q2 = dot(x2, wq2_ref, bq2_ref)                  # (Bblk*T, H)
    kv = dot(enc2, wkv2_ref, bkv2_ref)              # (Bblk*S, 2H)
    ctxs = []
    for b in range(b_blk):
        qr = slice(b * T, (b + 1) * T)
        kr = slice(b * S, (b + 1) * S)
        ctx_b, attn_b = _attn_core(q2[qr], kv[kr, :H], kv[kr, H:],
                                   sbias_ref[b], n_heads, head_dim)
        eattn_ref[b] = attn_b.astype(eattn_ref.dtype)
        ctxs.append(ctx_b)
    ca = dot(jnp.concatenate(ctxs, axis=0), wo2_ref, bo2_ref)
    x2 = _layer_norm(x2 + ca, ln2_g_ref[0], ln2_b_ref[0])

    # --- position-wise feed-forward (relu) + residual + layer norm ---
    h = jnp.maximum(dot(x2, wf1_ref, bf1_ref), 0.0)
    ff = dot(h, wf2_ref, bf2_ref)
    # TODO(synk): the reference DecoderLayer.forward calls `self.layer_norm`, which is
    # never defined (__init__ only has ln_1/ln_2); we use ln_1 after self-attn and ln_2
    # for the remaining two residual norms (same convention as the pure-JAX reference).
    x2 = _layer_norm(x2 + ff, ln2_g_ref[0], ln2_b_ref[0])

    x_ref[...] = x2.reshape(b_blk, T, H)            # stays resident until the last layer


def fc_out_kernel(x_ref, w_ref, b_ref, o_ref):
    o_ref[...] = jnp.dot(x_ref[...], w_ref[...],
                         preferred_element_type=jnp.float32) + b_ref[...]


# ----------------------------------------------------------------------------------------
# Wrappers (pallas_call plumbing)
# ----------------------------------------------------------------------------------------
STACKED_ORDER = (
    "wqkv1", "bqkv1", "wo1", "bo1",
    "wq2", "bq2", "wkv2", "bkv2", "wo2", "bo2",
    "ln1_g", "ln1_b", "ln2_g", "ln2_b",
    "wf1", "bf1", "wf2", "bf2",
)
_MATMUL_WEIGHTS = frozenset({"wqkv1", "wo1", "wq2", "wkv2", "wo2", "wf1", "wf2"})


def _stack_and_fuse(layers):
    """Fuse QKV / KV projections, stack all layers along a leading L axis.

    Matmul weights are stored bf16 (halves HBM traffic + VMEM); biases / LN params f32.
    """
    def fuse(lp):
        return {
            "wqkv1": jnp.concatenate([lp["wq1"], lp["wk1"], lp["wv1"]], axis=1),
            "bqkv1": jnp.concatenate([lp["bq1"], lp["bk1"], lp["bv1"]], axis=1),
            "wo1": lp["wo1"], "bo1": lp["bo1"],
            "wq2": lp["wq2"], "bq2": lp["bq2"],
            "wkv2": jnp.concatenate([lp["wk2"], lp["wv2"]], axis=1),
            "bkv2": jnp.concatenate([lp["bk2"], lp["bv2"]], axis=1),
            "wo2": lp["wo2"], "bo2": lp["bo2"],
            "ln1_g": lp["ln1_g"], "ln1_b": lp["ln1_b"],
            "ln2_g": lp["ln2_g"], "ln2_b": lp["ln2_b"],
            "wf1": lp["wf1"], "bf1": lp["bf1"],
            "wf2": lp["wf2"], "bf2": lp["bf2"],
        }
    fused = [fuse(lp) for lp in layers]
    out = {}
    for k in fused[0]:
        dt = COMPUTE_DTYPE if k in _MATMUL_WEIGHTS else jnp.float32
        out[k] = jnp.stack([f[k] for f in fused], axis=0).astype(dt)
    return out


def _weight_spec(p):
    """Stacked weight (L, ...): block = one layer slice, indexed by the layer grid axis."""
    nd = p.ndim
    blk = (1,) + tuple(p.shape[1:])

    def idx(b, l, _nd=nd):
        return (l,) + (0,) * (_nd - 1)

    return pl.BlockSpec(blk, idx)


def decoder_stack_pallas(trg, enc_src, tbias, sbias, stacked, n_heads):
    B, T, H = trg.shape
    S = enc_src.shape[1]
    L = stacked["wqkv1"].shape[0]
    head_dim = H // n_heads
    b_blk = _pick_batch_block(B, T)
    params = [stacked[name] for name in STACKED_ORDER]

    in_specs = (
        [pl.BlockSpec((b_blk, T, H), lambda b, l: (b, 0, 0)),     # trg (aliased with x out)
         pl.BlockSpec((b_blk, S, H), lambda b, l: (b, 0, 0)),     # enc_src (bf16)
         pl.BlockSpec((b_blk, 1, T), lambda b, l: (b, 0, 0)),     # trg-mask additive bias
         pl.BlockSpec((b_blk, 1, S), lambda b, l: (b, 0, 0))]     # src-mask additive bias
        + [_weight_spec(p) for p in params]
    )
    out_shape = (
        jax.ShapeDtypeStruct((B, T, H), jnp.float32),
        jax.ShapeDtypeStruct((B, n_heads, T, T), ATTN_OUT_DTYPE),
        jax.ShapeDtypeStruct((B, n_heads, T, S), ATTN_OUT_DTYPE),
    )
    out_specs = (
        pl.BlockSpec((b_blk, T, H), lambda b, l: (b, 0, 0)),            # x: resident over l
        pl.BlockSpec((b_blk, n_heads, T, T), lambda b, l: (b, 0, 0, 0)),
        pl.BlockSpec((b_blk, n_heads, T, S), lambda b, l: (b, 0, 0, 0)),
    )
    kernel = functools.partial(decoder_stack_kernel, n_heads=n_heads,
                               head_dim=head_dim, b_blk=b_blk)
    return pl.pallas_call(
        kernel,
        grid=(B // b_blk, L),
        in_specs=in_specs,
        out_specs=out_specs,
        out_shape=out_shape,
        # Reuse trg's HBM buffer for the x output (saves an HBM alloc + init copy).
        input_output_aliases={0: 0},
        compiler_params=pltpu.CompilerParams(
            # batch-block axis "parallel" (megacore on v7x); layer axis carries x in VMEM.
            dimension_semantics=("parallel", "arbitrary"),
            vmem_limit_bytes=_vmem_limit_bytes()),
    )(trg, enc_src, tbias, sbias, *params)


def fc_out_pallas(x, w, b):
    """x: (B,T,H) f32, w: (H,V), b: (1,V) -> (B,T,V) f32 logits.

    Rows/vocab are padded to 128-multiples and tiled; the vocab axis is the outer
    ("parallel") grid axis and rows are inner so each (H, TN) weight tile is DMAed once.
    """
    B, T, H = x.shape
    V = w.shape[1]
    M = B * T
    TM = min(256, _round_up(M, 128))
    TN = min(512, _round_up(V, 128))
    Mp, Vp = _round_up(M, TM), _round_up(V, TN)

    x2 = jnp.pad(x.reshape(M, H).astype(COMPUTE_DTYPE), ((0, Mp - M), (0, 0)))
    wp = jnp.pad(w.astype(COMPUTE_DTYPE), ((0, 0), (0, Vp - V)))
    bp = jnp.pad(b.astype(jnp.float32), ((0, 0), (0, Vp - V)))

    out = pl.pallas_call(
        fc_out_kernel,
        grid=(Vp // TN, Mp // TM),                       # vocab outer, rows inner
        in_specs=[pl.BlockSpec((TM, H), lambda j, i: (i, 0)),
                  pl.BlockSpec((H, TN), lambda j, i: (0, j)),   # constant over inner axis
                  pl.BlockSpec((1, TN), lambda j, i: (0, j))],
        out_specs=pl.BlockSpec((TM, TN), lambda j, i: (i, j)),
        out_shape=jax.ShapeDtypeStruct((Mp, Vp), jnp.float32),
        compiler_params=pltpu.CompilerParams(
            dimension_semantics=("parallel", "arbitrary"),
            vmem_limit_bytes=_vmem_limit_bytes()),
    )(x2, wp, bp)
    return out[:M, :V].reshape(B, T, V)


def decoder_forward(trg_ids, enc_src, trg_mask, src_mask, params, n_heads):
    """Mirrors Decoder.forward: returns (logits, last self-attn, last encoder-attn)."""
    B, T = trg_ids.shape
    H = params["tok_emb"].shape[1]
    # embedding lookup = plain-JAX glue (gather); dropout = identity (eval mode)
    x = params["tok_emb"][trg_ids] * math.sqrt(H) + params["pos_emb"][jnp.arange(T)][None, :, :]

    # mask -> additive bias, hoisted out of the kernel
    tbias = jnp.where(trg_mask[:, None, :] == 0, NEG_INF, 0.0).astype(jnp.float32)  # (B,1,T)
    sbias = jnp.where(src_mask[:, None, :] == 0, NEG_INF, 0.0).astype(jnp.float32)  # (B,1,S)

    stacked = _stack_and_fuse(params["layers"])
    x, self_attn, enc_attn = decoder_stack_pallas(
        x.astype(jnp.float32), enc_src.astype(COMPUTE_DTYPE), tbias, sbias, stacked, n_heads)
    logits = fc_out_pallas(x, params["w_out"], params["b_out"])
    return logits, self_attn, enc_attn


# ----------------------------------------------------------------------------------------
# Deterministic parameter init (synthetic weights; shapes from the module __init__)
# ----------------------------------------------------------------------------------------
def init_params(key, vocab, hid, n_layers, n_heads, pf_dim, max_len):
    def dense(k, din, dout):
        kw, kb = jax.random.split(k)
        return (jax.random.normal(kw, (din, dout), jnp.float32) * 0.05,
                jax.random.normal(kb, (1, dout), jnp.float32) * 0.01)

    def layer(k):
        ks = jax.random.split(k, 10)
        p = {}
        names = [("wq1", "bq1"), ("wk1", "bk1"), ("wv1", "bv1"), ("wo1", "bo1"),
                 ("wq2", "bq2"), ("wk2", "bk2"), ("wv2", "bv2"), ("wo2", "bo2")]
        for (wn, bn), kk in zip(names, ks[:8]):
            p[wn], p[bn] = dense(kk, hid, hid)
        p["ln1_g"] = jnp.ones((1, hid), jnp.float32)
        p["ln1_b"] = jnp.zeros((1, hid), jnp.float32)
        p["ln2_g"] = jnp.ones((1, hid), jnp.float32)
        p["ln2_b"] = jnp.zeros((1, hid), jnp.float32)
        p["wf1"], p["bf1"] = dense(ks[8], hid, pf_dim)
        p["wf2"], p["bf2"] = dense(ks[9], pf_dim, hid)
        return p

    keys = jax.random.split(key, 3 + n_layers)
    params = {
        "tok_emb": jax.random.normal(keys[0], (vocab, hid), jnp.float32) * 0.05,
        "pos_emb": jax.random.normal(keys[1], (max_len, hid), jnp.float32) * 0.05,
        "layers": [layer(keys[3 + i]) for i in range(n_layers)],
    }
    params["w_out"], params["b_out"] = dense(keys[2], hid, vocab)
    return params


# ----------------------------------------------------------------------------------------
# Pure-JAX f32 reference (correctness check only)
# ----------------------------------------------------------------------------------------
def _mha_ref(xq, xkv, mask, p, sfx, n_heads):
    B, Tq, H = xq.shape
    Tk = xkv.shape[1]
    hd = H // n_heads
    Q = xq @ p[f"wq{sfx}"] + p[f"bq{sfx}"]
    K = xkv @ p[f"wk{sfx}"] + p[f"bk{sfx}"]
    V = xkv @ p[f"wv{sfx}"] + p[f"bv{sfx}"]
    Qh = Q.reshape(B, Tq, n_heads, hd).transpose(0, 2, 1, 3)
    Kh = K.reshape(B, Tk, n_heads, hd).transpose(0, 2, 1, 3)
    Vh = V.reshape(B, Tk, n_heads, hd).transpose(0, 2, 1, 3)
    energy = jnp.einsum("bhqd,bhkd->bhqk", Qh, Kh) / math.sqrt(hd)
    energy = jnp.where(mask[:, None, None, :] == 0, NEG_INF, energy)
    attn = jax.nn.softmax(energy, axis=-1)
    ctx = jnp.einsum("bhqk,bhkd->bhqd", attn, Vh).transpose(0, 2, 1, 3).reshape(B, Tq, H)
    return ctx @ p[f"wo{sfx}"] + p[f"bo{sfx}"], attn


def _ln_ref(x, g, b):
    mu = x.mean(-1, keepdims=True)
    var = ((x - mu) ** 2).mean(-1, keepdims=True)
    return (x - mu) / jnp.sqrt(var + 1e-5) * g + b


def decoder_ref(trg_ids, enc_src, trg_mask, src_mask, params, n_heads):
    B, T = trg_ids.shape
    H = params["tok_emb"].shape[1]
    x = params["tok_emb"][trg_ids] * math.sqrt(H) + params["pos_emb"][jnp.arange(T)][None]
    s_attn = e_attn = None
    for p in params["layers"]:
        sa, s_attn = _mha_ref(x, x, trg_mask, p, "1", n_heads)
        x = _ln_ref(x + sa, p["ln1_g"], p["ln1_b"])
        ca, e_attn = _mha_ref(x, enc_src, src_mask, p, "2", n_heads)
        x = _ln_ref(x + ca, p["ln2_g"], p["ln2_b"])
        hdn = jax.nn.relu(x @ p["wf1"] + p["bf1"])
        ff = hdn @ p["wf2"] + p["bf2"]
        x = _ln_ref(x + ff, p["ln2_g"], p["ln2_b"])
    return x @ params["w_out"] + params["b_out"], s_attn, e_attn


# ----------------------------------------------------------------------------------------
if __name__ == "__main__":
    VOCAB, HID, N_LAYERS, N_HEADS, PF_DIM, MAX_LEN = 64, 32, 2, 4, 64, 16
    PF_ACT = "relu"  # activation baked into the kernel
    B, T, S = 2, 8, 16

    key = jax.random.PRNGKey(0)
    kp, kt, ke = jax.random.split(key, 3)
    params = init_params(kp, VOCAB, HID, N_LAYERS, N_HEADS, PF_DIM, MAX_LEN)

    trg_ids = jax.random.randint(kt, (B, T), 0, VOCAB)
    enc_src = jax.random.normal(ke, (B, S, HID), jnp.float32)
    trg_mask = jnp.ones((B, T), jnp.int32).at[1, T - 2:].set(0)  # padding-style masks (1=keep)
    src_mask = jnp.ones((B, S), jnp.int32).at[0, S - 3:].set(0)

    fwd = jax.jit(functools.partial(decoder_forward, params=params, n_heads=N_HEADS))
    out, s_attn, e_attn = fwd(trg_ids, enc_src, trg_mask, src_mask)
    jax.block_until_ready((out, s_attn, e_attn))

    ref_out, ref_s, ref_e = decoder_ref(trg_ids, enc_src, trg_mask, src_mask, params, N_HEADS)
    assert out.shape == (B, T, VOCAB)
    assert s_attn.shape == (B, N_HEADS, T, T)
    assert e_attn.shape == (B, N_HEADS, T, S)
    # bf16 matmul operands + bf16 attention-map outputs + EUP approx reciprocal vs the
    # all-f32 reference -> slightly loosened tolerances.
    assert jnp.allclose(out, ref_out, atol=1e-2, rtol=1e-2)
    assert jnp.allclose(s_attn.astype(jnp.float32), ref_s, atol=1e-2, rtol=1e-2)
    assert jnp.allclose(e_attn.astype(jnp.float32), ref_e, atol=1e-2, rtol=1e-2)

    print("KERNEL_OK")
</pallas_src>

<mosaic_0001>
module attributes {stable_mosaic.version = 11 : i64} {
  func.func @fc_out_kernel(%arg0: i32, %arg1: i32, %arg2: memref<128x32xbf16, #tpu.memory_space<vmem>>, %arg3: memref<32x128xbf16, #tpu.memory_space<vmem>>, %arg4: memref<1x128xf32, #tpu.memory_space<vmem>>, %arg5: memref<128x128xf32, #tpu.memory_space<vmem>>) attributes {dimension_semantics = [#tpu.dimension_semantics<parallel>, #tpu.dimension_semantics<arbitrary>], iteration_bounds = array<i64: 1, 1>, scalar_prefetch = 0 : i64, scratch_operands = 0 : i64, tpu.core_type = #tpu.core_type<tc>, window_params = [{transform_indices = @transform_0, window_bounds = array<i64: 128, 32>}, {transform_indices = @transform_1, window_bounds = array<i64: 32, 128>}, {transform_indices = @transform_2, window_bounds = array<i64: 1, 128>}, {transform_indices = @transform_3, window_bounds = array<i64: 128, 128>}]} {
    %c0 = arith.constant 0 : index
    %c0_0 = arith.constant 0 : index
    %0 = vector.load %arg2[%c0, %c0_0] : memref<128x32xbf16, #tpu.memory_space<vmem>>, vector<128x32xbf16>
    %c0_1 = arith.constant 0 : index
    %c0_2 = arith.constant 0 : index
    %1 = vector.load %arg3[%c0_1, %c0_2] : memref<32x128xbf16, #tpu.memory_space<vmem>>, vector<32x128xbf16>
    %cst = arith.constant dense<0.000000e+00> : vector<128x128xf32>
    %2 = tpu.matmul %0, %1, %cst {dimension_numbers = #tpu.dot_dimension_numbers<[1], [0], [0], [1], [0, 0, 1, 1], [], []>} : vector<128x32xbf16>, vector<32x128xbf16>, vector<128x128xf32> -> vector<128x128xf32>
    %c0_3 = arith.constant 0 : index
    %c0_4 = arith.constant 0 : index
    %3 = vector.load %arg4[%c0_3, %c0_4] : memref<1x128xf32, #tpu.memory_space<vmem>>, vector<1x128xf32>
    %4 = vector.broadcast %3 : vector<1x128xf32> to vector<128x128xf32>
    %5 = arith.addf %2, %4 : vector<128x128xf32>
    %c0_5 = arith.constant 0 : index
    %c0_6 = arith.constant 0 : index
    %6 = vector.load %arg5[%c0_5, %c0_6] : memref<128x128xf32, #tpu.memory_space<vmem>>, vector<128x128xf32>
    tpu.vector_store %arg5[%c0_5, %c0_6], %5 {strides = array<i32>} : memref<128x128xf32, #tpu.memory_space<vmem>>, vector<128x128xf32>,
    return
  }
  func.func @transform_0(%arg0: i32, %arg1: i32) -> (i32, i32) {
    %c0_i32 = arith.constant 0 : i32
    %c0_i32_0 = arith.constant 0 : i32
    return %arg1, %c0_i32 : i32, i32
  }
  func.func @transform_1(%arg0: i32, %arg1: i32) -> (i32, i32) {
    %c0_i32 = arith.constant 0 : i32
    %c0_i32_0 = arith.constant 0 : i32
    return %c0_i32, %arg0 : i32, i32
  }
  func.func @transform_2(%arg0: i32, %arg1: i32) -> (i32, i32) {
    %c0_i32 = arith.constant 0 : i32
    %c0_i32_0 = arith.constant 0 : i32
    return %c0_i32, %arg0 : i32, i32
  }
  func.func @transform_3(%arg0: i32, %arg1: i32) -> (i32, i32) {
    %c0_i32 = arith.constant 0 : i32
    return %arg1, %arg0 : i32, i32
  }
}

module attributes {stable_mosaic.version = 11 : i64} {
  func.func @decoder_stack_kernel(%arg0: i32, %arg1: i32, %arg2: memref<2x8x32xf32, #tpu.memory_space<vmem>>, %arg3: memref<2x16x32xbf16, #tpu.memory_space<vmem>>, %arg4: memref<2x1x8xf32, #tpu.memory_space<vmem>>, %arg5: memref<2x1x16xf32, #tpu.memory_space<vmem>>, %arg6: memref<1x32x96xbf16, #tpu.memory_space<vmem>>, %arg7: memref<1x1x96xf32, #tpu.memory_space<vmem>>, %arg8: memref<1x32x32xbf16, #tpu.memory_space<vmem>>, %arg9: memref<1x1x32xf32, #tpu.memory_space<vmem>>, %arg10: memref<1x32x32xbf16, #tpu.memory_space<vmem>>, %arg11: memref<1x1x32xf32, #tpu.memory_space<vmem>>, %arg12: memref<1x32x64xbf16, #tpu.memory_space<vmem>>, %arg13: memref<1x1x64xf32, #tpu.memory_space<vmem>>, %arg14: memref<1x32x32xbf16, #tpu.memory_space<vmem>>, %arg15: memref<1x1x32xf32, #tpu.memory_space<vmem>>, %arg16: memref<1x1x32xf32, #tpu.memory_space<vmem>>, %arg17: memref<1x1x32xf32, #tpu.memory_space<vmem>>, %arg18: memref<1x1x32xf32, #tpu.memory_space<vmem>>, %arg19: memref<1x1x32xf32, #tpu.memory_space<vmem>>, %arg20: memref<1x32x64xbf16, #tpu.memory_space<vmem>>, %arg21: memref<1x1x64xf32, #tpu.memory_space<vmem>>, %arg22: memref<1x64x32xbf16, #tpu.memory_space<vmem>>, %arg23: memref<1x1x32xf32, #tpu.memory_space<vmem>>, %arg24: memref<2x8x32xf32, #tpu.memory_space<vmem>>, %arg25: memref<2x4x8x8xbf16, #tpu.memory_space<vmem>>, %arg26: memref<2x4x8x16xbf16, #tpu.memory_space<vmem>>) attributes {dimension_semantics = [#tpu.dimension_semantics<parallel>, #tpu.dimension_semantics<arbitrary>], iteration_bounds = array<i64: 1, 2>, scalar_prefetch = 0 : i64, scratch_operands = 0 : i64, tpu.core_type = #tpu.core_type<tc>, window_params = [{transform_indices = @transform_0, window_bounds = array<i64: 2, 8, 32>}, {transform_indices = @transform_1, window_bounds = array<i64: 2, 16, 32>}, {transform_indices = @transform_2, window_bounds = array<i64: 2, 1, 8>}, {transform_indices = @transform_3, window_bounds = array<i64: 2, 1, 16>}, {transform_indices = @transform_4, window_bounds = array<i64: 1, 32, 96>}, {transform_indices = @transform_5, window_bounds = array<i64: 1, 1, 96>}, {transform_indices = @transform_6, window_bounds = array<i64: 1, 32, 32>}, {transform_indices = @transform_7, window_bounds = array<i64: 1, 1, 32>}, {transform_indices = @transform_8, window_bounds = array<i64: 1, 32, 32>}, {transform_indices = @transform_9, window_bounds = array<i64: 1, 1, 32>}, {transform_indices = @transform_10, window_bounds = array<i64: 1, 32, 64>}, {transform_indices = @transform_11, window_bounds = array<i64: 1, 1, 64>}, {transform_indices = @transform_12, window_bounds = array<i64: 1, 32, 32>}, {transform_indices = @transform_13, window_bounds = array<i64: 1, 1, 32>}, {transform_indices = @transform_14, window_bounds = array<i64: 1, 1, 32>}, {transform_indices = @transform_15, window_bounds = array<i64: 1, 1, 32>}, {transform_indices = @transform_16, window_bounds = array<i64: 1, 1, 32>}, {transform_indices = @transform_17, window_bounds = array<i64: 1, 1, 32>}, {transform_indices = @transform_18, window_bounds = array<i64: 1, 32, 64>}, {transform_indices = @transform_19, window_bounds = array<i64: 1, 1, 64>}, {transform_indices = @transform_20, window_bounds = array<i64: 1, 64, 32>}, {transform_indices = @transform_21, window_bounds = array<i64: 1, 1, 32>}, {transform_indices = @transform_22, window_bounds = array<i64: 2, 8, 32>}, {transform_indices = @transform_23, window_bounds = array<i64: 2, 4, 8, 8>}, {transform_indices = @transform_24, window_bounds = array<i64: 2, 4, 8, 16>}]} {
    %c0_i32 = arith.constant 0 : i32
    %0 = arith.cmpi eq, %arg1, %c0_i32 : i32
    %1 = arith.extui %0 : i1 to i32
    %c0_i32_0 = arith.constant 0 : i32
    %2 = arith.cmpi ne, %1, %c0_i32_0 : i32
    scf.if %2 {
      %c0_138 = arith.constant 0 : index
      %c0_139 = arith.constant 0 : index
      %c0_140 = arith.constant 0 : index
      %301 = vector.load %arg2[%c0_138, %c0_139, %c0_140] : memref<2x8x32xf32, #tpu.memory_space<vmem>>, vector<2x8x32xf32>
      %c0_141 = arith.constant 0 : index
      %c0_142 = arith.constant 0 : index
      %c0_143 = arith.constant 0 : index
      %302 = vector.load %arg24[%c0_141, %c0_142, %c0_143] : memref<2x8x32xf32, #tpu.memory_space<vmem>>, vector<2x8x32xf32>
      tpu.vector_store %arg24[%c0_141, %c0_142, %c0_143], %301 {strides = array<i32>} : memref<2x8x32xf32, #tpu.memory_space<vmem>>, vector<2x8x32xf32>,
    } else {
    }
    %c0 = arith.constant 0 : index
    %c0_1 = arith.constant 0 : index
    %c0_2 = arith.constant 0 : index
    %3 = vector.load %arg24[%c0, %c0_1, %c0_2] : memref<2x8x32xf32, #tpu.memory_space<vmem>>, vector<2x8x32xf32>
    %4 = vector.shape_cast %3 : vector<2x8x32xf32> to vector<16x32xf32>
    %c0_3 = arith.constant 0 : index
    %c0_4 = arith.constant 0 : index
    %c0_5 = arith.constant 0 : index
    %5 = vector.load %arg3[%c0_3, %c0_4, %c0_5] : memref<2x16x32xbf16, #tpu.memory_space<vmem>>, vector<2x16x32xbf16>
    %6 = vector.shape_cast %5 : vector<2x16x32xbf16> to vector<32x32xbf16>
    %7 = arith.truncf %4 : vector<16x32xf32> to vector<16x32xbf16>
    %c0_6 = arith.constant 0 : index
    %c0_7 = arith.constant 0 : index
    %c0_8 = arith.constant 0 : index
    %8 = vector.load %arg6[%c0_6, %c0_7, %c0_8] : memref<1x32x96xbf16, #tpu.memory_space<vmem>>, vector<1x32x96xbf16>
    %9 = vector.shape_cast %8 : vector<1x32x96xbf16> to vector<32x96xbf16>
    %cst = arith.constant dense<0.000000e+00> : vector<16x96xf32>
    %10 = tpu.matmul %7, %9, %cst {dimension_numbers = #tpu.dot_dimension_numbers<[1], [0], [0], [1], [0, 0, 1, 1], [], []>} : vector<16x32xbf16>, vector<32x96xbf16>, vector<16x96xf32> -> vector<16x96xf32>
    %c0_9 = arith.constant 0 : index
    %c0_10 = arith.constant 0 : index
    %c0_11 = arith.constant 0 : index
    %11 = vector.load %arg7[%c0_9, %c0_10, %c0_11] : memref<1x1x96xf32, #tpu.memory_space<vmem>>, vector<1x1x96xf32>
    %12 = vector.shape_cast %11 : vector<1x1x96xf32> to vector<1x96xf32>
    %13 = vector.broadcast %12 : vector<1x96xf32> to vector<16x96xf32>
    %14 = arith.addf %10, %13 : vector<16x96xf32>
    %15 = vector.extract_strided_slice %14 {offsets = [0, 0], sizes = [8, 32], strides = [1, 1]} : vector<16x96xf32> to vector<8x32xf32>
    %16 = vector.extract_strided_slice %14 {offsets = [0, 32], sizes = [8, 32], strides = [1, 1]} : vector<16x96xf32> to vector<8x32xf32>
    %17 = vector.extract_strided_slice %14 {offsets = [0, 64], sizes = [8, 32], strides = [1, 1]} : vector<16x96xf32> to vector<8x32xf32>
    %c0_12 = arith.constant 0 : index
    %c0_13 = arith.constant 0 : index
    %c0_14 = arith.constant 0 : index
    %18 = vector.load %arg4[%c0_12, %c0_13, %c0_14] : memref<2x1x8xf32, #tpu.memory_space<vmem>>, vector<1x1x8xf32>
    %19 = vector.shape_cast %18 : vector<1x1x8xf32> to vector<1x8xf32>
    %20 = arith.truncf %15 : vector<8x32xf32> to vector<8x32xbf16>
    %21 = vector.shape_cast %20 : vector<8x32xbf16> to vector<8x4x8xbf16>
    %22 = tpu.transpose %21, [1, 0, 2] : vector<8x4x8xbf16> -> vector<4x8x8xbf16>
    %23 = arith.truncf %16 : vector<8x32xf32> to vector<8x32xbf16>
    %24 = vector.shape_cast %23 : vector<8x32xbf16> to vector<8x4x8xbf16>
    %25 = tpu.transpose %24, [1, 0, 2] : vector<8x4x8xbf16> -> vector<4x8x8xbf16>
    %26 = arith.truncf %17 : vector<8x32xf32> to vector<8x32xbf16>
    %27 = vector.shape_cast %26 : vector<8x32xbf16> to vector<8x4x8xbf16>
    %28 = tpu.transpose %27, [1, 0, 2] : vector<8x4x8xbf16> -> vector<4x8x8xbf16>
    "tpu.trace_start"() <{level = 10 : i32, message = "hqd,hkd->hqk"}> : () -> ()
    %cst_15 = arith.constant dense<0.000000e+00> : vector<4x8x8xf32>
    %29 = tpu.matmul %22, %25, %cst_15 {dimension_numbers = #tpu.dot_dimension_numbers<[2], [2], [1], [1], [0, 0, 0, 1, 1, 1], [0], [0]>} : vector<4x8x8xbf16>, vector<4x8x8xbf16>, vector<4x8x8xf32> -> vector<4x8x8xf32>
    "tpu.trace_stop"() : () -> ()
    %cst_16 = arith.constant 0.353553385 : f32
    %30 = vector.broadcast %cst_16 : f32 to vector<4x8x8xf32>
    %31 = arith.mulf %29, %30 : vector<4x8x8xf32>
    %32 = vector.shape_cast %19 : vector<1x8xf32> to vector<1x1x8xf32>
    %33 = vector.broadcast %32 : vector<1x1x8xf32> to vector<4x8x8xf32>
    %34 = arith.addf %31, %33 : vector<4x8x8xf32>
    %cst_17 = arith.constant dense<0xFF800000> : vector<4x8xf32>
    %35 = vector.multi_reduction <maximumf>, %34, %cst_17 [2] : vector<4x8x8xf32> to vector<4x8xf32>
    %36 = vector.shape_cast %35 : vector<4x8xf32> to vector<4x8x1xf32>
    %37 = vector.broadcast %36 : vector<4x8x1xf32> to vector<4x8x8xf32>
    %38 = arith.subf %34, %37 : vector<4x8x8xf32>
    %39 = math.exp %38 : vector<4x8x8xf32>
    %cst_18 = arith.constant dense<0.000000e+00> : vector<4x8xf32>
    %40 = vector.multi_reduction <add>, %39, %cst_18 [2] : vector<4x8x8xf32> to vector<4x8xf32>
    %41 = vector.shape_cast %40 : vector<4x8xf32> to vector<4x8x1xf32>
    %42 = tpu.reciprocal %41 {approx = true} : vector<4x8x1xf32> -> vector<4x8x1xf32>
    %43 = vector.broadcast %42 : vector<4x8x1xf32> to vector<4x8x8xf32>
    %44 = arith.mulf %39, %43 : vector<4x8x8xf32>
    %45 = arith.truncf %44 : vector<4x8x8xf32> to vector<4x8x8xbf16>
    "tpu.trace_start"() <{level = 10 : i32, message = "hqk,hkd->hqd"}> : () -> ()
    %cst_19 = arith.constant dense<0.000000e+00> : vector<4x8x8xf32>
    %46 = tpu.matmul %45, %28, %cst_19 {dimension_numbers = #tpu.dot_dimension_numbers<[2], [1], [1], [2], [0, 0, 0, 1, 1, 2], [0], [0]>} : vector<4x8x8xbf16>, vector<4x8x8xbf16>, vector<4x8x8xf32> -> vector<4x8x8xf32>
    "tpu.trace_stop"() : () -> ()
    %47 = tpu.transpose %46, [1, 0, 2] : vector<4x8x8xf32> -> vector<8x4x8xf32>
    %48 = vector.shape_cast %47 : vector<8x4x8xf32> to vector<8x32xf32>
    %49 = arith.truncf %44 : vector<4x8x8xf32> to vector<4x8x8xbf16>
    %c0_20 = arith.constant 0 : index
    %c0_21 = arith.constant 0 : index
    %c0_22 = arith.constant 0 : index
    %c0_23 = arith.constant 0 : index
    %50 = vector.load %arg25[%c0_20, %c0_21, %c0_22, %c0_23] : memref<2x4x8x8xbf16, #tpu.memory_space<vmem>>, vector<1x4x8x8xbf16>
    %51 = vector.shape_cast %50 : vector<1x4x8x8xbf16> to vector<4x8x8xbf16>
    %52 = vector.shape_cast %49 : vector<4x8x8xbf16> to vector<1x4x8x8xbf16>
    tpu.vector_store %arg25[%c0_20, %c0_21, %c0_22, %c0_23], %52 {strides = array<i32>} : memref<2x4x8x8xbf16, #tpu.memory_space<vmem>>, vector<1x4x8x8xbf16>,
    %53 = vector.extract_strided_slice %14 {offsets = [8, 0], sizes = [8, 32], strides = [1, 1]} : vector<16x96xf32> to vector<8x32xf32>
    %54 = vector.extract_strided_slice %14 {offsets = [8, 32], sizes = [8, 32], strides = [1, 1]} : vector<16x96xf32> to vector<8x32xf32>
    %55 = vector.extract_strided_slice %14 {offsets = [8, 64], sizes = [8, 32], strides = [1, 1]} : vector<16x96xf32> to vector<8x32xf32>
    %c1 = arith.constant 1 : index
    %c0_24 = arith.constant 0 : index
    %c0_25 = arith.constant 0 : index
    %56 = vector.load %arg4[%c1, %c0_24, %c0_25] : memref<2x1x8xf32, #tpu.memory_space<vmem>>, vector<1x1x8xf32>
    %57 = vector.shape_cast %56 : vector<1x1x8xf32> to vector<1x8xf32>
    %58 = arith.truncf %53 : vector<8x32xf32> to vector<8x32xbf16>
    %59 = vector.shape_cast %58 : vector<8x32xbf16> to vector<8x4x8xbf16>
    %60 = tpu.transpose %59, [1, 0, 2] : vector<8x4x8xbf16> -> vector<4x8x8xbf16>
    %61 = arith.truncf %54 : vector<8x32xf32> to vector<8x32xbf16>
    %62 = vector.shape_cast %61 : vector<8x32xbf16> to vector<8x4x8xbf16>
    %63 = tpu.transpose %62, [1, 0, 2] : vector<8x4x8xbf16> -> vector<4x8x8xbf16>
    %64 = arith.truncf %55 : vector<8x32xf32> to vector<8x32xbf16>
    %65 = vector.shape_cast %64 : vector<8x32xbf16> to vector<8x4x8xbf16>
    %66 = tpu.transpose %65, [1, 0, 2] : vector<8x4x8xbf16> -> vector<4x8x8xbf16>
    "tpu.trace_start"() <{level = 10 : i32, message = "hqd,hkd->hqk"}> : () -> ()
    %cst_26 = arith.constant dense<0.000000e+00> : vector<4x8x8xf32>
    %67 = tpu.matmul %60, %63, %cst_26 {dimension_numbers = #tpu.dot_dimension_numbers<[2], [2], [1], [1], [0, 0, 0, 1, 1, 1], [0], [0]>} : vector<4x8x8xbf16>, vector<4x8x8xbf16>, vector<4x8x8xf32> -> vector<4x8x8xf32>
    "tpu.trace_stop"() : () -> ()
    %cst_27 = arith.constant 0.353553385 : f32
    %68 = vector.broadcast %cst_27 : f32 to vector<4x8x8xf32>
    %69 = arith.mulf %67, %68 : vector<4x8x8xf32>
    %70 = vector.shape_cast %57 : vector<1x8xf32> to vector<1x1x8xf32>
    %71 = vector.broadcast %70 : vector<1x1x8xf32> to vector<4x8x8xf32>
    %72 = arith.addf %69, %71 : vector<4x8x8xf32>
    %cst_28 = arith.constant dense<0xFF800000> : vector<4x8xf32>
    %73 = vector.multi_reduction <maximumf>, %72, %cst_28 [2] : vector<4x8x8xf32> to vector<4x8xf32>
    %74 = vector.shape_cast %73 : vector<4x8xf32> to vector<4x8x1xf32>
    %75 = vector.broadcast %74 : vector<4x8x1xf32> to vector<4x8x8xf32>
    %76 = arith.subf %72, %75 : vector<4x8x8xf32>
    %77 = math.exp %76 : vector<4x8x8xf32>
    %cst_29 = arith.constant dense<0.000000e+00> : vector<4x8xf32>
    %78 = vector.multi_reduction <add>, %77, %cst_29 [2] : vector<4x8x8xf32> to vector<4x8xf32>
    %79 = vector.shape_cast %78 : vector<4x8xf32> to vector<4x8x1xf32>
    %80 = tpu.reciprocal %79 {approx = true} : vector<4x8x1xf32> -> vector<4x8x1xf32>
    %81 = vector.broadcast %80 : vector<4x8x1xf32> to vector<4x8x8xf32>
    %82 = arith.mulf %77, %81 : vector<4x8x8xf32>
    %83 = arith.truncf %82 : vector<4x8x8xf32> to vector<4x8x8xbf16>
    "tpu.trace_start"() <{level = 10 : i32, message = "hqk,hkd->hqd"}> : () -> ()
    %cst_30 = arith.constant dense<0.000000e+00> : vector<4x8x8xf32>
    %84 = tpu.matmul %83, %66, %cst_30 {dimension_numbers = #tpu.dot_dimension_numbers<[2], [1], [1], [2], [0, 0, 0, 1, 1, 2], [0], [0]>} : vector<4x8x8xbf16>, vector<4x8x8xbf16>, vector<4x8x8xf32> -> vector<4x8x8xf32>
    "tpu.trace_stop"() : () -> ()
    %85 = tpu.transpose %84, [1, 0, 2] : vector<4x8x8xf32> -> vector<8x4x8xf32>
    %86 = vector.shape_cast %85 : vector<8x4x8xf32> to vector<8x32xf32>
    %87 = arith.truncf %82 : vector<4x8x8xf32> to vector<4x8x8xbf16>
    %c1_31 = arith.constant 1 : index
    %c0_32 = arith.constant 0 : index
    %c0_33 = arith.constant 0 : index
    %c0_34 = arith.constant 0 : index
    %88 = vector.load %arg25[%c1_31, %c0_32, %c0_33, %c0_34] : memref<2x4x8x8xbf16, #tpu.memory_space<vmem>>, vector<1x4x8x8xbf16>
    %89 = vector.shape_cast %88 : vector<1x4x8x8xbf16> to vector<4x8x8xbf16>
    %90 = vector.shape_cast %87 : vector<4x8x8xbf16> to vector<1x4x8x8xbf16>
    tpu.vector_store %arg25[%c1_31, %c0_32, %c0_33, %c0_34], %90 {strides = array<i32>} : memref<2x4x8x8xbf16, #tpu.memory_space<vmem>>, vector<1x4x8x8xbf16>,
    %91 = tpu.concatenate %48, %86 in 0 : vector<8x32xf32>, vector<8x32xf32> -> vector<16x32xf32>
    %92 = arith.truncf %91 : vector<16x32xf32> to vector<16x32xbf16>
    %c0_35 = arith.constant 0 : index
    %c0_36 = arith.constant 0 : index
    %c0_37 = arith.constant 0 : index
    %93 = vector.load %arg8[%c0_35, %c0_36, %c0_37] : memref<1x32x32xbf16, #tpu.memory_space<vmem>>, vector<1x32x32xbf16>
    %94 = vector.shape_cast %93 : vector<1x32x32xbf16> to vector<32x32xbf16>
    %cst_38 = arith.constant dense<0.000000e+00> : vector<16x32xf32>
    %95 = tpu.matmul %92, %94, %cst_38 {dimension_numbers = #tpu.dot_dimension_numbers<[1], [0], [0], [1], [0, 0, 1, 1], [], []>} : vector<16x32xbf16>, vector<32x32xbf16>, vector<16x32xf32> -> vector<16x32xf32>
    %c0_39 = arith.constant 0 : index
    %c0_40 = arith.constant 0 : index
    %c0_41 = arith.constant 0 : index
    %96 = vector.load %arg9[%c0_39, %c0_40, %c0_41] : memref<1x1x32xf32, #tpu.memory_space<vmem>>, vector<1x1x32xf32>
    %97 = vector.shape_cast %96 : vector<1x1x32xf32> to vector<1x32xf32>
    %98 = vector.broadcast %97 : vector<1x32xf32> to vector<16x32xf32>
    %99 = arith.addf %95, %98 : vector<16x32xf32>
    %100 = arith.addf %4, %99 : vector<16x32xf32>
    %c0_42 = arith.constant 0 : index
    %c0_43 = arith.constant 0 : index
    %c0_44 = arith.constant 0 : index
    %101 = vector.load %arg16[%c0_42, %c0_43, %c0_44] : memref<1x1x32xf32, #tpu.memory_space<vmem>>, vector<1x1x32xf32>
    %102 = vector.shape_cast %101 : vector<1x1x32xf32> to vector<1x32xf32>
    %c0_45 = arith.constant 0 : index
    %c0_46 = arith.constant 0 : index
    %c0_47 = arith.constant 0 : index
    %103 = vector.load %arg17[%c0_45, %c0_46, %c0_47] : memref<1x1x32xf32, #tpu.memory_space<vmem>>, vector<1x1x32xf32>
    %104 = vector.shape_cast %103 : vector<1x1x32xf32> to vector<1x32xf32>
    %cst_48 = arith.constant dense<0.000000e+00> : vector<16xf32>
    %105 = vector.multi_reduction <add>, %100, %cst_48 [1] : vector<16x32xf32> to vector<16xf32>
    %106 = vector.shape_cast %105 : vector<16xf32> to vector<16x1xf32>
    %cst_49 = arith.constant 3.200000e+01 : f32
    %107 = vector.broadcast %cst_49 : f32 to vector<16x1xf32>
    %108 = arith.divf %106, %107 : vector<16x1xf32>
    %109 = vector.broadcast %108 : vector<16x1xf32> to vector<16x32xf32>
    %110 = arith.subf %100, %109 : vector<16x32xf32>
    %111 = arith.mulf %110, %110 : vector<16x32xf32>
    %cst_50 = arith.constant dense<0.000000e+00> : vector<16xf32>
    %112 = vector.multi_reduction <add>, %111, %cst_50 [1] : vector<16x32xf32> to vector<16xf32>
    %113 = vector.shape_cast %112 : vector<16xf32> to vector<16x1xf32>
    %cst_51 = arith.constant 3.200000e+01 : f32
    %114 = vector.broadcast %cst_51 : f32 to vector<16x1xf32>
    %115 = arith.divf %113, %114 : vector<16x1xf32>
    %116 = vector.broadcast %108 : vector<16x1xf32> to vector<16x32xf32>
    %117 = arith.subf %100, %116 : vector<16x32xf32>
    %cst_52 = arith.constant 9.99999974E-6 : f32
    %118 = vector.broadcast %cst_52 : f32 to vector<16x1xf32>
    %119 = arith.addf %115, %118 : vector<16x1xf32>
    %120 = math.rsqrt %119 : vector<16x1xf32>
    %121 = vector.broadcast %120 : vector<16x1xf32> to vector<16x32xf32>
    %122 = arith.mulf %117, %121 : vector<16x32xf32>
    %123 = vector.broadcast %102 : vector<1x32xf32> to vector<16x32xf32>
    %124 = arith.mulf %122, %123 : vector<16x32xf32>
    %125 = vector.broadcast %104 : vector<1x32xf32> to vector<16x32xf32>
    %126 = arith.addf %124, %125 : vector<16x32xf32>
    %127 = arith.truncf %126 : vector<16x32xf32> to vector<16x32xbf16>
    %c0_53 = arith.constant 0 : index
    %c0_54 = arith.constant 0 : index
    %c0_55 = arith.constant 0 : index
    %128 = vector.load %arg10[%c0_53, %c0_54, %c0_55] : memref<1x32x32xbf16, #tpu.memory_space<vmem>>, vector<1x32x32xbf16>
    %129 = vector.shape_cast %128 : vector<1x32x32xbf16> to vector<32x32xbf16>
    %cst_56 = arith.constant dense<0.000000e+00> : vector<16x32xf32>
    %130 = tpu.matmul %127, %129, %cst_56 {dimension_numbers = #tpu.dot_dimension_numbers<[1], [0], [0], [1], [0, 0, 1, 1], [], []>} : vector<16x32xbf16>, vector<32x32xbf16>, vector<16x32xf32> -> vector<16x32xf32>
    %c0_57 = arith.constant 0 : index
    %c0_58 = arith.constant 0 : index
    %c0_59 = arith.constant 0 : index
    %131 = vector.load %arg11[%c0_57, %c0_58, %c0_59] : memref<1x1x32xf32, #tpu.memory_space<vmem>>, vector<1x1x32xf32>
    %132 = vector.shape_cast %131 : vector<1x1x32xf32> to vector<1x32xf32>
    %133 = vector.broadcast %132 : vector<1x32xf32> to vector<16x32xf32>
    %134 = arith.addf %130, %133 : vector<16x32xf32>
    %c0_60 = arith.constant 0 : index
    %c0_61 = arith.constant 0 : index
    %c0_62 = arith.constant 0 : index
    %135 = vector.load %arg12[%c0_60, %c0_61, %c0_62] : memref<1x32x64xbf16, #tpu.memory_space<vmem>>, vector<1x32x64xbf16>
    %136 = vector.shape_cast %135 : vector<1x32x64xbf16> to vector<32x64xbf16>
    %cst_63 = arith.constant dense<0.000000e+00> : vector<32x64xf32>
    %137 = tpu.matmul %6, %136, %cst_63 {dimension_numbers = #tpu.dot_dimension_numbers<[1], [0], [0], [1], [0, 0, 1, 1], [], []>} : vector<32x32xbf16>, vector<32x64xbf16>, vector<32x64xf32> -> vector<32x64xf32>
    %c0_64 = arith.constant 0 : index
    %c0_65 = arith.constant 0 : index
    %c0_66 = arith.constant 0 : index
    %138 = vector.load %arg13[%c0_64, %c0_65, %c0_66] : memref<1x1x64xf32, #tpu.memory_space<vmem>>, vector<1x1x64xf32>
    %139 = vector.shape_cast %138 : vector<1x1x64xf32> to vector<1x64xf32>
    %140 = vector.broadcast %139 : vector<1x64xf32> to vector<32x64xf32>
    %141 = arith.addf %137, %140 : vector<32x64xf32>
    %142 = vector.extract_strided_slice %134 {offsets = [0, 0], sizes = [8, 32], strides = [1, 1]} : vector<16x32xf32> to vector<8x32xf32>
    %143 = vector.extract_strided_slice %141 {offsets = [0, 0], sizes = [16, 32], strides = [1, 1]} : vector<32x64xf32> to vector<16x32xf32>
    %144 = vector.extract_strided_slice %141 {offsets = [0, 32], sizes = [16, 32], strides = [1, 1]} : vector<32x64xf32> to vector<16x32xf32>
    %c0_67 = arith.constant 0 : index
    %c0_68 = arith.constant 0 : index
    %c0_69 = arith.constant 0 : index
    %145 = vector.load %arg5[%c0_67, %c0_68, %c0_69] : memref<2x1x16xf32, #tpu.memory_space<vmem>>, vector<1x1x16xf32>
    %146 = vector.shape_cast %145 : vector<1x1x16xf32> to vector<1x16xf32>
    %147 = arith.truncf %142 : vector<8x32xf32> to vector<8x32xbf16>
    %148 = vector.shape_cast %147 : vector<8x32xbf16> to vector<8x4x8xbf16>
    %149 = tpu.transpose %148, [1, 0, 2] : vector<8x4x8xbf16> -> vector<4x8x8xbf16>
    %150 = arith.truncf %143 : vector<16x32xf32> to vector<16x32xbf16>
    %151 = vector.shape_cast %150 : vector<16x32xbf16> to vector<16x4x8xbf16>
    %152 = tpu.transpose %151, [1, 0, 2] : vector<16x4x8xbf16> -> vector<4x16x8xbf16>
    %153 = arith.truncf %144 : vector<16x32xf32> to vector<16x32xbf16>
    %154 = vector.shape_cast %153 : vector<16x32xbf16> to vector<16x4x8xbf16>
    %155 = tpu.transpose %154, [1, 0, 2] : vector<16x4x8xbf16> -> vector<4x16x8xbf16>
    "tpu.trace_start"() <{level = 10 : i32, message = "hqd,hkd->hqk"}> : () -> ()
    %cst_70 = arith.constant dense<0.000000e+00> : vector<4x8x16xf32>
    %156 = tpu.matmul %149, %152, %cst_70 {dimension_numbers = #tpu.dot_dimension_numbers<[2], [2], [1], [1], [0, 0, 0, 1, 1, 1], [0], [0]>} : vector<4x8x8xbf16>, vector<4x16x8xbf16>, vector<4x8x16xf32> -> vector<4x8x16xf32>
    "tpu.trace_stop"() : () -> ()
    %cst_71 = arith.constant 0.353553385 : f32
    %157 = vector.broadcast %cst_71 : f32 to vector<4x8x16xf32>
    %158 = arith.mulf %156, %157 : vector<4x8x16xf32>
    %159 = vector.shape_cast %146 : vector<1x16xf32> to vector<1x1x16xf32>
    %160 = vector.broadcast %159 : vector<1x1x16xf32> to vector<4x8x16xf32>
    %161 = arith.addf %158, %160 : vector<4x8x16xf32>
    %cst_72 = arith.constant dense<0xFF800000> : vector<4x8xf32>
    %162 = vector.multi_reduction <maximumf>, %161, %cst_72 [2] : vector<4x8x16xf32> to vector<4x8xf32>
    %163 = vector.shape_cast %162 : vector<4x8xf32> to vector<4x8x1xf32>
    %164 = vector.broadcast %163 : vector<4x8x1xf32> to vector<4x8x16xf32>
    %165 = arith.subf %161, %164 : vector<4x8x16xf32>
    %166 = math.exp %165 : vector<4x8x16xf32>
    %cst_73 = arith.constant dense<0.000000e+00> : vector<4x8xf32>
    %167 = vector.multi_reduction <add>, %166, %cst_73 [2] : vector<4x8x16xf32> to vector<4x8xf32>
    %168 = vector.shape_cast %167 : vector<4x8xf32> to vector<4x8x1xf32>
    %169 = tpu.reciprocal %168 {approx = true} : vector<4x8x1xf32> -> vector<4x8x1xf32>
    %170 = vector.broadcast %169 : vector<4x8x1xf32> to vector<4x8x16xf32>
    %171 = arith.mulf %166, %170 : vector<4x8x16xf32>
    %172 = arith.truncf %171 : vector<4x8x16xf32> to vector<4x8x16xbf16>
    "tpu.trace_start"() <{level = 10 : i32, message = "hqk,hkd->hqd"}> : () -> ()
    %cst_74 = arith.constant dense<0.000000e+00> : vector<4x8x8xf32>
    %173 = tpu.matmul %172, %155, %cst_74 {dimension_numbers = #tpu.dot_dimension_numbers<[2], [1], [1], [2], [0, 0, 0, 1, 1, 2], [0], [0]>} : vector<4x8x16xbf16>, vector<4x16x8xbf16>, vector<4x8x8xf32> -> vector<4x8x8xf32>
    "tpu.trace_stop"() : () -> ()
    %174 = tpu.transpose %173, [1, 0, 2] : vector<4x8x8xf32> -> vector<8x4x8xf32>
    %175 = vector.shape_cast %174 : vector<8x4x8xf32> to vector<8x32xf32>
    %176 = arith.truncf %171 : vector<4x8x16xf32> to vector<4x8x16xbf16>
    %c0_75 = arith.constant 0 : index
    %c0_76 = arith.constant 0 : index
    %c0_77 = arith.constant 0 : index
    %c0_78 = arith.constant 0 : index
    %177 = vector.load %arg26[%c0_75, %c0_76, %c0_77, %c0_78] : memref<2x4x8x16xbf16, #tpu.memory_space<vmem>>, vector<1x4x8x16xbf16>
    %178 = vector.shape_cast %177 : vector<1x4x8x16xbf16> to vector<4x8x16xbf16>
    %179 = vector.shape_cast %176 : vector<4x8x16xbf16> to vector<1x4x8x16xbf16>
    tpu.vector_store %arg26[%c0_75, %c0_76, %c0_77, %c0_78], %179 {strides = array<i32>} : memref<2x4x8x16xbf16, #tpu.memory_space<vmem>>, vector<1x4x8x16xbf16>,
    %180 = vector.extract_strided_slice %134 {offsets = [8, 0], sizes = [8, 32], strides = [1, 1]} : vector<16x32xf32> to vector<8x32xf32>
    %181 = vector.extract_strided_slice %141 {offsets = [16, 0], sizes = [16, 32], strides = [1, 1]} : vector<32x64xf32> to vector<16x32xf32>
    %182 = vector.extract_strided_slice %141 {offsets = [16, 32], sizes = [16, 32], strides = [1, 1]} : vector<32x64xf32> to vector<16x32xf32>
    %c1_79 = arith.constant 1 : index
    %c0_80 = arith.constant 0 : index
    %c0_81 = arith.constant 0 : index
    %183 = vector.load %arg5[%c1_79, %c0_80, %c0_81] : memref<2x1x16xf32, #tpu.memory_space<vmem>>, vector<1x1x16xf32>
    %184 = vector.shape_cast %183 : vector<1x1x16xf32> to vector<1x16xf32>
    %185 = arith.truncf %180 : vector<8x32xf32> to vector<8x32xbf16>
    %186 = vector.shape_cast %185 : vector<8x32xbf16> to vector<8x4x8xbf16>
    %187 = tpu.transpose %186, [1, 0, 2] : vector<8x4x8xbf16> -> vector<4x8x8xbf16>
    %188 = arith.truncf %181 : vector<16x32xf32> to vector<16x32xbf16>
    %189 = vector.shape_cast %188 : vector<16x32xbf16> to vector<16x4x8xbf16>
    %190 = tpu.transpose %189, [1, 0, 2] : vector<16x4x8xbf16> -> vector<4x16x8xbf16>
    %191 = arith.truncf %182 : vector<16x32xf32> to vector<16x32xbf16>
    %192 = vector.shape_cast %191 : vector<16x32xbf16> to vector<16x4x8xbf16>
    %193 = tpu.transpose %192, [1, 0, 2] : vector<16x4x8xbf16> -> vector<4x16x8xbf16>
    "tpu.trace_start"() <{level = 10 : i32, message = "hqd,hkd->hqk"}> : () -> ()
    %cst_82 = arith.constant dense<0.000000e+00> : vector<4x8x16xf32>
    %194 = tpu.matmul %187, %190, %cst_82 {dimension_numbers = #tpu.dot_dimension_numbers<[2], [2], [1], [1], [0, 0, 0, 1, 1, 1], [0], [0]>} : vector<4x8x8xbf16>, vector<4x16x8xbf16>, vector<4x8x16xf32> -> vector<4x8x16xf32>
    "tpu.trace_stop"() : () -> ()
    %cst_83 = arith.constant 0.353553385 : f32
    %195 = vector.broadcast %cst_83 : f32 to vector<4x8x16xf32>
    %196 = arith.mulf %194, %195 : vector<4x8x16xf32>
    %197 = vector.shape_cast %184 : vector<1x16xf32> to vector<1x1x16xf32>
    %198 = vector.broadcast %197 : vector<1x1x16xf32> to vector<4x8x16xf32>
    %199 = arith.addf %196, %198 : vector<4x8x16xf32>
    %cst_84 = arith.constant dense<0xFF800000> : vector<4x8xf32>
    %200 = vector.multi_reduction <maximumf>, %199, %cst_84 [2] : vector<4x8x16xf32> to vector<4x8xf32>
    %201 = vector.shape_cast %200 : vector<4x8xf32> to vector<4x8x1xf32>
    %202 = vector.broadcast %201 : vector<4x8x1xf32> to vector<4x8x16xf32>
    %203 = arith.subf %199, %202 : vector<4x8x16xf32>
    %204 = math.exp %203 : vector<4x8x16xf32>
    %cst_85 = arith.constant dense<0.000000e+00> : vector<4x8xf32>
    %205 = vector.multi_reduction <add>, %204, %cst_85 [2] : vector<4x8x16xf32> to vector<4x8xf32>
    %206 = vector.shape_cast %205 : vector<4x8xf32> to vector<4x8x1xf32>
    %207 = tpu.reciprocal %206 {approx = true} : vector<4x8x1xf32> -> vector<4x8x1xf32>
    %208 = vector.broadcast %207 : vector<4x8x1xf32> to vector<4x8x16xf32>
    %209 = arith.mulf %204, %208 : vector<4x8x16xf32>
    %210 = arith.truncf %209 : vector<4x8x16xf32> to vector<4x8x16xbf16>
    "tpu.trace_start"() <{level = 10 : i32, message = "hqk,hkd->hqd"}> : () -> ()
    %cst_86 = arith.constant dense<0.000000e+00> : vector<4x8x8xf32>
    %211 = tpu.matmul %210, %193, %cst_86 {dimension_numbers = #tpu.dot_dimension_numbers<[2], [1], [1], [2], [0, 0, 0, 1, 1, 2], [0], [0]>} : vector<4x8x16xbf16>, vector<4x16x8xbf16>, vector<4x8x8xf32> -> vector<4x8x8xf32>
    "tpu.trace_stop"() : () -> ()
    %212 = tpu.transpose %211, [1, 0, 2] : vector<4x8x8xf32> -> vector<8x4x8xf32>
    %213 = vector.shape_cast %212 : vector<8x4x8xf32> to vector<8x32xf32>
    %214 = arith.truncf %209 : vector<4x8x16xf32> to vector<4x8x16xbf16>
    %c1_87 = arith.constant 1 : index
    %c0_88 = arith.constant 0 : index
    %c0_89 = arith.constant 0 : index
    %c0_90 = arith.constant 0 : index
    %215 = vector.load %arg26[%c1_87, %c0_88, %c0_89, %c0_90] : memref<2x4x8x16xbf16, #tpu.memory_space<vmem>>, vector<1x4x8x16xbf16>
    %216 = vector.shape_cast %215 : vector<1x4x8x16xbf16> to vector<4x8x16xbf16>
    %217 = vector.shape_cast %214 : vector<4x8x16xbf16> to vector<1x4x8x16xbf16>
    tpu.vector_store %arg26[%c1_87, %c0_88, %c0_89, %c0_90], %217 {strides = array<i32>} : memref<2x4x8x16xbf16, #tpu.memory_space<vmem>>, vector<1x4x8x16xbf16>,
    %218 = tpu.concatenate %175, %213 in 0 : vector<8x32xf32>, vector<8x32xf32> -> vector<16x32xf32>
    %219 = arith.truncf %218 : vector<16x32xf32> to vector<16x32xbf16>
    %c0_91 = arith.constant 0 : index
    %c0_92 = arith.constant 0 : index
    %c0_93 = arith.constant 0 : index
    %220 = vector.load %arg14[%c0_91, %c0_92, %c0_93] : memref<1x32x32xbf16, #tpu.memory_space<vmem>>, vector<1x32x32xbf16>
    %221 = vector.shape_cast %220 : vector<1x32x32xbf16> to vector<32x32xbf16>
    %cst_94 = arith.constant dense<0.000000e+00> : vector<16x32xf32>
    %222 = tpu.matmul %219, %221, %cst_94 {dimension_numbers = #tpu.dot_dimension_numbers<[1], [0], [0], [1], [0, 0, 1, 1], [], []>} : vector<16x32xbf16>, vector<32x32xbf16>, vector<16x32xf32> -> vector<16x32xf32>
    %c0_95 = arith.constant 0 : index
    %c0_96 = arith.constant 0 : index
    %c0_97 = arith.constant 0 : index
    %223 = vector.load %arg15[%c0_95, %c0_96, %c0_97] : memref<1x1x32xf32, #tpu.memory_space<vmem>>, vector<1x1x32xf32>
    %224 = vector.shape_cast %223 : vector<1x1x32xf32> to vector<1x32xf32>
    %225 = vector.broadcast %224 : vector<1x32xf32> to vector<16x32xf32>
    %226 = arith.addf %222, %225 : vector<16x32xf32>
    %227 = arith.addf %126, %226 : vector<16x32xf32>
    %c0_98 = arith.constant 0 : index
    %c0_99 = arith.constant 0 : index
    %c0_100 = arith.constant 0 : index
    %228 = vector.load %arg18[%c0_98, %c0_99, %c0_100] : memref<1x1x32xf32, #tpu.memory_space<vmem>>, vector<1x1x32xf32>
    %229 = vector.shape_cast %228 : vector<1x1x32xf32> to vector<1x32xf32>
    %c0_101 = arith.constant 0 : index
    %c0_102 = arith.constant 0 : index
    %c0_103 = arith.constant 0 : index
    %230 = vector.load %arg19[%c0_101, %c0_102, %c0_103] : memref<1x1x32xf32, #tpu.memory_space<vmem>>, vector<1x1x32xf32>
    %231 = vector.shape_cast %230 : vector<1x1x32xf32> to vector<1x32xf32>
    %cst_104 = arith.constant dense<0.000000e+00> : vector<16xf32>
    %232 = vector.multi_reduction <add>, %227, %cst_104 [1] : vector<16x32xf32> to vector<16xf32>
    %233 = vector.shape_cast %232 : vector<16xf32> to vector<16x1xf32>
    %cst_105 = arith.constant 3.200000e+01 : f32
    %234 = vector.broadcast %cst_105 : f32 to vector<16x1xf32>
    %235 = arith.divf %233, %234 : vector<16x1xf32>
    %236 = vector.broadcast %235 : vector<16x1xf32> to vector<16x32xf32>
    %237 = arith.subf %227, %236 : vector<16x32xf32>
    %238 = arith.mulf %237, %237 : vector<16x32xf32>
    %cst_106 = arith.constant dense<0.000000e+00> : vector<16xf32>
    %239 = vector.multi_reduction <add>, %238, %cst_106 [1] : vector<16x32xf32> to vector<16xf32>
    %240 = vector.shape_cast %239 : vector<16xf32> to vector<16x1xf32>
    %cst_107 = arith.constant 3.200000e+01 : f32
    %241 = vector.broadcast %cst_107 : f32 to vector<16x1xf32>
    %242 = arith.divf %240, %241 : vector<16x1xf32>
    %243 = vector.broadcast %235 : vector<16x1xf32> to vector<16x32xf32>
    %244 = arith.subf %227, %243 : vector<16x32xf32>
    %cst_108 = arith.constant 9.99999974E-6 : f32
    %245 = vector.broadcast %cst_108 : f32 to vector<16x1xf32>
    %246 = arith.addf %242, %245 : vector<16x1xf32>
    %247 = math.rsqrt %246 : vector<16x1xf32>
    %248 = vector.broadcast %247 : vector<16x1xf32> to vector<16x32xf32>
    %249 = arith.mulf %244, %248 : vector<16x32xf32>
    %250 = vector.broadcast %229 : vector<1x32xf32> to vector<16x32xf32>
    %251 = arith.mulf %249, %250 : vector<16x32xf32>
    %252 = vector.broadcast %231 : vector<1x32xf32> to vector<16x32xf32>
    %253 = arith.addf %251, %252 : vector<16x32xf32>
    %254 = arith.truncf %253 : vector<16x32xf32> to vector<16x32xbf16>
    %c0_109 = arith.constant 0 : index
    %c0_110 = arith.constant 0 : index
    %c0_111 = arith.constant 0 : index
    %255 = vector.load %arg20[%c0_109, %c0_110, %c0_111] : memref<1x32x64xbf16, #tpu.memory_space<vmem>>, vector<1x32x64xbf16>
    %256 = vector.shape_cast %255 : vector<1x32x64xbf16> to vector<32x64xbf16>
    %cst_112 = arith.constant dense<0.000000e+00> : vector<16x64xf32>
    %257 = tpu.matmul %254, %256, %cst_112 {dimension_numbers = #tpu.dot_dimension_numbers<[1], [0], [0], [1], [0, 0, 1, 1], [], []>} : vector<16x32xbf16>, vector<32x64xbf16>, vector<16x64xf32> -> vector<16x64xf32>
    %c0_113 = arith.constant 0 : index
    %c0_114 = arith.constant 0 : index
    %c0_115 = arith.constant 0 : index
    %258 = vector.load %arg21[%c0_113, %c0_114, %c0_115] : memref<1x1x64xf32, #tpu.memory_space<vmem>>, vector<1x1x64xf32>
    %259 = vector.shape_cast %258 : vector<1x1x64xf32> to vector<1x64xf32>
    %260 = vector.broadcast %259 : vector<1x64xf32> to vector<16x64xf32>
    %261 = arith.addf %257, %260 : vector<16x64xf32>
    %cst_116 = arith.constant 0.000000e+00 : f32
    %262 = vector.broadcast %cst_116 : f32 to vector<16x64xf32>
    %263 = arith.maximumf %261, %262 : vector<16x64xf32>
    %264 = arith.truncf %263 : vector<16x64xf32> to vector<16x64xbf16>
    %c0_117 = arith.constant 0 : index
    %c0_118 = arith.constant 0 : index
    %c0_119 = arith.constant 0 : index
    %265 = vector.load %arg22[%c0_117, %c0_118, %c0_119] : memref<1x64x32xbf16, #tpu.memory_space<vmem>>, vector<1x64x32xbf16>
    %266 = vector.shape_cast %265 : vector<1x64x32xbf16> to vector<64x32xbf16>
    %cst_120 = arith.constant dense<0.000000e+00> : vector<16x32xf32>
    %267 = tpu.matmul %264, %266, %cst_120 {dimension_numbers = #tpu.dot_dimension_numbers<[1], [0], [0], [1], [0, 0, 1, 1], [], []>} : vector<16x64xbf16>, vector<64x32xbf16>, vector<16x32xf32> -> vector<16x32xf32>
    %c0_121 = arith.constant 0 : index
    %c0_122 = arith.constant 0 : index
    %c0_123 = arith.constant 0 : index
    %268 = vector.load %arg23[%c0_121, %c0_122, %c0_123] : memref<1x1x32xf32, #tpu.memory_space<vmem>>, vector<1x1x32xf32>
    %269 = vector.shape_cast %268 : vector<1x1x32xf32> to vector<1x32xf32>
    %270 = vector.broadcast %269 : vector<1x32xf32> to vector<16x32xf32>
    %271 = arith.addf %267, %270 : vector<16x32xf32>
    %272 = arith.addf %253, %271 : vector<16x32xf32>
    %c0_124 = arith.constant 0 : index
    %c0_125 = arith.constant 0 : index
    %c0_126 = arith.constant 0 : index
    %273 = vector.load %arg18[%c0_124, %c0_125, %c0_126] : memref<1x1x32xf32, #tpu.memory_space<vmem>>, vector<1x1x32xf32>
    %274 = vector.shape_cast %273 : vector<1x1x32xf32> to vector<1x32xf32>
    %c0_127 = arith.constant 0 : index
    %c0_128 = arith.constant 0 : index
    %c0_129 = arith.constant 0 : index
    %275 = vector.load %arg19[%c0_127, %c0_128, %c0_129] : memref<1x1x32xf32, #tpu.memory_space<vmem>>, vector<1x1x32xf32>
    %276 = vector.shape_cast %275 : vector<1x1x32xf32> to vector<1x32xf32>
    %cst_130 = arith.constant dense<0.000000e+00> : vector<16xf32>
    %277 = vector.multi_reduction <add>, %272, %cst_130 [1] : vector<16x32xf32> to vector<16xf32>
    %278 = vector.shape_cast %277 : vector<16xf32> to vector<16x1xf32>
    %cst_131 = arith.constant 3.200000e+01 : f32
    %279 = vector.broadcast %cst_131 : f32 to vector<16x1xf32>
    %280 = arith.divf %278, %279 : vector<16x1xf32>
    %281 = vector.broadcast %280 : vector<16x1xf32> to vector<16x32xf32>
    %282 = arith.subf %272, %281 : vector<16x32xf32>
    %283 = arith.mulf %282, %282 : vector<16x32xf32>
    %cst_132 = arith.constant dense<0.000000e+00> : vector<16xf32>
    %284 = vector.multi_reduction <add>, %283, %cst_132 [1] : vector<16x32xf32> to vector<16xf32>
    %285 = vector.shape_cast %284 : vector<16xf32> to vector<16x1xf32>
    %cst_133 = arith.constant 3.200000e+01 : f32
    %286 = vector.broadcast %cst_133 : f32 to vector<16x1xf32>
    %287 = arith.divf %285, %286 : vector<16x1xf32>
    %288 = vector.broadcast %280 : vector<16x1xf32> to vector<16x32xf32>
    %289 = arith.subf %272, %288 : vector<16x32xf32>
    %cst_134 = arith.constant 9.99999974E-6 : f32
    %290 = vector.broadcast %cst_134 : f32 to vector<16x1xf32>
    %291 = arith.addf %287, %290 : vector<16x1xf32>
    %292 = math.rsqrt %291 : vector<16x1xf32>
    %293 = vector.broadcast %292 : vector<16x1xf32> to vector<16x32xf32>
    %294 = arith.mulf %289, %293 : vector<16x32xf32>
    %295 = vector.broadcast %274 : vector<1x32xf32> to vector<16x32xf32>
    %296 = arith.mulf %294, %295 : vector<16x32xf32>
    %297 = vector.broadcast %276 : vector<1x32xf32> to vector<16x32xf32>
    %298 = arith.addf %296, %297 : vector<16x32xf32>
    %299 = vector.shape_cast %298 : vector<16x32xf32> to vector<2x8x32xf32>
    %c0_135 = arith.constant 0 : index
    %c0_136 = arith.constant 0 : index
    %c0_137 = arith.constant 0 : index
    %300 = vector.load %arg24[%c0_135, %c0_136, %c0_137] : memref<2x8x32xf32, #tpu.memory_space<vmem>>, vector<2x8x32xf32>
    tpu.vector_store %arg24[%c0_135, %c0_136, %c0_137], %299 {strides = array<i32>} : memref<2x8x32xf32, #tpu.memory_space<vmem>>, vector<2x8x32xf32>,
    return
  }
  func.func @transform_0(%arg0: i32, %arg1: i32) -> (i32, i32, i32) {
    %c0_i32 = arith.constant 0 : i32
    %c0_i32_0 = arith.constant 0 : i32
    %c0_i32_1 = arith.constant 0 : i32
    return %arg0, %c0_i32, %c0_i32_0 : i32, i32, i32
  }
  func.func @transform_1(%arg0: i32, %arg1: i32) -> (i32, i32, i32) {
    %c0_i32 = arith.constant 0 : i32
    %c0_i32_0 = arith.constant 0 : i32
    %c0_i32_1 = arith.constant 0 : i32
    return %arg0, %c0_i32, %c0_i32_0 : i32, i32, i32
  }
  func.func @transform_2(%arg0: i32, %arg1: i32) -> (i32, i32, i32) {
    %c0_i32 = arith.constant 0 : i32
    %c0_i32_0 = arith.constant 0 : i32
    %c0_i32_1 = arith.constant 0 : i32
    return %arg0, %c0_i32, %c0_i32_0 : i32, i32, i32
  }
  func.func @transform_3(%arg0: i32, %arg1: i32) -> (i32, i32, i32) {
    %c0_i32 = arith.constant 0 : i32
    %c0_i32_0 = arith.constant 0 : i32
    %c0_i32_1 = arith.constant 0 : i32
    return %arg0, %c0_i32, %c0_i32_0 : i32, i32, i32
  }
  func.func @transform_4(%arg0: i32, %arg1: i32) -> (i32, i32, i32) {
    %c0_i32 = arith.constant 0 : i32
    %c0_i32_0 = arith.constant 0 : i32
    %c0_i32_1 = arith.constant 0 : i32
    return %arg1, %c0_i32, %c0_i32_0 : i32, i32, i32
  }
  func.func @transform_5(%arg0: i32, %arg1: i32) -> (i32, i32, i32) {
    %c0_i32 = arith.constant 0 : i32
    %c0_i32_0 = arith.constant 0 : i32
    %c0_i32_1 = arith.constant 0 : i32
    return %arg1, %c0_i32, %c0_i32_0 : i32, i32, i32
  }
  func.func @transform_6(%arg0: i32, %arg1: i32) -> (i32, i32, i32) {
    %c0_i32 = arith.constant 0 : i32
    %c0_i32_0 = arith.constant 0 : i32
    %c0_i32_1 = arith.constant 0 : i32
    return %arg1, %c0_i32, %c0_i32_0 : i32, i32, i32
  }
  func.func @transform_7(%arg0: i32, %arg1: i32) -> (i32, i32, i32) {
    %c0_i32 = arith.constant 0 : i32
    %c0_i32_0 = arith.constant 0 : i32
    %c0_i32_1 = arith.constant 0 : i32
    return %arg1, %c0_i32, %c0_i32_0 : i32, i32, i32
  }
  func.func @transform_8(%arg0: i32, %arg1: i32) -> (i32, i32, i32) {
    %c0_i32 = arith.constant 0 : i32
    %c0_i32_0 = arith.constant 0 : i32
    %c0_i32_1 = arith.constant 0 : i32
    return %arg1, %c0_i32, %c0_i32_0 : i32, i32, i32
  }
  func.func @transform_9(%arg0: i32, %arg1: i32) -> (i32, i32, i32) {
    %c0_i32 = arith.constant 0 : i32
    %c0_i32_0 = arith.constant 0 : i32
    %c0_i32_1 = arith.constant 0 : i32
    return %arg1, %c0_i32, %c0_i32_0 : i32, i32, i32
  }
  func.func @transform_10(%arg0: i32, %arg1: i32) -> (i32, i32, i32) {
    %c0_i32 = arith.constant 0 : i32
    %c0_i32_0 = arith.constant 0 : i32
    %c0_i32_1 = arith.constant 0 : i32
    return %arg1, %c0_i32, %c0_i32_0 : i32, i32, i32
  }
  func.func @transform_11(%arg0: i32, %arg1: i32) -> (i32, i32, i32) {
    %c0_i32 = arith.constant 0 : i32
    %c0_i32_0 = arith.constant 0 : i32
    %c0_i32_1 = arith.constant 0 : i32
    return %arg1, %c0_i32, %c0_i32_0 : i32, i32, i32
  }
  func.func @transform_12(%arg0: i32, %arg1: i32) -> (i32, i32, i32) {
    %c0_i32 = arith.constant 0 : i32
    %c0_i32_0 = arith.constant 0 : i32
    %c0_i32_1 = arith.constant 0 : i32
    return %arg1, %c0_i32, %c0_i32_0 : i32, i32, i32
  }
  func.func @transform_13(%arg0: i32, %arg1: i32) -> (i32, i32, i32) {
    %c0_i32 = arith.constant 0 : i32
    %c0_i32_0 = arith.constant 0 : i32
    %c0_i32_1 = arith.constant 0 : i32
    return %arg1, %c0_i32, %c0_i32_0 : i32, i32, i32
  }
  func.func @transform_14(%arg0: i32, %arg1: i32) -> (i32, i32, i32) {
    %c0_i32 = arith.constant 0 : i32
    %c0_i32_0 = arith.constant 0 : i32
    %c0_i32_1 = arith.constant 0 : i32
    return %arg1, %c0_i32, %c0_i32_0 : i32, i32, i32
  }
  func.func @transform_15(%arg0: i32, %arg1: i32) -> (i32, i32, i32) {
    %c0_i32 = arith.constant 0 : i32
    %c0_i32_0 = arith.constant 0 : i32
    %c0_i32_1 = arith.constant 0 : i32
    return %arg1, %c0_i32, %c0_i32_0 : i32, i32, i32
  }
  func.func @transform_16(%arg0: i32, %arg1: i32) -> (i32, i32, i32) {
    %c0_i32 = arith.constant 0 : i32
    %c0_i32_0 = arith.constant 0 : i32
    %c0_i32_1 = arith.constant 0 : i32
    return %arg1, %c0_i32, %c0_i32_0 : i32, i32, i32
  }
  func.func @transform_17(%arg0: i32, %arg1: i32) -> (i32, i32, i32) {
    %c0_i32 = arith.constant 0 : i32
    %c0_i32_0 = arith.constant 0 : i32
    %c0_i32_1 = arith.constant 0 : i32
    return %arg1, %c0_i32, %c0_i32_0 : i32, i32, i32
  }
  func.func @transform_18(%arg0: i32, %arg1: i32) -> (i32, i32, i32) {
    %c0_i32 = arith.constant 0 : i32
    %c0_i32_0 = arith.constant 0 : i32
    %c0_i32_1 = arith.constant 0 : i32
    return %arg1, %c0_i32, %c0_i32_0 : i32, i32, i32
  }
  func.func @transform_19(%arg0: i32, %arg1: i32) -> (i32, i32, i32) {
    %c0_i32 = arith.constant 0 : i32
    %c0_i32_0 = arith.constant 0 : i32
    %c0_i32_1 = arith.constant 0 : i32
    return %arg1, %c0_i32, %c0_i32_0 : i32, i32, i32
  }
  func.func @transform_20(%arg0: i32, %arg1: i32) -> (i32, i32, i32) {
    %c0_i32 = arith.constant 0 : i32
    %c0_i32_0 = arith.constant 0 : i32
    %c0_i32_1 = arith.constant 0 : i32
    return %arg1, %c0_i32, %c0_i32_0 : i32, i32, i32
  }
  func.func @transform_21(%arg0: i32, %arg1: i32) -> (i32, i32, i32) {
    %c0_i32 = arith.constant 0 : i32
    %c0_i32_0 = arith.constant 0 : i32
    %c0_i32_1 = arith.constant 0 : i32
    return %arg1, %c0_i32, %c0_i32_0 : i32, i32, i32
  }
  func.func @transform_22(%arg0: i32, %arg1: i32) -> (i32, i32, i32) {
    %c0_i32 = arith.constant 0 : i32
    %c0_i32_0 = arith.constant 0 : i32
    %c0_i32_1 = arith.constant 0 : i32
    return %arg0, %c0_i32, %c0_i32_0 : i32, i32, i32
  }
  func.func @transform_23(%arg0: i32, %arg1: i32) -> (i32, i32, i32, i32) {
    %c0_i32 = arith.constant 0 : i32
    %c0_i32_0 = arith.constant 0 : i32
    %c0_i32_1 = arith.constant 0 : i32
    %c0_i32_2 = arith.constant 0 : i32
    return %arg0, %c0_i32, %c0_i32_0, %c0_i32_1 : i32, i32, i32, i32
  }
  func.func @transform_24(%arg0: i32, %arg1: i32) -> (i32, i32, i32, i32) {
    %c0_i32 = arith.constant 0 : i32
    %c0_i32_0 = arith.constant 0 : i32
    %c0_i32_1 = arith.constant 0 : i32
    %c0_i32_2 = arith.constant 0 : i32
    return %arg0, %c0_i32, %c0_i32_0, %c0_i32_1 : i32, i32, i32, i32
  }
}

</mosaic_0001>

<llo_original>
// kernel: decoder_forward.3
$region0: #{decoder_forward.3}
  #allocation0 [shape = 'u32[]', space=smem, size = 0x4, offset = 0x4, fixed_abs, tag = 'smem constant byte address 0x4 - core index']
  #allocation1 [shape = 'u32[72,128]{1,0:T(1,128)}', space=vmem, size = 0x9000, scoped, tag = 'internal scratch']
  %s0 = inlined_call_operand.vmem [shape: bf16[128,32], index: 0, kind: input, shape index: {}]
  %s1 = inlined_call_operand.vmem [shape: bf16[32,128], index: 1, kind: input, shape index: {}]
  %s2 = inlined_call_operand.vmem [shape: f32[1,128], index: 2, kind: input, shape index: {}]
  %s3 = inlined_call_operand.vmem [shape: f32[128,128], index: 3, kind: output, shape index: {}]
  %s4 = sld [smem:[#allocation0]]
  $region22: #{decoder_forward.3} parent=0
    _
  %s6 = ssub.s32 1, %s4
  %s7 = scalar_select 0, %s6, %s4
  // Predicated region
  $region2: #{decoder_forward.3} parent=0 // pred_check
    _
  $region3: #{decoder_forward.3} parent=0 // pred_check_branch
    %9 = sbr.rel (0) target = $region5
  $region4: #{decoder_forward.3} parent=0 // pred_region
    _
  $region5: #{decoder_forward.3} parent=0 // pred_fallthru
    _
  // Predicated region
  $region6: #{decoder_forward.3} parent=0 // pred_check
    _
  $region7: #{decoder_forward.3} parent=0 // pred_check_branch
    %11 = sbr.rel (0) target = $region9
  $region8: #{decoder_forward.3} parent=0 // pred_region
    _
  $region9: #{decoder_forward.3} parent=0 // pred_fallthru
    _
  // Predicated region
  $region10: #{decoder_forward.3} parent=0 // pred_check
    _
  $region11: #{decoder_forward.3} parent=0 // pred_check_branch
    %13 = sbr.rel (0) target = $region13
  $region12: #{decoder_forward.3} parent=0 // pred_region
    _
  $region13: #{decoder_forward.3} parent=0 // pred_fallthru
    _
  %v15 = vld [vmem:[%s0] sm:$0xf]
  %v16 = vld [vmem:[%s0 + $0x4] sm:$0xf]
  %v17 = vld [vmem:[%s0 + $0x8] sm:$0xf]
  %v18 = vld [vmem:[%s0 + $0xc] sm:$0xf]
  %v19 = vld [vmem:[%s0 + $0x10] sm:$0xf]
  %v20 = vld [vmem:[%s0 + $0x14] sm:$0xf]
  %v21 = vld [vmem:[%s0 + $0x18] sm:$0xf]
  %v22 = vld [vmem:[%s0 + $0x1c] sm:$0xf]
  %v23 = vld [vmem:[%s0 + $0x20] sm:$0xf]
  %v24 = vld [vmem:[%s0 + $0x24] sm:$0xf]
  %v25 = vld [vmem:[%s0 + $0x28] sm:$0xf]
  %v26 = vld [vmem:[%s0 + $0x2c] sm:$0xf]
  %v27 = vld [vmem:[%s0 + $0x30] sm:$0xf]
  %v28 = vld [vmem:[%s0 + $0x34] sm:$0xf]
  %v29 = vld [vmem:[%s0 + $0x38] sm:$0xf]
  %v30 = vld [vmem:[%s0 + $0x3c] sm:$0xf]
  %v31 = vld [vmem:[%s1] sm:$0xf]
  %v32 = vld [vmem:[%s1 + $0x4] sm:$0xf]
  %v33 = vld [vmem:[%s1 + $0x8] sm:$0xf]
  %v34 = vld [vmem:[%s1 + $0xc] sm:$0xf]
  %v35 = vld [vmem:[%s2] sm:$0x1]
  %v37 = vperm.slane %v35, 0
  %v55 = vunpack.c.l.b16 %v15
  %v56 = vunpack.c.l.b16 %v16
  %v57 = vunpack.c.l.b16 %v17
  %v58 = vunpack.c.l.b16 %v18
  %v59 = vunpack.c.l.b16 %v19
  %v60 = vunpack.c.l.b16 %v20
  %v61 = vunpack.c.l.b16 %v21
  %v62 = vunpack.c.l.b16 %v22
  %v63 = vunpack.c.l.b16 %v23
  %v64 = vunpack.c.l.b16 %v24
  %v65 = vunpack.c.l.b16 %v25
  %v66 = vunpack.c.l.b16 %v26
  %v67 = vunpack.c.l.b16 %v27
  %v68 = vunpack.c.l.b16 %v28
  %v69 = vunpack.c.l.b16 %v29
  %v70 = vunpack.c.l.b16 %v30
  %v71 = vpack.c.b16 %v56, %v55
  %v72 = vpack.c.b16 %v58, %v57
  %v73 = vpack.c.b16 %v60, %v59
  %v74 = vpack.c.b16 %v62, %v61
  %v75 = vpack.c.b16 %v64, %v63
  %v76 = vpack.c.b16 %v66, %v65
  %v77 = vpack.c.b16 %v68, %v67
  %v78 = vpack.c.b16 %v70, %v69
  %v83 = vunpack.c.l.b16 %v31
  %v84 = vunpack.c.l.b16 %v32
  %v85 = vunpack.c.l.b16 %v33
  %v86 = vunpack.c.l.b16 %v34
  %v87 = vpack.c.b16 %v84, %v83
  %v88 = vpack.c.b16 %v86, %v85
  %vm91 = vcmask 261120
  %v93 = vsel %vm91, %v71, 0
  %v96 = vsel %vm91, %v72, 0
  %v99 = vsel %vm91, %v73, 0
  %v102 = vsel %vm91, %v74, 0
  %v105 = vsel %vm91, %v75, 0
  %v108 = vsel %vm91, %v76, 0
  %v111 = vsel %vm91, %v77, 0
  %v114 = vsel %vm91, %v78, 0
  %116 = vmatpush.bf16.msra.mxu0 0
  %117 = vmatpush.bf16.msra.mxu0 0
  %118 = vmatpush.bf16.msra.mxu0 0
  %119 = vmatpush.bf16.msra.mxu0 0
  %120 = vmatpush.bf16.msra.mxu0 0
  %121 = vmatpush.bf16.msra.mxu0 0
  %122 = vmatpush.bf16.msra.mxu0 %v88
  %123 = vmatpush.bf16.msra.mxu0 %v87
  %124 = vmatmul.bf16.gmra.mxu0 %v93
  %v125 = vpop.f32.mrf.mxu0
  %v126 = vadd.f32 %v37, %v125
  %v127 = vpop.f32.mrf.mxu0
  %v128 = vadd.f32 %v37, %v127
  %129 = vmatmul.bf16.gmra.mxu0 %v96
  %v130 = vpop.f32.mrf.mxu0
  %v131 = vadd.f32 %v37, %v130
  %v132 = vpop.f32.mrf.mxu0
  %v133 = vadd.f32 %v37, %v132
  %134 = vmatmul.bf16.gmra.mxu0 %v99
  %v135 = vpop.f32.mrf.mxu0
  %v136 = vadd.f32 %v37, %v135
  %v137 = vpop.f32.mrf.mxu0
  %v138 = vadd.f32 %v37, %v137
  %139 = vmatmul.bf16.gmra.mxu0 %v102
  %v140 = vpop.f32.mrf.mxu0
  %v141 = vadd.f32 %v37, %v140
  %v142 = vpop.f32.mrf.mxu0
  %v143 = vadd.f32 %v37, %v142
  %144 = vmatmul.bf16.gmra.mxu0 %v105
  %v145 = vpop.f32.mrf.mxu0
  %v146 = vadd.f32 %v37, %v145
  %v147 = vpop.f32.mrf.mxu0
  %v148 = vadd.f32 %v37, %v147
  %149 = vmatmul.bf16.gmra.mxu0 %v108
  %v150 = vpop.f32.mrf.mxu0
  %v151 = vadd.f32 %v37, %v150
  %v152 = vpop.f32.mrf.mxu0
  %v153 = vadd.f32 %v37, %v152
  %154 = vmatmul.bf16.gmra.mxu0 %v111
  %v155 = vpop.f32.mrf.mxu0
  %v156 = vadd.f32 %v37, %v155
  %v157 = vpop.f32.mrf.mxu0
  %v158 = vadd.f32 %v37, %v157
  %159 = vmatmul.bf16.gmra.mxu0 %v114
  %v160 = vpop.f32.mrf.mxu0
  %v161 = vadd.f32 %v37, %v160
  %v162 = vpop.f32.mrf.mxu0
  %v163 = vadd.f32 %v37, %v162
  %164 = vdwg.mxu0
  %165 = vst [vmem:[%s3] sm:$0xff] %v126
  %166 = vst [vmem:[%s3 + $0x8] sm:$0xff] %v128
  %167 = vst [vmem:[%s3 + $0x10] sm:$0xff] %v131
  %168 = vst [vmem:[%s3 + $0x18] sm:$0xff] %v133
  %169 = vst [vmem:[%s3 + $0x20] sm:$0xff] %v136
  %170 = vst [vmem:[%s3 + $0x28] sm:$0xff] %v138
  %171 = vst [vmem:[%s3 + $0x30] sm:$0xff] %v141
  %172 = vst [vmem:[%s3 + $0x38] sm:$0xff] %v143
  %173 = vst [vmem:[%s3 + $0x40] sm:$0xff] %v146
  %174 = vst [vmem:[%s3 + $0x48] sm:$0xff] %v148
  %175 = vst [vmem:[%s3 + $0x50] sm:$0xff] %v151
  %176 = vst [vmem:[%s3 + $0x58] sm:$0xff] %v153
  %177 = vst [vmem:[%s3 + $0x60] sm:$0xff] %v156
  %178 = vst [vmem:[%s3 + $0x68] sm:$0xff] %v158
  %179 = vst [vmem:[%s3 + $0x70] sm:$0xff] %v161
  %180 = vst [vmem:[%s3 + $0x78] sm:$0xff] %v163
  // Predicated region
  $region14: #{decoder_forward.3} parent=0 // pred_check
    _
  $region15: #{decoder_forward.3} parent=0 // pred_check_branch
    %182 = sbr.rel (0) target = $region17
  $region16: #{decoder_forward.3} parent=0 // pred_region
    _
  $region17: #{decoder_forward.3} parent=0 // pred_fallthru
    _
  // Predicated region
  $region18: #{decoder_forward.3} parent=0 // pred_check
    _
  $region19: #{decoder_forward.3} parent=0 // pred_check_branch
    %184 = sbr.rel (0) target = $region21
  $region20: #{decoder_forward.3} parent=0 // pred_region
    _
  $region21: #{decoder_forward.3} parent=0 // pred_fallthru
    _

// kernel: decoder_forward.2
$region0: #{decoder_forward.2}
  #allocation0 [shape = 'u32[]', space=smem, size = 0x4, offset = 0x4, fixed_abs, tag = 'smem constant byte address 0x4 - core index']
  #allocation1 [shape = 'u32[72,128]{1,0:T(1,128)}', space=vmem, size = 0x9000, scoped, tag = 'internal scratch']
  %s0 = inlined_call_operand.vmem [shape: f32[2,8,32], index: 0, kind: input, shape index: {}, may-alias: {0,22}]
  %s1 = inlined_call_operand.vmem [shape: bf16[2,16,32], index: 1, kind: input, shape index: {}]
  %s2 = inlined_call_operand.vmem [shape: f32[2,1,8], index: 2, kind: input, shape index: {}]
  %s3 = inlined_call_operand.vmem [shape: f32[2,1,16], index: 3, kind: input, shape index: {}]
  %s4 = inlined_call_operand.vmem [shape: bf16[2,32,96], index: 4, kind: input, shape index: {}]
  %s5 = inlined_call_operand.vmem [shape: f32[2,1,96], index: 5, kind: input, shape index: {}]
  %s6 = inlined_call_operand.vmem [shape: bf16[2,32,32], index: 6, kind: input, shape index: {}]
  %s7 = inlined_call_operand.vmem [shape: f32[2,1,32], index: 7, kind: input, shape index: {}]
  %s8 = inlined_call_operand.vmem [shape: bf16[2,32,32], index: 8, kind: input, shape index: {}]
  %s9 = inlined_call_operand.vmem [shape: f32[2,1,32], index: 9, kind: input, shape index: {}]
  %s10 = inlined_call_operand.vmem [shape: bf16[2,32,64], index: 10, kind: input, shape index: {}]
  %s11 = inlined_call_operand.vmem [shape: f32[2,1,64], index: 11, kind: input, shape index: {}]
  %s12 = inlined_call_operand.hbm [shape: bf16[2,32,32], index: 12, kind: input, shape index: {}]
  %s13 = inlined_call_operand.vmem [shape: f32[2,1,32], index: 13, kind: input, shape index: {}]
  %s14 = inlined_call_operand.vmem [shape: f32[2,1,32], index: 14, kind: input, shape index: {}, may-alias: {14,16}]
  %s15 = inlined_call_operand.vmem [shape: f32[2,1,32], index: 15, kind: input, shape index: {}, may-alias: {15,17}]
  %s16 = inlined_call_operand.vmem [shape: f32[2,1,32], index: 16, kind: input, shape index: {}, may-alias: {14,16}]
  %s17 = inlined_call_operand.vmem [shape: f32[2,1,32], index: 17, kind: input, shape index: {}, may-alias: {15,17}]
  %s18 = inlined_call_operand.hbm [shape: bf16[2,32,64], index: 18, kind: input, shape index: {}]
  %s19 = inlined_call_operand.vmem [shape: f32[2,1,64], index: 19, kind: input, shape index: {}]
  %s20 = inlined_call_operand.vmem [shape: bf16[2,64,32], index: 20, kind: input, shape index: {}]
  %s21 = inlined_call_operand.vmem [shape: f32[2,1,32], index: 21, kind: input, shape index: {}]
  %s22 = inlined_call_operand.vmem [shape: f32[2,8,32], index: 22, kind: output, shape index: {0}, may-alias: {0,22}]
  %s23 = inlined_call_operand.hbm [shape: bf16[2,4,8,8], index: 23, kind: output, shape index: {1}]
  %s24 = inlined_call_operand.hbm [shape: bf16[2,4,8,16], index: 24, kind: output, shape index: {2}]
  %25 = xla_tuple %s22, %s23, %s24
  %s26 = sld [smem:[#allocation0]]
  $region149: #{decoder_forward.2} parent=0
    _
  %s28 = ssub.s32 1, %s26
  %s29 = scalar_select 0, %s28, %s26
  $region1: #{decoder_forward.2} parent=0
    #allocation2 [shape = 'u8[16384]{0}', space=vmem, size = 0x4000, scoped, tag = 'input window, operand 12']
    #allocation3 [shape = 's32[2]{0}', space=sflag, size = 0x8, scoped, tag = 'scoped memory for decoder_forward.2']
    #allocation4 [shape = 's32[2]{0}', space=sflag, size = 0x8, scoped, tag = 'scoped memory for decoder_forward.2']
    #allocation5 [shape = 'u8[16384]{0}', space=vmem, size = 0x4000, scoped, tag = 'input window, operand 18']
    #allocation6 [shape = 's32[2]{0}', space=sflag, size = 0x8, scoped, tag = 'scoped memory for decoder_forward.2']
    #allocation7 [shape = 'u8[16384]{0}', space=vmem, size = 0x4000, scoped, tag = 'output window, operand 1, single buffered']
    #allocation8 [shape = 'u8[16384]{0}', space=vmem, size = 0x4000, scoped, tag = 'output window, operand 2, single buffered']
    #allocation9 [shape = 's32[1]{0}', space=sflag, size = 0x4, scoped, tag = 'scoped memory for decoder_forward.2']
    %30 = vsyncpa [#allocation3], 0
    %s31 = scalar_lea.sflag [#allocation3], 1
    %32 = vsyncpa %s31, 0
    %33 = vsyncpa [#allocation6], 0
    %s34 = scalar_lea.sflag [#allocation6], 1
    %35 = vsyncpa %s34, 0
    %36 = vsyncpa [#allocation4], 0
    %37 = vsyncpa [#allocation9], 0
    loop: start=0, step=1, limit=4
    $region2: #{decoder_forward.2} parent=1 // loop_pre_header
      _
    $region3: #{decoder_forward.2} parent=1 // loop_header
      %s39 = sphi 0, %s43
      %p40 = scmp.ge.s32.totalorder %s39, 4
      %s46 = sphi 0, %s58
      %s47 = sphi 0, %s54
      %s48 = sphi 0, %s46
      %s49 = sphi 0, %s47
      %s50 = sphi 0, %s48
      %s51 = sphi 0, %s49
      %s61 = sphi 0, %s63
      %s64 = sphi 0, %s61
      %s65 = sphi 0, %s64
      %s81 = sphi 0, %s65
      %s87 = sphi 0, %s89
      %s90 = sphi 0, %s87
      %s91 = sphi 0, %s90
      %s107 = sphi 0, %s91
      %s113 = sphi 0, %s115
      %s116 = sphi 0, %s113
      %s117 = sphi 0, %s116
      %s133 = sphi 0, %s117
      %s139 = sphi 0, %s141
      %s142 = sphi 0, %s139
      %s143 = sphi 0, %s142
      %s159 = sphi 0, %s143
      %s165 = sphi 0, %s167
      %s168 = sphi 0, %s165
      %s169 = sphi 0, %s168
      %s185 = sphi 0, %s169
      %s191 = sphi 0, %s193
      %s194 = sphi 0, %s191
      %s195 = sphi 0, %s194
      %s211 = sphi 0, %s195
      %s217 = sphi 0, %s219
      %s220 = sphi 0, %s217
      %s221 = sphi 0, %s220
      %s237 = sphi 0, %s221
      %s243 = sphi 0, %s245
      %s246 = sphi 0, %s243
      %s247 = sphi 0, %s246
      %s263 = sphi 0, %s247
      %s269 = sphi 0, %s271
      %s272 = sphi 0, %s269
      %s273 = sphi 0, %s272
      %s289 = sphi 0, %s273
      %s295 = sphi 0, %s297
      %s298 = sphi 0, %s295
      %s299 = sphi 0, %s298
      %s315 = sphi 0, %s299
      %s321 = sphi 0, %s323
      %s324 = sphi 0, %s321
      %s325 = sphi 0, %s324
      %s341 = sphi 0, %s325
      %s347 = sphi 0, %s349
      %s350 = sphi 0, %s347
      %s351 = sphi 0, %s350
      %s367 = sphi 0, %s351
      %s373 = sphi 0, %s375
      %s376 = sphi 0, %s373
      %s377 = sphi 0, %s376
      %s393 = sphi 0, %s377
      %s399 = sphi 0, %s401
      %s402 = sphi 0, %s399
      %s403 = sphi 0, %s402
      %s419 = sphi 0, %s403
      %s425 = sphi 0, %s427
      %s428 = sphi 0, %s425
      %s429 = sphi 0, %s428
      %s445 = sphi 0, %s429
      %s451 = sphi 0, %s453
      %s454 = sphi 0, %s451
      %s455 = sphi 0, %s454
      %s471 = sphi 0, %s455
      %s477 = sphi 0, %s479
      %s480 = sphi 0, %s477
      %s481 = sphi 0, %s480
      %s497 = sphi 0, %s481
      %s503 = sphi 0, %s505
      %s506 = sphi 0, %s503
      %s507 = sphi 0, %s506
      %s523 = sphi 0, %s507
      %s529 = sphi 0, %s531
      %s532 = sphi 0, %s529
      %s533 = sphi 0, %s532
      %s549 = sphi 0, %s533
      %s555 = sphi 0, %s557
      %s558 = sphi 0, %s555
      %s559 = sphi 0, %s558
      %s575 = sphi 0, %s559
      %s581 = sphi 0, %s583
      %s584 = sphi 0, %s581
      %s585 = sphi 0, %s584
      %s601 = sphi 0, %s585
      %s607 = sphi 0, %s609
      %s610 = sphi 0, %s607
      %s611 = sphi 0, %s610
      %s627 = sphi 0, %s611
      %s633 = sphi 0, %s635
      %s636 = sphi 0, %s633
      %s637 = sphi 0, %s636
      %s653 = sphi 0, %s637
      %s659 = sphi 0, %s661
      %s662 = sphi 0, %s659
      %s663 = sphi 0, %s662
      %s679 = sphi 0, %s663
      %s685 = sphi 0, %s687
      %s688 = sphi 0, %s685
      %s689 = sphi 0, %s688
      %s705 = sphi 0, %s689
    $region4: #{decoder_forward.2} parent=1 // loop_header_branch
      %42 = sbr.rel (%p40) target = $region8
    $region5: #{decoder_forward.2} parent=1 // loop_body
      %s44 = ssub.s32 %s39, 1
      %s45 = ssub.s32 %s39, 2
      %s52 = sadd.s32 1, %s47
      %p53 = scmp.ge.s32.totalorder %s52, 2
      %s54 = scalar_select %p53, 0, %s52
      %s55 = sadd.s32 1, %s46
      %s56 = scalar_select %p53, %s55, %s46
      %p57 = scmp.ge.s32.totalorder %s56, 1
      %s58 = scalar_select %p57, 0, %s56
      %s59 = ssub.s32 %s46, %s58
      %p60 = scmp.eq.s32.totalorder %s59, 0
      %s62 = sadd.s32 %s61, 1
      %s63 = scalar_select %p60, %s61, %s62
      %p66 = pneg %p60
      %p67 = scmp.eq.s32.totalorder %s39, 1
      %p68 = por %p66, %p67
      %p69 = scmp.ne.s32.totalorder %s61, %s64
      %p70 = scmp.eq.s32.totalorder %s39, 0
      %p71 = por %p69, %p70
      %p72 = scmp.ne.s32.totalorder %s61, %s64
      %p73 = scmp.eq.s32.totalorder %s44, 1
      %p74 = por %p72, %p73
      %p75 = scmp.ne.s32.totalorder %s64, %s65
      %p76 = scmp.eq.s32.totalorder %s44, 0
      %p77 = por %p75, %p76
      %p78 = scmp.ne.s32.totalorder %s64, %s65
      %p79 = scmp.eq.s32.totalorder %s45, 1
      %p80 = por %p78, %p79
      %p82 = scmp.ne.s32.totalorder %s65, %s81
      %p83 = scmp.eq.s32.totalorder %s45, 0
      %p84 = por %p82, %p83
      %s85 = ssub.s32 %s46, %s58
      %p86 = scmp.eq.s32.totalorder %s85, 0
      %s88 = sadd.s32 %s87, 1
      %s89 = scalar_select %p86, %s87, %s88
      %p92 = pneg %p86
      %p93 = scmp.eq.s32.totalorder %s39, 1
      %p94 = por %p92, %p93
      %p95 = scmp.ne.s32.totalorder %s87, %s90
      %p96 = scmp.eq.s32.totalorder %s39, 0
      %p97 = por %p95, %p96
      %p98 = scmp.ne.s32.totalorder %s87, %s90
      %p99 = scmp.eq.s32.totalorder %s44, 1
      %p100 = por %p98, %p99
      %p101 = scmp.ne.s32.totalorder %s90, %s91
      %p102 = scmp.eq.s32.totalorder %s44, 0
      %p103 = por %p101, %p102
      %p104 = scmp.ne.s32.totalorder %s90, %s91
      %p105 = scmp.eq.s32.totalorder %s45, 1
      %p106 = por %p104, %p105
      %p108 = scmp.ne.s32.totalorder %s91, %s107
      %p109 = scmp.eq.s32.totalorder %s45, 0
      %p110 = por %p108, %p109
      %s111 = ssub.s32 %s46, %s58
      %p112 = scmp.eq.s32.totalorder %s111, 0
      %s114 = sadd.s32 %s113, 1
      %s115 = scalar_select %p112, %s113, %s114
      %p118 = pneg %p112
      %p119 = scmp.eq.s32.totalorder %s39, 1
      %p120 = por %p118, %p119
      %p121 = scmp.ne.s32.totalorder %s113, %s116
      %p122 = scmp.eq.s32.totalorder %s39, 0
      %p123 = por %p121, %p122
      %p124 = scmp.ne.s32.totalorder %s113, %s116
      %p125 = scmp.eq.s32.totalorder %s44, 1
      %p126 = por %p124, %p125
      %p127 = scmp.ne.s32.totalorder %s116, %s117
      %p128 = scmp.eq.s32.totalorder %s44, 0
      %p129 = por %p127, %p128
      %p130 = scmp.ne.s32.totalorder %s116, %s117
      %p131 = scmp.eq.s32.totalorder %s45, 1
      %p132 = por %p130, %p131
      %p134 = scmp.ne.s32.totalorder %s117, %s133
      %p135 = scmp.eq.s32.totalorder %s45, 0
      %p136 = por %p134, %p135
      %s137 = ssub.s32 %s46, %s58
      %p138 = scmp.eq.s32.totalorder %s137, 0
      %s140 = sadd.s32 %s139, 1
      %s141 = scalar_select %p138, %s139, %s140
      %p144 = pneg %p138
      %p145 = scmp.eq.s32.totalorder %s39, 1
      %p146 = por %p144, %p145
      %p147 = scmp.ne.s32.totalorder %s139, %s142
      %p148 = scmp.eq.s32.totalorder %s39, 0
      %p149 = por %p147, %p148
      %p150 = scmp.ne.s32.totalorder %s139, %s142
      %p151 = scmp.eq.s32.totalorder %s44, 1
      %p152 = por %p150, %p151
      %p153 = scmp.ne.s32.totalorder %s142, %s143
      %p154 = scmp.eq.s32.totalorder %s44, 0
      %p155 = por %p153, %p154
      %p156 = scmp.ne.s32.totalorder %s142, %s143
      %p157 = scmp.eq.s32.totalorder %s45, 1
      %p158 = por %p156, %p157
      %p160 = scmp.ne.s32.totalorder %s143, %s159
      %p161 = scmp.eq.s32.totalorder %s45, 0
      %p162 = por %p160, %p161
      %s163 = ssub.s32 %s47, %s54
      %p164 = scmp.eq.s32.totalorder %s163, 0
      %s166 = sadd.s32 %s165, 1
      %s167 = scalar_select %p164, %s165, %s166
      %p170 = pneg %p164
      %p171 = scmp.eq.s32.totalorder %s39, 1
      %p172 = por %p170, %p171
      %p173 = scmp.ne.s32.totalorder %s165, %s168
      %p174 = scmp.eq.s32.totalorder %s39, 0
      %p175 = por %p173, %p174
      %p176 = scmp.ne.s32.totalorder %s165, %s168
      %p177 = scmp.eq.s32.totalorder %s44, 1
      %p178 = por %p176, %p177
      %p179 = scmp.ne.s32.totalorder %s168, %s169
      %p180 = scmp.eq.s32.totalorder %s44, 0
      %p181 = por %p179, %p180
      %p182 = scmp.ne.s32.totalorder %s168, %s169
      %p183 = scmp.eq.s32.totalorder %s45, 1
      %p184 = por %p182, %p183
      %p186 = scmp.ne.s32.totalorder %s169, %s185
      %p187 = scmp.eq.s32.totalorder %s45, 0
      %p188 = por %p186, %p187
      %s189 = ssub.s32 %s47, %s54
      %p190 = scmp.eq.s32.totalorder %s189, 0
      %s192 = sadd.s32 %s191, 1
      %s193 = scalar_select %p190, %s191, %s192
      %p196 = pneg %p190
      %p197 = scmp.eq.s32.totalorder %s39, 1
      %p198 = por %p196, %p197
      %p199 = scmp.ne.s32.totalorder %s191, %s194
      %p200 = scmp.eq.s32.totalorder %s39, 0
      %p201 = por %p199, %p200
      %p202 = scmp.ne.s32.totalorder %s191, %s194
      %p203 = scmp.eq.s32.totalorder %s44, 1
      %p204 = por %p202, %p203
      %p205 = scmp.ne.s32.totalorder %s194, %s195
      %p206 = scmp.eq.s32.totalorder %s44, 0
      %p207 = por %p205, %p206
      %p208 = scmp.ne.s32.totalorder %s194, %s195
      %p209 = scmp.eq.s32.totalorder %s45, 1
      %p210 = por %p208, %p209
      %p212 = scmp.ne.s32.totalorder %s195, %s211
      %p213 = scmp.eq.s32.totalorder %s45, 0
      %p214 = por %p212, %p213
      %s215 = ssub.s32 %s47, %s54
      %p216 = scmp.eq.s32.totalorder %s215, 0
      %s218 = sadd.s32 %s217, 1
      %s219 = scalar_select %p216, %s217, %s218
      %p222 = pneg %p216
      %p223 = scmp.eq.s32.totalorder %s39, 1
      %p224 = por %p222, %p223
      %p225 = scmp.ne.s32.totalorder %s217, %s220
      %p226 = scmp.eq.s32.totalorder %s39, 0
      %p227 = por %p225, %p226
      %p228 = scmp.ne.s32.totalorder %s217, %s220
      %p229 = scmp.eq.s32.totalorder %s44, 1
      %p230 = por %p228, %p229
      %p231 = scmp.ne.s32.totalorder %s220, %s221
      %p232 = scmp.eq.s32.totalorder %s44, 0
      %p233 = por %p231, %p232
      %p234 = scmp.ne.s32.totalorder %s220, %s221
      %p235 = scmp.eq.s32.totalorder %s45, 1
      %p236 = por %p234, %p235
      %p238 = scmp.ne.s32.totalorder %s221, %s237
      %p239 = scmp.eq.s32.totalorder %s45, 0
      %p240 = por %p238, %p239
      %s241 = ssub.s32 %s47, %s54
      %p242 = scmp.eq.s32.totalorder %s241, 0
      %s244 = sadd.s32 %s243, 1
      %s245 = scalar_select %p242, %s243, %s244
      %p248 = pneg %p242
      %p249 = scmp.eq.s32.totalorder %s39, 1
      %p250 = por %p248, %p249
      %p251 = scmp.ne.s32.totalorder %s243, %s246
      %p252 = scmp.eq.s32.totalorder %s39, 0
      %p253 = por %p251, %p252
      %p254 = scmp.ne.s32.totalorder %s243, %s246
      %p255 = scmp.eq.s32.totalorder %s44, 1
      %p256 = por %p254, %p255
      %p257 = scmp.ne.s32.totalorder %s246, %s247
      %p258 = scmp.eq.s32.totalorder %s44, 0
      %p259 = por %p257, %p258
      %p260 = scmp.ne.s32.totalorder %s246, %s247
      %p261 = scmp.eq.s32.totalorder %s45, 1
      %p262 = por %p260, %p261
      %p264 = scmp.ne.s32.totalorder %s247, %s263
      %p265 = scmp.eq.s32.totalorder %s45, 0
      %p266 = por %p264, %p265
      %s267 = ssub.s32 %s47, %s54
      %p268 = scmp.eq.s32.totalorder %s267, 0
      %s270 = sadd.s32 %s269, 1
      %s271 = scalar_select %p268, %s269, %s270
      %p274 = pneg %p268
      %p275 = scmp.eq.s32.totalorder %s39, 1
      %p276 = por %p274, %p275
      %p277 = scmp.ne.s32.totalorder %s269, %s272
      %p278 = scmp.eq.s32.totalorder %s39, 0
      %p279 = por %p277, %p278
      %p280 = scmp.ne.s32.totalorder %s269, %s272
      %p281 = scmp.eq.s32.totalorder %s44, 1
      %p282 = por %p280, %p281
      %p283 = scmp.ne.s32.totalorder %s272, %s273
      %p284 = scmp.eq.s32.totalorder %s44, 0
      %p285 = por %p283, %p284
      %p286 = scmp.ne.s32.totalorder %s272, %s273
      %p287 = scmp.eq.s32.totalorder %s45, 1
      %p288 = por %p286, %p287
      %p290 = scmp.ne.s32.totalorder %s273, %s289
      %p291 = scmp.eq.s32.totalorder %s45, 0
      %p292 = por %p290, %p291
      %s293 = ssub.s32 %s47, %s54
      %p294 = scmp.eq.s32.totalorder %s293, 0
      %s296 = sadd.s32 %s295, 1
      %s297 = scalar_select %p294, %s295, %s296
      %p300 = pneg %p294
      %p301 = scmp.eq.s32.totalorder %s39, 1
      %p302 = por %p300, %p301
      %p303 = scmp.ne.s32.totalorder %s295, %s298
      %p304 = scmp.eq.s32.totalorder %s39, 0
      %p305 = por %p303, %p304
      %p306 = scmp.ne.s32.totalorder %s295, %s298
      %p307 = scmp.eq.s32.totalorder %s44, 1
      %p308 = por %p306, %p307
      %p309 = scmp.ne.s32.totalorder %s298, %s299
      %p310 = scmp.eq.s32.totalorder %s44, 0
      %p311 = por %p309, %p310
      %p312 = scmp.ne.s32.totalorder %s298, %s299
      %p313 = scmp.eq.s32.totalorder %s45, 1
      %p314 = por %p312, %p313
      %p316 = scmp.ne.s32.totalorder %s299, %s315
      %p317 = scmp.eq.s32.totalorder %s45, 0
      %p318 = por %p316, %p317
      %s319 = ssub.s32 %s47, %s54
      %p320 = scmp.eq.s32.totalorder %s319, 0
      %s322 = sadd.s32 %s321, 1
      %s323 = scalar_select %p320, %s321, %s322
      %p326 = pneg %p320
      %p327 = scmp.eq.s32.totalorder %s39, 1
      %p328 = por %p326, %p327
      %p329 = scmp.ne.s32.totalorder %s321, %s324
      %p330 = scmp.eq.s32.totalorder %s39, 0
      %p331 = por %p329, %p330
      %p332 = scmp.ne.s32.totalorder %s321, %s324
      %p333 = scmp.eq.s32.totalorder %s44, 1
      %p334 = por %p332, %p333
      %p335 = scmp.ne.s32.totalorder %s324, %s325
      %p336 = scmp.eq.s32.totalorder %s44, 0
      %p337 = por %p335, %p336
      %p338 = scmp.ne.s32.totalorder %s324, %s325
      %p339 = scmp.eq.s32.totalorder %s45, 1
      %p340 = por %p338, %p339
      %p342 = scmp.ne.s32.totalorder %s325, %s341
      %p343 = scmp.eq.s32.totalorder %s45, 0
      %p344 = por %p342, %p343
      %s345 = ssub.s32 %s47, %s54
      %p346 = scmp.eq.s32.totalorder %s345, 0
      %s348 = sadd.s32 %s347, 1
      %s349 = scalar_select %p346, %s347, %s348
      %p352 = pneg %p346
      %p353 = scmp.eq.s32.totalorder %s39, 1
      %p354 = por %p352, %p353
      %p355 = scmp.ne.s32.totalorder %s347, %s350
      %p356 = scmp.eq.s32.totalorder %s39, 0
      %p357 = por %p355, %p356
      %p358 = scmp.ne.s32.totalorder %s347, %s350
      %p359 = scmp.eq.s32.totalorder %s44, 1
      %p360 = por %p358, %p359
      %p361 = scmp.ne.s32.totalorder %s350, %s351
      %p362 = scmp.eq.s32.totalorder %s44, 0
      %p363 = por %p361, %p362
      %p364 = scmp.ne.s32.totalorder %s350, %s351
      %p365 = scmp.eq.s32.totalorder %s45, 1
      %p366 = por %p364, %p365
      %p368 = scmp.ne.s32.totalorder %s351, %s367
      %p369 = scmp.eq.s32.totalorder %s45, 0
      %p370 = por %p368, %p369
      %s371 = ssub.s32 %s47, %s54
      %p372 = scmp.eq.s32.totalorder %s371, 0
      %s374 = sadd.s32 %s373, 1
      %s375 = scalar_select %p372, %s373, %s374
      %p378 = pneg %p372
      %p379 = scmp.eq.s32.totalorder %s39, 1
      %p380 = por %p378, %p379
      %p381 = scmp.ne.s32.totalorder %s373, %s376
      %p382 = scmp.eq.s32.totalorder %s39, 0
      %p383 = por %p381, %p382
      %p384 = scmp.ne.s32.totalorder %s373, %s376
      %p385 = scmp.eq.s32.totalorder %s44, 1
      %p386 = por %p384, %p385
      %p387 = scmp.ne.s32.totalorder %s376, %s377
      %p388 = scmp.eq.s32.totalorder %s44, 0
      %p389 = por %p387, %p388
      %p390 = scmp.ne.s32.totalorder %s376, %s377
      %p391 = scmp.eq.s32.totalorder %s45, 1
      %p392 = por %p390, %p391
      %p394 = scmp.ne.s32.totalorder %s377, %s393
      %p395 = scmp.eq.s32.totalorder %s45, 0
      %p396 = por %p394, %p395
      %s397 = ssub.s32 %s47, %s54
      %p398 = scmp.eq.s32.totalorder %s397, 0
      %s400 = sadd.s32 %s399, 1
      %s401 = scalar_select %p398, %s399, %s400
      %p404 = pneg %p398
      %p405 = scmp.eq.s32.totalorder %s39, 1
      %p406 = por %p404, %p405
      %p407 = scmp.ne.s32.totalorder %s399, %s402
      %p408 = scmp.eq.s32.totalorder %s39, 0
      %p409 = por %p407, %p408
      %p410 = scmp.ne.s32.totalorder %s399, %s402
      %p411 = scmp.eq.s32.totalorder %s44, 1
      %p412 = por %p410, %p411
      %p413 = scmp.ne.s32.totalorder %s402, %s403
      %p414 = scmp.eq.s32.totalorder %s44, 0
      %p415 = por %p413, %p414
      %p416 = scmp.ne.s32.totalorder %s402, %s403
      %p417 = scmp.eq.s32.totalorder %s45, 1
      %p418 = por %p416, %p417
      %p420 = scmp.ne.s32.totalorder %s403, %s419
      %p421 = scmp.eq.s32.totalorder %s45, 0
      %p422 = por %p420, %p421
      %s423 = ssub.s32 %s47, %s54
      %p424 = scmp.eq.s32.totalorder %s423, 0
      %s426 = sadd.s32 %s425, 1
      %s427 = scalar_select %p424, %s425, %s426
      %p430 = pneg %p424
      %p431 = scmp.eq.s32.totalorder %s39, 1
      %p432 = por %p430, %p431
      %p433 = scmp.ne.s32.totalorder %s425, %s428
      %p434 = scmp.eq.s32.totalorder %s39, 0
      %p435 = por %p433, %p434
      %p436 = scmp.ne.s32.totalorder %s425, %s428
      %p437 = scmp.eq.s32.totalorder %s44, 1
      %p438 = por %p436, %p437
      %p439 = scmp.ne.s32.totalorder %s428, %s429
      %p440 = scmp.eq.s32.totalorder %s44, 0
      %p441 = por %p439, %p440
      %p442 = scmp.ne.s32.totalorder %s428, %s429
      %p443 = scmp.eq.s32.totalorder %s45, 1
      %p444 = por %p442, %p443
      %p446 = scmp.ne.s32.totalorder %s429, %s445
      %p447 = scmp.eq.s32.totalorder %s45, 0
      %p448 = por %p446, %p447
      %s449 = ssub.s32 %s47, %s54
      %p450 = scmp.eq.s32.totalorder %s449, 0
      %s452 = sadd.s32 %s451, 1
      %s453 = scalar_select %p450, %s451, %s452
      %p456 = pneg %p450
      %p457 = scmp.eq.s32.totalorder %s39, 1
      %p458 = por %p456, %p457
      %p459 = scmp.ne.s32.totalorder %s451, %s454
      %p460 = scmp.eq.s32.totalorder %s39, 0
      %p461 = por %p459, %p460
      %p462 = scmp.ne.s32.totalorder %s451, %s454
      %p463 = scmp.eq.s32.totalorder %s44, 1
      %p464 = por %p462, %p463
      %p465 = scmp.ne.s32.totalorder %s454, %s455
      %p466 = scmp.eq.s32.totalorder %s44, 0
      %p467 = por %p465, %p466
      %p468 = scmp.ne.s32.totalorder %s454, %s455
      %p469 = scmp.eq.s32.totalorder %s45, 1
      %p470 = por %p468, %p469
      %p472 = scmp.ne.s32.totalorder %s455, %s471
      %p473 = scmp.eq.s32.totalorder %s45, 0
      %p474 = por %p472, %p473
      %s475 = ssub.s32 %s47, %s54
      %p476 = scmp.eq.s32.totalorder %s475, 0
      %s478 = sadd.s32 %s477, 1
      %s479 = scalar_select %p476, %s477, %s478
      %p482 = pneg %p476
      %p483 = scmp.eq.s32.totalorder %s39, 1
      %p484 = por %p482, %p483
      %p485 = scmp.ne.s32.totalorder %s477, %s480
      %p486 = scmp.eq.s32.totalorder %s39, 0
      %p487 = por %p485, %p486
      %p488 = scmp.ne.s32.totalorder %s477, %s480
      %p489 = scmp.eq.s32.totalorder %s44, 1
      %p490 = por %p488, %p489
      %p491 = scmp.ne.s32.totalorder %s480, %s481
      %p492 = scmp.eq.s32.totalorder %s44, 0
      %p493 = por %p491, %p492
      %p494 = scmp.ne.s32.totalorder %s480, %s481
      %p495 = scmp.eq.s32.totalorder %s45, 1
      %p496 = por %p494, %p495
      %p498 = scmp.ne.s32.totalorder %s481, %s497
      %p499 = scmp.eq.s32.totalorder %s45, 0
      %p500 = por %p498, %p499
      %s501 = ssub.s32 %s47, %s54
      %p502 = scmp.eq.s32.totalorder %s501, 0
      %s504 = sadd.s32 %s503, 1
      %s505 = scalar_select %p502, %s503, %s504
      %p508 = pneg %p502
      %p509 = scmp.eq.s32.totalorder %s39, 1
      %p510 = por %p508, %p509
      %p511 = scmp.ne.s32.totalorder %s503, %s506
      %p512 = scmp.eq.s32.totalorder %s39, 0
      %p513 = por %p511, %p512
      %p514 = scmp.ne.s32.totalorder %s503, %s506
      %p515 = scmp.eq.s32.totalorder %s44, 1
      %p516 = por %p514, %p515
      %p517 = scmp.ne.s32.totalorder %s506, %s507
      %p518 = scmp.eq.s32.totalorder %s44, 0
      %p519 = por %p517, %p518
      %p520 = scmp.ne.s32.totalorder %s506, %s507
      %p521 = scmp.eq.s32.totalorder %s45, 1
      %p522 = por %p520, %p521
      %p524 = scmp.ne.s32.totalorder %s507, %s523
      %p525 = scmp.eq.s32.totalorder %s45, 0
      %p526 = por %p524, %p525
      %s527 = ssub.s32 %s47, %s54
      %p528 = scmp.eq.s32.totalorder %s527, 0
      %s530 = sadd.s32 %s529, 1
      %s531 = scalar_select %p528, %s529, %s530
      %p534 = pneg %p528
      %p535 = scmp.eq.s32.totalorder %s39, 1
      %p536 = por %p534, %p535
      %p537 = scmp.ne.s32.totalorder %s529, %s532
      %p538 = scmp.eq.s32.totalorder %s39, 0
      %p539 = por %p537, %p538
      %p540 = scmp.ne.s32.totalorder %s529, %s532
      %p541 = scmp.eq.s32.totalorder %s44, 1
      %p542 = por %p540, %p541
      %p543 = scmp.ne.s32.totalorder %s532, %s533
      %p544 = scmp.eq.s32.totalorder %s44, 0
      %p545 = por %p543, %p544
      %p546 = scmp.ne.s32.totalorder %s532, %s533
      %p547 = scmp.eq.s32.totalorder %s45, 1
      %p548 = por %p546, %p547
      %p550 = scmp.ne.s32.totalorder %s533, %s549
      %p551 = scmp.eq.s32.totalorder %s45, 0
      %p552 = por %p550, %p551
      %s553 = ssub.s32 %s47, %s54
      %p554 = scmp.eq.s32.totalorder %s553, 0
      %s556 = sadd.s32 %s555, 1
      %s557 = scalar_select %p554, %s555, %s556
      %p560 = pneg %p554
      %p561 = scmp.eq.s32.totalorder %s39, 1
      %p562 = por %p560, %p561
      %p563 = scmp.ne.s32.totalorder %s555, %s558
      %p564 = scmp.eq.s32.totalorder %s39, 0
      %p565 = por %p563, %p564
      %p566 = scmp.ne.s32.totalorder %s555, %s558
      %p567 = scmp.eq.s32.totalorder %s44, 1
      %p568 = por %p566, %p567
      %p569 = scmp.ne.s32.totalorder %s558, %s559
      %p570 = scmp.eq.s32.totalorder %s44, 0
      %p571 = por %p569, %p570
      %p572 = scmp.ne.s32.totalorder %s558, %s559
      %p573 = scmp.eq.s32.totalorder %s45, 1
      %p574 = por %p572, %p573
      %p576 = scmp.ne.s32.totalorder %s559, %s575
      %p577 = scmp.eq.s32.totalorder %s45, 0
      %p578 = por %p576, %p577
      %s579 = ssub.s32 %s47, %s54
      %p580 = scmp.eq.s32.totalorder %s579, 0
      %s582 = sadd.s32 %s581, 1
      %s583 = scalar_select %p580, %s581, %s582
      %p586 = pneg %p580
      %p587 = scmp.eq.s32.totalorder %s39, 1
      %p588 = por %p586, %p587
      %p589 = scmp.ne.s32.totalorder %s581, %s584
      %p590 = scmp.eq.s32.totalorder %s39, 0
      %p591 = por %p589, %p590
      %p592 = scmp.ne.s32.totalorder %s581, %s584
      %p593 = scmp.eq.s32.totalorder %s44, 1
      %p594 = por %p592, %p593
      %p595 = scmp.ne.s32.totalorder %s584, %s585
      %p596 = scmp.eq.s32.totalorder %s44, 0
      %p597 = por %p595, %p596
      %p598 = scmp.ne.s32.totalorder %s584, %s585
      %p599 = scmp.eq.s32.totalorder %s45, 1
      %p600 = por %p598, %p599
      %p602 = scmp.ne.s32.totalorder %s585, %s601
      %p603 = scmp.eq.s32.totalorder %s45, 0
      %p604 = por %p602, %p603
      %s605 = ssub.s32 %s47, %s54
      %p606 = scmp.eq.s32.totalorder %s605, 0
      %s608 = sadd.s32 %s607, 1
      %s609 = scalar_select %p606, %s607, %s608
      %p612 = pneg %p606
      %p613 = scmp.eq.s32.totalorder %s39, 1
      %p614 = por %p612, %p613
      %p615 = scmp.ne.s32.totalorder %s607, %s610
      %p616 = scmp.eq.s32.totalorder %s39, 0
      %p617 = por %p615, %p616
      %p618 = scmp.ne.s32.totalorder %s607, %s610
      %p619 = scmp.eq.s32.totalorder %s44, 1
      %p620 = por %p618, %p619
      %p621 = scmp.ne.s32.totalorder %s610, %s611
      %p622 = scmp.eq.s32.totalorder %s44, 0
      %p623 = por %p621, %p622
      %p624 = scmp.ne.s32.totalorder %s610, %s611
      %p625 = scmp.eq.s32.totalorder %s45, 1
      %p626 = por %p624, %p625
      %p628 = scmp.ne.s32.totalorder %s611, %s627
      %p629 = scmp.eq.s32.totalorder %s45, 0
      %p630 = por %p628, %p629
      %s631 = ssub.s32 %s46, %s58
      %p632 = scmp.eq.s32.totalorder %s631, 0
      %s634 = sadd.s32 %s633, 1
      %s635 = scalar_select %p632, %s633, %s634
      %p638 = pneg %p632
      %p639 = scmp.eq.s32.totalorder %s39, 1
      %p640 = por %p638, %p639
      %p641 = scmp.ne.s32.totalorder %s633, %s636
      %p642 = scmp.eq.s32.totalorder %s39, 0
      %p643 = por %p641, %p642
      %p644 = scmp.ne.s32.totalorder %s633, %s636
      %p645 = scmp.eq.s32.totalorder %s44, 1
      %p646 = por %p644, %p645
      %p647 = scmp.ne.s32.totalorder %s636, %s637
      %p648 = scmp.eq.s32.totalorder %s44, 0
      %p649 = por %p647, %p648
      %p650 = scmp.ne.s32.totalorder %s636, %s637
      %p651 = scmp.eq.s32.totalorder %s45, 1
      %p652 = por %p650, %p651
      %p654 = scmp.ne.s32.totalorder %s637, %s653
      %p655 = scmp.eq.s32.totalorder %s45, 0
      %p656 = por %p654, %p655
      %s657 = ssub.s32 %s46, %s58
      %p658 = scmp.eq.s32.totalorder %s657, 0
      %s660 = sadd.s32 %s659, 1
      %s661 = scalar_select %p658, %s659, %s660
      %p664 = pneg %p658
      %p665 = scmp.eq.s32.totalorder %s39, 1
      %p666 = por %p664, %p665
      %p667 = scmp.ne.s32.totalorder %s659, %s662
      %p668 = scmp.eq.s32.totalorder %s39, 0
      %p669 = por %p667, %p668
      %p670 = scmp.ne.s32.totalorder %s659, %s662
      %p671 = scmp.eq.s32.totalorder %s44, 1
      %p672 = por %p670, %p671
      %p673 = scmp.ne.s32.totalorder %s662, %s663
      %p674 = scmp.eq.s32.totalorder %s44, 0
      %p675 = por %p673, %p674
      %p676 = scmp.ne.s32.totalorder %s662, %s663
      %p677 = scmp.eq.s32.totalorder %s45, 1
      %p678 = por %p676, %p677
      %p680 = scmp.ne.s32.totalorder %s663, %s679
      %p681 = scmp.eq.s32.totalorder %s45, 0
      %p682 = por %p680, %p681
      %s683 = ssub.s32 %s46, %s58
      %p684 = scmp.eq.s32.totalorder %s683, 0
      %s686 = sadd.s32 %s685, 1
      %s687 = scalar_select %p684, %s685, %s686
      %p690 = pneg %p684
      %p691 = scmp.eq.s32.totalorder %s39, 1
      %p692 = por %p690, %p691
      %p693 = scmp.ne.s32.totalorder %s685, %s688
      %p694 = scmp.eq.s32.totalorder %s39, 0
      %p695 = por %p693, %p694
      %p696 = scmp.ne.s32.totalorder %s685, %s688
      %p697 = scmp.eq.s32.totalorder %s44, 1
      %p698 = por %p696, %p697
      %p699 = scmp.ne.s32.totalorder %s688, %s689
      %p700 = scmp.eq.s32.totalorder %s44, 0
      %p701 = por %p699, %p700
      %p702 = scmp.ne.s32.totalorder %s688, %s689
      %p703 = scmp.eq.s32.totalorder %s45, 1
      %p704 = por %p702, %p703
      %p706 = scmp.ne.s32.totalorder %s689, %s705
      %p707 = scmp.eq.s32.totalorder %s45, 0
      %p708 = por %p706, %p707
      %p709 = scmp.le.s32.totalorder 1, %s39
      %p710 = scmp.lt.s32.totalorder %s39, 3
      %p711 = pnand %p709, %p710
      %p712 = pneg %p711
      // Predicated region
      $region9: #{decoder_forward.2} parent=5 // pred_check
        _
      $region10: #{decoder_forward.2} parent=5 // pred_check_branch
        %714 = sbr.rel (%p711) target = $region12
      $region11: #{decoder_forward.2} parent=5 // pred_region
        %s715 = ssub.s32 %s39, 1
        // Predicated region
        $region13: #{decoder_forward.2} parent=11 // pred_check
          %p716 = pneg %p77
        $region14: #{decoder_forward.2} parent=11 // pred_check_branch
          %718 = sbr.rel (%p716) target = $region16
        $region15: #{decoder_forward.2} parent=11 // pred_region
          %s719 = smul.u32 2, %s48
          %p720 = scmp.lt.s32.totalorder %s719, 1
          %s721 = scalar_select %p720, %s719, 1
          %s722 = smul.addr %s721, 8
          %s723 = scalar_lea.vmem %s0, %s722
          %s724 = smul.u32 2, %s48
        $region16: #{decoder_forward.2} parent=11 // pred_fallthru
          _
        // Predicated region
        $region17: #{decoder_forward.2} parent=11 // pred_check
          %p725 = pneg %p103
        $region18: #{decoder_forward.2} parent=11 // pred_check_branch
          %727 = sbr.rel (%p725) target = $region20
        $region19: #{decoder_forward.2} parent=11 // pred_region
          %s728 = smul.u32 2, %s48
          %p729 = scmp.lt.s32.totalorder %s728, 1
          %s730 = scalar_select %p729, %s728, 1
          %s731 = smul.addr %s730, 2
          %s732 = smul.addr %s731, 4
          %s733 = scalar_lea.vmem %s1, %s732
          %s734 = smul.u32 2, %s48
        $region20: #{decoder_forward.2} parent=11 // pred_fallthru
          _
        // Predicated region
        $region21: #{decoder_forward.2} parent=11 // pred_check
          %p735 = pneg %p129
        $region22: #{decoder_forward.2} parent=11 // pred_check_branch
          %737 = sbr.rel (%p735) target = $region24
        $region23: #{decoder_forward.2} parent=11 // pred_region
          %s738 = smul.u32 2, %s48
          %p739 = scmp.lt.s32.totalorder %s738, 1
          %s740 = scalar_select %p739, %s738, 1
          %s741 = scalar_lea.vmem %s2, %s740
          %s742 = smul.u32 2, %s48
        $region24: #{decoder_forward.2} parent=11 // pred_fallthru
          _
        // Predicated region
        $region25: #{decoder_forward.2} parent=11 // pred_check
          %p743 = pneg %p155
        $region26: #{decoder_forward.2} parent=11 // pred_check_branch
          %745 = sbr.rel (%p743) target = $region28
        $region27: #{decoder_forward.2} parent=11 // pred_region
          %s746 = smul.u32 2, %s48
          %p747 = scmp.lt.s32.totalorder %s746, 1
          %s748 = scalar_select %p747, %s746, 1
          %s749 = scalar_lea.vmem %s3, %s748
          %s750 = smul.u32 2, %s48
        $region28: #{decoder_forward.2} parent=11 // pred_fallthru
          _
      $region12: #{decoder_forward.2} parent=5 // pred_fallthru
        _
      %p751 = scmp.lt.s32.totalorder %s39, 2
      // Predicated region
      $region29: #{decoder_forward.2} parent=5 // pred_check
        %p752 = pneg %p751
      $region30: #{decoder_forward.2} parent=5 // pred_check_branch
        %754 = sbr.rel (%p752) target = $region32
      $region31: #{decoder_forward.2} parent=5 // pred_region
        // Predicated region
        $region33: #{decoder_forward.2} parent=31 // pred_check
          %p755 = pneg %p175
        $region34: #{decoder_forward.2} parent=31 // pred_check_branch
          %757 = sbr.rel (%p755) target = $region36
        $region35: #{decoder_forward.2} parent=31 // pred_region
          %p758 = scmp.lt.s32.totalorder %s47, 1
          %s759 = scalar_select %p758, %s47, 1
          %s760 = smul.addr %s759, 4
          %s761 = smul.addr %s760, 4
          %s762 = scalar_lea.vmem %s4, %s761
        $region36: #{decoder_forward.2} parent=31 // pred_fallthru
          _
        // Predicated region
        $region37: #{decoder_forward.2} parent=31 // pred_check
          %p763 = pneg %p201
        $region38: #{decoder_forward.2} parent=31 // pred_check_branch
          %765 = sbr.rel (%p763) target = $region40
        $region39: #{decoder_forward.2} parent=31 // pred_region
          %p766 = scmp.lt.s32.totalorder %s47, 1
          %s767 = scalar_select %p766, %s47, 1
          %s768 = scalar_lea.vmem %s5, %s767
        $region40: #{decoder_forward.2} parent=31 // pred_fallthru
          _
        // Predicated region
        $region41: #{decoder_forward.2} parent=31 // pred_check
          %p769 = pneg %p227
        $region42: #{decoder_forward.2} parent=31 // pred_check_branch
          %771 = sbr.rel (%p769) target = $region44
        $region43: #{decoder_forward.2} parent=31 // pred_region
          %p772 = scmp.lt.s32.totalorder %s47, 1
          %s773 = scalar_select %p772, %s47, 1
          %s774 = smul.addr %s773, 4
          %s775 = smul.addr %s774, 4
          %s776 = scalar_lea.vmem %s6, %s775
        $region44: #{decoder_forward.2} parent=31 // pred_fallthru
          _
        // Predicated region
        $region45: #{decoder_forward.2} parent=31 // pred_check
          %p777 = pneg %p253
        $region46: #{decoder_forward.2} parent=31 // pred_check_branch
          %779 = sbr.rel (%p777) target = $region48
        $region47: #{decoder_forward.2} parent=31 // pred_region
          %p780 = scmp.lt.s32.totalorder %s47, 1
          %s781 = scalar_select %p780, %s47, 1
          %s782 = scalar_lea.vmem %s7, %s781
        $region48: #{decoder_forward.2} parent=31 // pred_fallthru
          _
        // Predicated region
        $region49: #{decoder_forward.2} parent=31 // pred_check
          %p783 = pneg %p279
        $region50: #{decoder_forward.2} parent=31 // pred_check_branch
          %785 = sbr.rel (%p783) target = $region52
        $region51: #{decoder_forward.2} parent=31 // pred_region
          %p786 = scmp.lt.s32.totalorder %s47, 1
          %s787 = scalar_select %p786, %s47, 1
          %s788 = smul.addr %s787, 4
          %s789 = smul.addr %s788, 4
          %s790 = scalar_lea.vmem %s8, %s789
        $region52: #{decoder_forward.2} parent=31 // pred_fallthru
          _
        // Predicated region
        $region53: #{decoder_forward.2} parent=31 // pred_check
          %p791 = pneg %p305
        $region54: #{decoder_forward.2} parent=31 // pred_check_branch
          %793 = sbr.rel (%p791) target = $region56
        $region55: #{decoder_forward.2} parent=31 // pred_region
          %p794 = scmp.lt.s32.totalorder %s47, 1
          %s795 = scalar_select %p794, %s47, 1
          %s796 = scalar_lea.vmem %s9, %s795
        $region56: #{decoder_forward.2} parent=31 // pred_fallthru
          _
        // Predicated region
        $region57: #{decoder_forward.2} parent=31 // pred_check
          %p797 = pneg %p331
        $region58: #{decoder_forward.2} parent=31 // pred_check_branch
          %799 = sbr.rel (%p797) target = $region60
        $region59: #{decoder_forward.2} parent=31 // pred_region
          %p800 = scmp.lt.s32.totalorder %s47, 1
          %s801 = scalar_select %p800, %s47, 1
          %s802 = smul.addr %s801, 4
          %s803 = smul.addr %s802, 4
          %s804 = scalar_lea.vmem %s10, %s803
        $region60: #{decoder_forward.2} parent=31 // pred_fallthru
          _
        // Predicated region
        $region61: #{decoder_forward.2} parent=31 // pred_check
          %p805 = pneg %p357
        $region62: #{decoder_forward.2} parent=31 // pred_check_branch
          %807 = sbr.rel (%p805) target = $region64
        $region63: #{decoder_forward.2} parent=31 // pred_region
          %p808 = scmp.lt.s32.totalorder %s47, 1
          %s809 = scalar_select %p808, %s47, 1
          %s810 = scalar_lea.vmem %s11, %s809
        $region64: #{decoder_forward.2} parent=31 // pred_fallthru
          _
        // Predicated region
        $region65: #{decoder_forward.2} parent=31 // pred_check
          %p811 = pneg %p383
        $region66: #{decoder_forward.2} parent=31 // pred_check_branch
          %813 = sbr.rel (%p811) target = $region68
        $region67: #{decoder_forward.2} parent=31 // pred_region
          %s814 = sand.u32 %s373, 1
          %s815 = scalar_lea.sflag [#allocation3], %s814
          %s816 = sand.u32 %s373, 1
          %s817 = smul.addr %s816, 16
          %s818 = scalar_lea.vmem [#allocation2], %s817
          %820 = vsyncadd %s815, 0
          %s821 = smul.addr %s47, 4
          %s822 = smul.addr %s821, 4
          %s823 = scalar_lea.hbm %s12, %s822
          %s824 = sshll.u32 %s823, 4
          %s825 = int_to_ptr.hbm [resolvable:$true] %s824
          %s826 = sshll.u32 %s818, 4
          %s827 = int_to_ptr.vmem [resolvable:$true] %s826
          %832 = dma.hbm_to_vmem [thread:$0]  %s825, 256, %s827, %s815, 64, 64, 4
        $region68: #{decoder_forward.2} parent=31 // pred_fallthru
          _
        // Predicated region
        $region69: #{decoder_forward.2} parent=31 // pred_check
          %p833 = pneg %p409
        $region70: #{decoder_forward.2} parent=31 // pred_check_branch
          %835 = sbr.rel (%p833) target = $region72
        $region71: #{decoder_forward.2} parent=31 // pred_region
          %p836 = scmp.lt.s32.totalorder %s47, 1
          %s837 = scalar_select %p836, %s47, 1
          %s838 = scalar_lea.vmem %s13, %s837
        $region72: #{decoder_forward.2} parent=31 // pred_fallthru
          _
        // Predicated region
        $region73: #{decoder_forward.2} parent=31 // pred_check
          %p839 = pneg %p435
        $region74: #{decoder_forward.2} parent=31 // pred_check_branch
          %841 = sbr.rel (%p839) target = $region76
        $region75: #{decoder_forward.2} parent=31 // pred_region
          %p842 = scmp.lt.s32.totalorder %s47, 1
          %s843 = scalar_select %p842, %s47, 1
          %s844 = scalar_lea.vmem %s14, %s843
        $region76: #{decoder_forward.2} parent=31 // pred_fallthru
          _
        // Predicated region
        $region77: #{decoder_forward.2} parent=31 // pred_check
          %p845 = pneg %p461
        $region78: #{decoder_forward.2} parent=31 // pred_check_branch
          %847 = sbr.rel (%p845) target = $region80
        $region79: #{decoder_forward.2} parent=31 // pred_region
          %p848 = scmp.lt.s32.totalorder %s47, 1
          %s849 = scalar_select %p848, %s47, 1
          %s850 = scalar_lea.vmem %s15, %s849
        $region80: #{decoder_forward.2} parent=31 // pred_fallthru
          _
        // Predicated region
        $region81: #{decoder_forward.2} parent=31 // pred_check
          %p851 = pneg %p487
        $region82: #{decoder_forward.2} parent=31 // pred_check_branch
          %853 = sbr.rel (%p851) target = $region84
        $region83: #{decoder_forward.2} parent=31 // pred_region
          %p854 = scmp.lt.s32.totalorder %s47, 1
          %s855 = scalar_select %p854, %s47, 1
          %s856 = scalar_lea.vmem %s16, %s855
        $region84: #{decoder_forward.2} parent=31 // pred_fallthru
          _
        // Predicated region
        $region85: #{decoder_forward.2} parent=31 // pred_check
          %p857 = pneg %p513
        $region86: #{decoder_forward.2} parent=31 // pred_check_branch
          %859 = sbr.rel (%p857) target = $region88
        $region87: #{decoder_forward.2} parent=31 // pred_region
          %p860 = scmp.lt.s32.totalorder %s47, 1
          %s861 = scalar_select %p860, %s47, 1
          %s862 = scalar_lea.vmem %s17, %s861
        $region88: #{decoder_forward.2} parent=31 // pred_fallthru
          _
        // Predicated region
        $region89: #{decoder_forward.2} parent=31 // pred_check
          %p863 = pneg %p539
        $region90: #{decoder_forward.2} parent=31 // pred_check_branch
          %865 = sbr.rel (%p863) target = $region92
        $region91: #{decoder_forward.2} parent=31 // pred_region
          %s866 = sand.u32 %s529, 1
          %s867 = scalar_lea.sflag [#allocation6], %s866
          %s868 = sand.u32 %s529, 1
          %s869 = smul.addr %s868, 16
          %s870 = scalar_lea.vmem [#allocation5], %s869
          %872 = vsyncadd %s867, 0
          %s873 = smul.addr %s47, 4
          %s874 = smul.addr %s873, 4
          %s875 = scalar_lea.hbm %s18, %s874
          %s876 = sshll.u32 %s875, 4
          %s877 = int_to_ptr.hbm [resolvable:$true] %s876
          %s878 = sshll.u32 %s870, 4
          %s879 = int_to_ptr.vmem [resolvable:$true] %s878
          %884 = dma.hbm_to_vmem [thread:$0]  %s877, 256, %s879, %s867, 64, 64, 4
        $region92: #{decoder_forward.2} parent=31 // pred_fallthru
          _
        // Predicated region
        $region93: #{decoder_forward.2} parent=31 // pred_check
          %p885 = pneg %p565
        $region94: #{decoder_forward.2} parent=31 // pred_check_branch
          %887 = sbr.rel (%p885) target = $region96
        $region95: #{decoder_forward.2} parent=31 // pred_region
          %p888 = scmp.lt.s32.totalorder %s47, 1
          %s889 = scalar_select %p888, %s47, 1
          %s890 = scalar_lea.vmem %s19, %s889
        $region96: #{decoder_forward.2} parent=31 // pred_fallthru
          _
        // Predicated region
        $region97: #{decoder_forward.2} parent=31 // pred_check
          %p891 = pneg %p591
        $region98: #{decoder_forward.2} parent=31 // pred_check_branch
          %893 = sbr.rel (%p891) target = $region100
        $region99: #{decoder_forward.2} parent=31 // pred_region
          %p894 = scmp.lt.s32.totalorder %s47, 1
          %s895 = scalar_select %p894, %s47, 1
          %s896 = smul.addr %s895, 8
          %s897 = smul.addr %s896, 4
          %s898 = scalar_lea.vmem %s20, %s897
        $region100: #{decoder_forward.2} parent=31 // pred_fallthru
          _
        // Predicated region
        $region101: #{decoder_forward.2} parent=31 // pred_check
          %p899 = pneg %p617
        $region102: #{decoder_forward.2} parent=31 // pred_check_branch
          %901 = sbr.rel (%p899) target = $region104
        $region103: #{decoder_forward.2} parent=31 // pred_region
          %p902 = scmp.lt.s32.totalorder %s47, 1
          %s903 = scalar_select %p902, %s47, 1
          %s904 = scalar_lea.vmem %s21, %s903
        $region104: #{decoder_forward.2} parent=31 // pred_fallthru
          _
      $region32: #{decoder_forward.2} parent=5 // pred_fallthru
        _
      %p905 = scmp.le.s32.totalorder 1, %s39
      %p906 = scmp.lt.s32.totalorder %s39, 3
      %p907 = pnand %p905, %p906
      %p908 = pneg %p907
      // Predicated region
      $region105: #{decoder_forward.2} parent=5 // pred_check
        _
      $region106: #{decoder_forward.2} parent=5 // pred_check_branch
        %910 = sbr.rel (%p907) target = $region108
      $region107: #{decoder_forward.2} parent=5 // pred_region
        %s911 = ssub.s32 %s39, 1
        %s912 = sand.u32 %s376, 1
        %s913 = scalar_lea.sflag [#allocation3], %s912
        %s914 = sand.u32 %s376, 1
        %s915 = smul.addr %s914, 16
        %s916 = scalar_lea.vmem [#allocation2], %s915
        // Predicated region
        $region109: #{decoder_forward.2} parent=107 // pred_check
          %p917 = pneg %p389
        $region110: #{decoder_forward.2} parent=107 // pred_check_branch
          %919 = sbr.rel (%p917) target = $region112
        $region111: #{decoder_forward.2} parent=107 // pred_region
          %921 = dma.done %s913, 256
        $region112: #{decoder_forward.2} parent=107 // pred_fallthru
          _
        %s922 = sand.u32 %s532, 1
        %s923 = scalar_lea.sflag [#allocation6], %s922
        %s924 = sand.u32 %s532, 1
        %s925 = smul.addr %s924, 16
        %s926 = scalar_lea.vmem [#allocation5], %s925
        // Predicated region
        $region113: #{decoder_forward.2} parent=107 // pred_check
          %p927 = pneg %p545
        $region114: #{decoder_forward.2} parent=107 // pred_check_branch
          %929 = sbr.rel (%p927) target = $region116
        $region115: #{decoder_forward.2} parent=107 // pred_region
          %931 = dma.done %s923, 256
        $region116: #{decoder_forward.2} parent=107 // pred_fallthru
          _
        %s932 = smul.u32 2, %s48
        %p933 = scmp.lt.s32.totalorder %s932, 1
        %s934 = scalar_select %p933, %s932, 1
        %s935 = smul.addr %s934, 8
        %s936 = scalar_lea.vmem %s0, %s935
        %p937 = pneg %p77
        %p938 = pneg %p74
        %s939 = smul.u32 2, %s48
        %p940 = scmp.lt.s32.totalorder %s939, 1
        %s941 = scalar_select %p940, %s939, 1
        %s942 = smul.addr %s941, 2
        %s943 = smul.addr %s942, 4
        %s944 = scalar_lea.vmem %s1, %s943
        %p945 = pneg %p103
        %p946 = pneg %p100
        %s947 = smul.u32 2, %s48
        %p948 = scmp.lt.s32.totalorder %s947, 1
        %s949 = scalar_select %p948, %s947, 1
        %s950 = scalar_lea.vmem %s2, %s949
        %p951 = pneg %p129
        %p952 = pneg %p126
        %s953 = smul.u32 2, %s48
        %p954 = scmp.lt.s32.totalorder %s953, 1
        %s955 = scalar_select %p954, %s953, 1
        %s956 = scalar_lea.vmem %s3, %s955
        %p957 = pneg %p155
        %p958 = pneg %p152
        %p959 = scmp.lt.s32.totalorder %s49, 1
        %s960 = scalar_select %p959, %s49, 1
        %s961 = smul.addr %s960, 4
        %s962 = smul.addr %s961, 4
        %s963 = scalar_lea.vmem %s4, %s962
        %p964 = pneg %p181
        %p965 = pneg %p178
        %p966 = scmp.lt.s32.totalorder %s49, 1
        %s967 = scalar_select %p966, %s49, 1
        %s968 = scalar_lea.vmem %s5, %s967
        %p969 = pneg %p207
        %p970 = pneg %p204
        %p971 = scmp.lt.s32.totalorder %s49, 1
        %s972 = scalar_select %p971, %s49, 1
        %s973 = smul.addr %s972, 4
        %s974 = smul.addr %s973, 4
        %s975 = scalar_lea.vmem %s6, %s974
        %p976 = pneg %p233
        %p977 = pneg %p230
        %p978 = scmp.lt.s32.totalorder %s49, 1
        %s979 = scalar_select %p978, %s49, 1
        %s980 = scalar_lea.vmem %s7, %s979
        %p981 = pneg %p259
        %p982 = pneg %p256
        %p983 = scmp.lt.s32.totalorder %s49, 1
        %s984 = scalar_select %p983, %s49, 1
        %s985 = smul.addr %s984, 4
        %s986 = smul.addr %s985, 4
        %s987 = scalar_lea.vmem %s8, %s986
        %p988 = pneg %p285
        %p989 = pneg %p282
        %p990 = scmp.lt.s32.totalorder %s49, 1
        %s991 = scalar_select %p990, %s49, 1
        %s992 = scalar_lea.vmem %s9, %s991
        %p993 = pneg %p311
        %p994 = pneg %p308
        %p995 = scmp.lt.s32.totalorder %s49, 1
        %s996 = scalar_select %p995, %s49, 1
        %s997 = smul.addr %s996, 4
        %s998 = smul.addr %s997, 4
        %s999 = scalar_lea.vmem %s10, %s998
        %p1000 = pneg %p337
        %p1001 = pneg %p334
        %p1002 = scmp.lt.s32.totalorder %s49, 1
        %s1003 = scalar_select %p1002, %s49, 1
        %s1004 = scalar_lea.vmem %s11, %s1003
        %p1005 = pneg %p363
        %p1006 = pneg %p360
        %s1007 = sand.u32 %s376, 1
        %s1008 = scalar_lea.sflag [#allocation3], %s1007
        %s1009 = sand.u32 %s376, 1
        %s1010 = smul.addr %s1009, 16
        %s1011 = scalar_lea.vmem [#allocation2], %s1010
        %p1012 = pneg %p389
        %p1013 = pneg %p386
        %p1014 = scmp.lt.s32.totalorder %s49, 1
        %s1015 = scalar_select %p1014, %s49, 1
        %s1016 = scalar_lea.vmem %s13, %s1015
        %p1017 = pneg %p415
        %p1018 = pneg %p412
        %p1019 = scmp.lt.s32.totalorder %s49, 1
        %s1020 = scalar_select %p1019, %s49, 1
        %s1021 = scalar_lea.vmem %s14, %s1020
        %p1022 = pneg %p441
        %p1023 = pneg %p438
        %p1024 = scmp.lt.s32.totalorder %s49, 1
        %s1025 = scalar_select %p1024, %s49, 1
        %s1026 = scalar_lea.vmem %s15, %s1025
        %p1027 = pneg %p467
        %p1028 = pneg %p464
        %p1029 = scmp.lt.s32.totalorder %s49, 1
        %s1030 = scalar_select %p1029, %s49, 1
        %s1031 = scalar_lea.vmem %s16, %s1030
        %p1032 = pneg %p493
        %p1033 = pneg %p490
        %p1034 = scmp.lt.s32.totalorder %s49, 1
        %s1035 = scalar_select %p1034, %s49, 1
        %s1036 = scalar_lea.vmem %s17, %s1035
        %p1037 = pneg %p519
        %p1038 = pneg %p516
        %s1039 = sand.u32 %s532, 1
        %s1040 = scalar_lea.sflag [#allocation6], %s1039
        %s1041 = sand.u32 %s532, 1
        %s1042 = smul.addr %s1041, 16
        %s1043 = scalar_lea.vmem [#allocation5], %s1042
        %p1044 = pneg %p545
        %p1045 = pneg %p542
        %p1046 = scmp.lt.s32.totalorder %s49, 1
        %s1047 = scalar_select %p1046, %s49, 1
        %s1048 = scalar_lea.vmem %s19, %s1047
        %p1049 = pneg %p571
        %p1050 = pneg %p568
        %p1051 = scmp.lt.s32.totalorder %s49, 1
        %s1052 = scalar_select %p1051, %s49, 1
        %s1053 = smul.addr %s1052, 8
        %s1054 = smul.addr %s1053, 4
        %s1055 = scalar_lea.vmem %s20, %s1054
        %p1056 = pneg %p597
        %p1057 = pneg %p594
        %p1058 = scmp.lt.s32.totalorder %s49, 1
        %s1059 = scalar_select %p1058, %s49, 1
        %s1060 = scalar_lea.vmem %s21, %s1059
        %p1061 = pneg %p623
        %p1062 = pneg %p620
        %p1063 = pneg %p649
        %p1064 = pneg %p646
        %s1065 = smul.u32 2, %s48
        %p1066 = scmp.lt.s32.totalorder %s1065, 1
        %s1067 = scalar_select %p1066, %s1065, 1
        %s1068 = smul.addr %s1067, 8
        %s1069 = scalar_lea.vmem %s22, %s1068
        %p1070 = pneg %p675
        %p1071 = pneg %p672
        %p1072 = pneg %p701
        %p1073 = pneg %p698
        %s1074 = smul.u32 2, %s48
        %p1075 = scmp.lt.s32.totalorder %s1074, 1
        %s1076 = scalar_select %p1075, %s1074, 1
        %s1077 = smul.addr %s1076, 8
        %s1078 = scalar_lea.vmem %s0, %s1077
        %s1079 = smul.u32 2, %s48
        %s1080 = smul.u32 2, %s48
        %p1081 = scmp.lt.s32.totalorder %s1080, 1
        %s1082 = scalar_select %p1081, %s1080, 1
        %s1083 = smul.addr %s1082, 2
        %s1084 = smul.addr %s1083, 4
        %s1085 = scalar_lea.vmem %s1, %s1084
        %s1086 = smul.u32 2, %s48
        %s1087 = smul.u32 2, %s48
        %p1088 = scmp.lt.s32.totalorder %s1087, 1
        %s1089 = scalar_select %p1088, %s1087, 1
        %s1090 = scalar_lea.vmem %s2, %s1089
        %s1091 = smul.u32 2, %s48
        %s1092 = smul.u32 2, %s48
        %p1093 = scmp.lt.s32.totalorder %s1092, 1
        %s1094 = scalar_select %p1093, %s1092, 1
        %s1095 = scalar_lea.vmem %s3, %s1094
        %s1096 = smul.u32 2, %s48
        %p1097 = scmp.lt.s32.totalorder %s49, 1
        %s1098 = scalar_select %p1097, %s49, 1
        %s1099 = smul.addr %s1098, 4
        %s1100 = smul.addr %s1099, 4
        %s1101 = scalar_lea.vmem %s4, %s1100
        %p1102 = scmp.lt.s32.totalorder %s49, 1
        %s1103 = scalar_select %p1102, %s49, 1
        %s1104 = scalar_lea.vmem %s5, %s1103
        %p1105 = scmp.lt.s32.totalorder %s49, 1
        %s1106 = scalar_select %p1105, %s49, 1
        %s1107 = smul.addr %s1106, 4
        %s1108 = smul.addr %s1107, 4
        %s1109 = scalar_lea.vmem %s6, %s1108
        %p1110 = scmp.lt.s32.totalorder %s49, 1
        %s1111 = scalar_select %p1110, %s49, 1
        %s1112 = scalar_lea.vmem %s7, %s1111
        %p1113 = scmp.lt.s32.totalorder %s49, 1
        %s1114 = scalar_select %p1113, %s49, 1
        %s1115 = smul.addr %s1114, 4
        %s1116 = smul.addr %s1115, 4
        %s1117 = scalar_lea.vmem %s8, %s1116
        %p1118 = scmp.lt.s32.totalorder %s49, 1
        %s1119 = scalar_select %p1118, %s49, 1
        %s1120 = scalar_lea.vmem %s9, %s1119
        %p1121 = scmp.lt.s32.totalorder %s49, 1
        %s1122 = scalar_select %p1121, %s49, 1
        %s1123 = smul.addr %s1122, 4
        %s1124 = smul.addr %s1123, 4
        %s1125 = scalar_lea.vmem %s10, %s1124
        %p1126 = scmp.lt.s32.totalorder %s49, 1
        %s1127 = scalar_select %p1126, %s49, 1
        %s1128 = scalar_lea.vmem %s11, %s1127
        %p1129 = scmp.lt.s32.totalorder %s49, 1
        %s1130 = scalar_select %p1129, %s49, 1
        %s1131 = scalar_lea.vmem %s13, %s1130
        %p1132 = scmp.lt.s32.totalorder %s49, 1
        %s1133 = scalar_select %p1132, %s49, 1
        %s1134 = scalar_lea.vmem %s14, %s1133
        %p1135 = scmp.lt.s32.totalorder %s49, 1
        %s1136 = scalar_select %p1135, %s49, 1
        %s1137 = scalar_lea.vmem %s15, %s1136
        %p1138 = scmp.lt.s32.totalorder %s49, 1
        %s1139 = scalar_select %p1138, %s49, 1
        %s1140 = scalar_lea.vmem %s16, %s1139
        %p1141 = scmp.lt.s32.totalorder %s49, 1
        %s1142 = scalar_select %p1141, %s49, 1
        %s1143 = scalar_lea.vmem %s17, %s1142
        %p1144 = scmp.lt.s32.totalorder %s49, 1
        %s1145 = scalar_select %p1144, %s49, 1
        %s1146 = scalar_lea.vmem %s19, %s1145
        %p1147 = scmp.lt.s32.totalorder %s49, 1
        %s1148 = scalar_select %p1147, %s49, 1
        %s1149 = smul.addr %s1148, 8
        %s1150 = smul.addr %s1149, 4
        %s1151 = scalar_lea.vmem %s20, %s1150
        %p1152 = scmp.lt.s32.totalorder %s49, 1
        %s1153 = scalar_select %p1152, %s49, 1
        %s1154 = scalar_lea.vmem %s21, %s1153
        %s1155 = smul.u32 2, %s48
        %p1156 = scmp.lt.s32.totalorder %s1155, 1
        %s1157 = scalar_select %p1156, %s1155, 1
        %s1158 = smul.addr %s1157, 8
        %s1159 = scalar_lea.vmem %s22, %s1158
        %s1160 = smul.u32 2, %s48
        %s1161 = smul.u32 2, %s48
        %s1162 = smul.u32 2, %s48
        %p1164 = scmp.eq.s32.totalorder %s49, 0
        // Predicated region
        $region117: #{decoder_forward.2} parent=107 // pred_check
          %p1165 = pneg %p1164
        $region118: #{decoder_forward.2} parent=107 // pred_check_branch
          %1167 = sbr.rel (%p1165) target = $region120
        $region119: #{decoder_forward.2} parent=107 // pred_region
          %v1168 = vld [vmem:[%s1078] sm:$0xff]
          %v1169 = vld [vmem:[%s1078 + $0x8] sm:$0xff]
          %vm1170 = vcmask 261120
          %1171 = vst.msk [vmem:[%s1159] sm:$0xff] %vm1170, %v1168
          %1172 = vst.msk [vmem:[%s1159 + $0x8] sm:$0xff] %vm1170, %v1169
        $region120: #{decoder_forward.2} parent=107 // pred_fallthru
          _
        %v1173 = vld [vmem:[%s1159] sm:$0xff]
        %v1174 = vld [vmem:[%s1159 + $0x8] sm:$0xff]
        %v1175 = vld [vmem:[%s1085] sm:$0xf]
        %v1176 = vld [vmem:[%s1085 + $0x4] sm:$0xf]
        %v1177 = vld [vmem:[%s1085 + $0x8] sm:$0xf]
        %v1178 = vld [vmem:[%s1085 + $0xc] sm:$0xf]
        %v1179 = vpack.c.bf16 %v1174, %v1173
        %v1180 = vld [vmem:[%s1101] sm:$0xf]
        %v1181 = vld [vmem:[%s1101 + $0x4] sm:$0xf]
        %v1182 = vld [vmem:[%s1101 + $0x8] sm:$0xf]
        %v1183 = vld [vmem:[%s1101 + $0xc] sm:$0xf]
        %v1184 = vld [vmem:[%s1104] sm:$0x1]
        %v1186 = vperm.slane %v1184, 0
        %v1192 = vunpack.c.l.b16 %v1180
        %v1193 = vunpack.c.l.b16 %v1181
        %v1194 = vunpack.c.l.b16 %v1182
        %v1195 = vunpack.c.l.b16 %v1183
        %v1196 = vpack.c.b16 %v1193, %v1192
        %v1197 = vpack.c.b16 %v1195, %v1194
        %vm1200 = vcmask 261120
        %v1202 = vsel %vm1200, %v1179, 0
        %1204 = vmatpush.bf16.msra.mxu0 0
        %1205 = vmatpush.bf16.msra.mxu0 0
        %1206 = vmatpush.bf16.msra.mxu0 0
        %1207 = vmatpush.bf16.msra.mxu0 0
        %1208 = vmatpush.bf16.msra.mxu0 0
        %1209 = vmatpush.bf16.msra.mxu0 0
        %1210 = vmatpush.bf16.msra.mxu0 %v1197
        %1211 = vmatpush.bf16.msra.mxu0 %v1196
        %1212 = vmatmul.bf16.gmra.mxu0 %v1202
        %v1213 = vpop.f32.mrf.mxu0
        %v1214 = vadd.f32 %v1186, %v1213
        %v1215 = vpop.f32.mrf.mxu0
        %v1216 = vadd.f32 %v1186, %v1215
        %1217 = vdwg.mxu0
        %v1218 = vld [vmem:[%s1090] sm:$0x1]
        %v1219 = vpack.c.bf16 %v1214, %v1214
        %1221 = vrot.lane.b32.xlu0 %v1219, 120
        %v1222 = vpop.permute.xlu0 %1221
        %1223 = vrot.lane.b32.xlu0 %v1219, 112
        %v1224 = vpop.permute.xlu0 %1223
        %1225 = vrot.lane.b32.xlu0 %v1219, 104
        %v1226 = vpop.permute.xlu0 %1225
        %v1229 = vpack.i.b16 %v1222, %v1219
        %v1230 = vshrl.u32 %v1219, 16
        %v1231 = vshrl.u32 %v1222, 16
        %v1232 = vpack.i.b16 %v1231, %v1230
        %v1235 = vpack.i.b16 %v1226, %v1224
        %v1236 = vshrl.u32 %v1224, 16
        %v1237 = vshrl.u32 %v1226, 16
        %v1238 = vpack.i.b16 %v1237, %v1236
        %v1241 = vunpack.c.l.s4 1983009808
        %v1242 = vunpack.c.0.s8 %v1241
        %v1243 = vperm.slane %v1229, %v1242
        %v1246 = vunpack.c.l.s4 1983009808
        %v1247 = vunpack.c.0.s8 %v1246
        %v1248 = vperm.slane %v1235, %v1247
        %v1249 = vrot.slane %v1248, 4
        %vm1250 = vcmask 1047556
        %v1251 = vsel %vm1250, %v1249, %v1243
        %v1252 = vrot.slane %v1243, 4
        %v1253 = vsel %vm1250, %v1248, %v1252
        %v1255 = vunpack.c.l.s4 1934713408
        %v1256 = vunpack.c.0.s8 %v1255
        %v1257 = vperm.slane %v1251, %v1256
        %v1259 = vunpack.c.l.s4 1934713408
        %v1260 = vunpack.c.0.s8 %v1259
        %v1261 = vperm.slane %v1253, %v1260
        %v1262 = vrot.slane %v1257, 4
        %v1263 = vsel %vm1250, 0, %v1262
        %v1264 = vrot.slane %v1261, 4
        %v1265 = vsel %vm1250, 0, %v1264
        %v1268 = vunpack.c.l.s4 1983009808
        %v1269 = vunpack.c.0.s8 %v1268
        %v1270 = vperm.slane %v1232, %v1269
        %v1273 = vunpack.c.l.s4 1983009808
        %v1274 = vunpack.c.0.s8 %v1273
        %v1275 = vperm.slane %v1238, %v1274
        %v1276 = vrot.slane %v1275, 4
        %v1277 = vsel %vm1250, %v1276, %v1270
        %v1278 = vrot.slane %v1270, 4
        %v1279 = vsel %vm1250, %v1275, %v1278
        %v1281 = vunpack.c.l.s4 1934713408
        %v1282 = vunpack.c.0.s8 %v1281
        %v1283 = vperm.slane %v1277, %v1282
        %v1285 = vunpack.c.l.s4 1934713408
        %v1286 = vunpack.c.0.s8 %v1285
        %v1287 = vperm.slane %v1279, %v1286
        %v1288 = vrot.slane %v1283, 4
        %v1289 = vsel %vm1250, 0, %v1288
        %v1290 = vrot.slane %v1287, 4
        %v1291 = vsel %vm1250, 0, %v1290
        %v1292 = vsel %vm1250, %v1264, %v1257
        %v1294 = vunpack.c.l.s4 1983009808
        %v1295 = vunpack.c.0.s8 %v1294
        %v1296 = vperm.slane %v1292, %v1295
        %v1297 = vrot.slane %v1265, 4
        %v1298 = vsel %vm1250, %v1297, %v1263
        %v1300 = vunpack.c.l.s4 1983009808
        %v1301 = vunpack.c.0.s8 %v1300
        %v1302 = vperm.slane %v1298, %v1301
        %v1303 = vrot.slane %v1302, 4
        %v1304 = vsel %vm1250, %v1303, %v1296
        %v1306 = vunpack.c.l.s4 1934713408
        %v1307 = vunpack.c.0.s8 %v1306
        %v1308 = vperm.slane %v1304, %v1307
        %v1309 = vrot.slane %v1308, 4
        %v1310 = vsel %vm1250, 0, %v1309
        %v1311 = vsel %vm1250, %v1290, %v1283
        %v1313 = vunpack.c.l.s4 1983009808
        %v1314 = vunpack.c.0.s8 %v1313
        %v1315 = vperm.slane %v1311, %v1314
        %v1316 = vrot.slane %v1291, 4
        %v1317 = vsel %vm1250, %v1316, %v1289
        %v1319 = vunpack.c.l.s4 1983009808
        %v1320 = vunpack.c.0.s8 %v1319
        %v1321 = vperm.slane %v1317, %v1320
        %v1322 = vrot.slane %v1321, 4
        %v1323 = vsel %vm1250, %v1322, %v1315
        %v1325 = vunpack.c.l.s4 1934713408
        %v1326 = vunpack.c.0.s8 %v1325
        %v1327 = vperm.slane %v1323, %v1326
        %v1328 = vrot.slane %v1327, 4
        %v1329 = vsel %vm1250, 0, %v1328
        %v1332 = vpack.i.b16 %v1327, %v1308
        %v1333 = vshrl.u32 %v1308, 16
        %v1334 = vshrl.u32 %v1327, 16
        %v1335 = vpack.i.b16 %v1334, %v1333
        %v1338 = vpack.i.b16 %v1329, %v1310
        %v1339 = vshrl.u32 %v1310, 16
        %v1340 = vshrl.u32 %v1329, 16
        %v1341 = vpack.i.b16 %v1340, %v1339
        %1342 = vrot.lane.b32.xlu0 %v1219, 96
        %v1343 = vpop.permute.xlu0 %1342
        %1344 = vrot.lane.b32.xlu0 %v1222, 96
        %v1345 = vpop.permute.xlu0 %1344
        %1346 = vrot.lane.b32.xlu0 %v1224, 96
        %v1347 = vpop.permute.xlu0 %1346
        %1348 = vrot.lane.b32.xlu0 %v1226, 96
        %v1349 = vpop.permute.xlu0 %1348
        %v1352 = vpack.i.b16 %v1345, %v1343
        %v1353 = vshrl.u32 %v1343, 16
        %v1354 = vshrl.u32 %v1345, 16
        %v1355 = vpack.i.b16 %v1354, %v1353
        %v1358 = vpack.i.b16 %v1349, %v1347
        %v1359 = vshrl.u32 %v1347, 16
        %v1360 = vshrl.u32 %v1349, 16
        %v1361 = vpack.i.b16 %v1360, %v1359
        %v1364 = vunpack.c.l.s4 1983009808
        %v1365 = vunpack.c.0.s8 %v1364
        %v1366 = vperm.slane %v1352, %v1365
        %v1369 = vunpack.c.l.s4 1983009808
        %v1370 = vunpack.c.0.s8 %v1369
        %v1371 = vperm.slane %v1358, %v1370
        %v1372 = vrot.slane %v1371, 4
        %v1373 = vsel %vm1250, %v1372, %v1366
        %v1374 = vrot.slane %v1366, 4
        %v1375 = vsel %vm1250, %v1371, %v1374
        %v1377 = vunpack.c.l.s4 1934713408
        %v1378 = vunpack.c.0.s8 %v1377
        %v1379 = vperm.slane %v1373, %v1378
        %v1381 = vunpack.c.l.s4 1934713408
        %v1382 = vunpack.c.0.s8 %v1381
        %v1383 = vperm.slane %v1375, %v1382
        %v1384 = vrot.slane %v1379, 4
        %v1385 = vsel %vm1250, 0, %v1384
        %v1386 = vrot.slane %v1383, 4
        %v1387 = vsel %vm1250, 0, %v1386
        %v1390 = vunpack.c.l.s4 1983009808
        %v1391 = vunpack.c.0.s8 %v1390
        %v1392 = vperm.slane %v1355, %v1391
        %v1395 = vunpack.c.l.s4 1983009808
        %v1396 = vunpack.c.0.s8 %v1395
        %v1397 = vperm.slane %v1361, %v1396
        %v1398 = vrot.slane %v1397, 4
        %v1399 = vsel %vm1250, %v1398, %v1392
        %v1400 = vrot.slane %v1392, 4
        %v1401 = vsel %vm1250, %v1397, %v1400
        %v1403 = vunpack.c.l.s4 1934713408
        %v1404 = vunpack.c.0.s8 %v1403
        %v1405 = vperm.slane %v1399, %v1404
        %v1407 = vunpack.c.l.s4 1934713408
        %v1408 = vunpack.c.0.s8 %v1407
        %v1409 = vperm.slane %v1401, %v1408
        %v1410 = vrot.slane %v1405, 4
        %v1411 = vsel %vm1250, 0, %v1410
        %v1412 = vrot.slane %v1409, 4
        %v1413 = vsel %vm1250, 0, %v1412
        %v1414 = vsel %vm1250, %v1386, %v1379
        %v1416 = vunpack.c.l.s4 1983009808
        %v1417 = vunpack.c.0.s8 %v1416
        %v1418 = vperm.slane %v1414, %v1417
        %v1419 = vrot.slane %v1387, 4
        %v1420 = vsel %vm1250, %v1419, %v1385
        %v1422 = vunpack.c.l.s4 1983009808
        %v1423 = vunpack.c.0.s8 %v1422
        %v1424 = vperm.slane %v1420, %v1423
        %v1425 = vrot.slane %v1424, 4
        %v1426 = vsel %vm1250, %v1425, %v1418
        %v1428 = vunpack.c.l.s4 1934713408
        %v1429 = vunpack.c.0.s8 %v1428
        %v1430 = vperm.slane %v1426, %v1429
        %v1431 = vrot.slane %v1430, 4
        %v1432 = vsel %vm1250, 0, %v1431
        %v1433 = vsel %vm1250, %v1412, %v1405
        %v1435 = vunpack.c.l.s4 1983009808
        %v1436 = vunpack.c.0.s8 %v1435
        %v1437 = vperm.slane %v1433, %v1436
        %v1438 = vrot.slane %v1413, 4
        %v1439 = vsel %vm1250, %v1438, %v1411
        %v1441 = vunpack.c.l.s4 1983009808
        %v1442 = vunpack.c.0.s8 %v1441
        %v1443 = vperm.slane %v1439, %v1442
        %v1444 = vrot.slane %v1443, 4
        %v1445 = vsel %vm1250, %v1444, %v1437
        %v1447 = vunpack.c.l.s4 1934713408
        %v1448 = vunpack.c.0.s8 %v1447
        %v1449 = vperm.slane %v1445, %v1448
        %v1450 = vrot.slane %v1449, 4
        %v1451 = vsel %vm1250, 0, %v1450
        %v1454 = vpack.i.b16 %v1449, %v1430
        %v1455 = vshrl.u32 %v1430, 16
        %v1456 = vshrl.u32 %v1449, 16
        %v1457 = vpack.i.b16 %v1456, %v1455
        %v1460 = vpack.i.b16 %v1451, %v1432
        %v1461 = vshrl.u32 %v1432, 16
        %v1462 = vshrl.u32 %v1451, 16
        %v1463 = vpack.i.b16 %v1462, %v1461
        %1464 = vrot.lane.b32.xlu0 %v1219, 64
        %v1465 = vpop.permute.xlu0 %1464
        %1466 = vrot.lane.b32.xlu0 %v1222, 64
        %v1467 = vpop.permute.xlu0 %1466
        %1468 = vrot.lane.b32.xlu0 %v1224, 64
        %v1469 = vpop.permute.xlu0 %1468
        %1470 = vrot.lane.b32.xlu0 %v1226, 64
        %v1471 = vpop.permute.xlu0 %1470
        %v1474 = vpack.i.b16 %v1467, %v1465
        %v1475 = vshrl.u32 %v1465, 16
        %v1476 = vshrl.u32 %v1467, 16
        %v1477 = vpack.i.b16 %v1476, %v1475
        %v1480 = vpack.i.b16 %v1471, %v1469
        %v1481 = vshrl.u32 %v1469, 16
        %v1482 = vshrl.u32 %v1471, 16
        %v1483 = vpack.i.b16 %v1482, %v1481
        %v1486 = vunpack.c.l.s4 1983009808
        %v1487 = vunpack.c.0.s8 %v1486
        %v1488 = vperm.slane %v1474, %v1487
        %v1491 = vunpack.c.l.s4 1983009808
        %v1492 = vunpack.c.0.s8 %v1491
        %v1493 = vperm.slane %v1480, %v1492
        %v1494 = vrot.slane %v1493, 4
        %v1495 = vsel %vm1250, %v1494, %v1488
        %v1496 = vrot.slane %v1488, 4
        %v1497 = vsel %vm1250, %v1493, %v1496
        %v1499 = vunpack.c.l.s4 1934713408
        %v1500 = vunpack.c.0.s8 %v1499
        %v1501 = vperm.slane %v1495, %v1500
        %v1503 = vunpack.c.l.s4 1934713408
        %v1504 = vunpack.c.0.s8 %v1503
        %v1505 = vperm.slane %v1497, %v1504
        %v1506 = vrot.slane %v1501, 4
        %v1507 = vsel %vm1250, 0, %v1506
        %v1508 = vrot.slane %v1505, 4
        %v1509 = vsel %vm1250, 0, %v1508
        %v1512 = vunpack.c.l.s4 1983009808
        %v1513 = vunpack.c.0.s8 %v1512
        %v1514 = vperm.slane %v1477, %v1513
        %v1517 = vunpack.c.l.s4 1983009808
        %v1518 = vunpack.c.0.s8 %v1517
        %v1519 = vperm.slane %v1483, %v1518
        %v1520 = vrot.slane %v1519, 4
        %v1521 = vsel %vm1250, %v1520, %v1514
        %v1522 = vrot.slane %v1514, 4
        %v1523 = vsel %vm1250, %v1519, %v1522
        %v1525 = vunpack.c.l.s4 1934713408
        %v1526 = vunpack.c.0.s8 %v1525
        %v1527 = vperm.slane %v1521, %v1526
        %v1529 = vunpack.c.l.s4 1934713408
        %v1530 = vunpack.c.0.s8 %v1529
        %v1531 = vperm.slane %v1523, %v1530
        %v1532 = vrot.slane %v1527, 4
        %v1533 = vsel %vm1250, 0, %v1532
        %v1534 = vrot.slane %v1531, 4
        %v1535 = vsel %vm1250, 0, %v1534
        %v1536 = vsel %vm1250, %v1508, %v1501
        %v1538 = vunpack.c.l.s4 1983009808
        %v1539 = vunpack.c.0.s8 %v1538
        %v1540 = vperm.slane %v1536, %v1539
        %v1541 = vrot.slane %v1509, 4
        %v1542 = vsel %vm1250, %v1541, %v1507
        %v1544 = vunpack.c.l.s4 1983009808
        %v1545 = vunpack.c.0.s8 %v1544
        %v1546 = vperm.slane %v1542, %v1545
        %v1547 = vrot.slane %v1546, 4
        %v1548 = vsel %vm1250, %v1547, %v1540
        %v1550 = vunpack.c.l.s4 1934713408
        %v1551 = vunpack.c.0.s8 %v1550
        %v1552 = vperm.slane %v1548, %v1551
        %v1553 = vrot.slane %v1552, 4
        %v1554 = vsel %vm1250, 0, %v1553
        %v1555 = vsel %vm1250, %v1534, %v1527
        %v1557 = vunpack.c.l.s4 1983009808
        %v1558 = vunpack.c.0.s8 %v1557
        %v1559 = vperm.slane %v1555, %v1558
        %v1560 = vrot.slane %v1535, 4
        %v1561 = vsel %vm1250, %v1560, %v1533
        %v1563 = vunpack.c.l.s4 1983009808
        %v1564 = vunpack.c.0.s8 %v1563
        %v1565 = vperm.slane %v1561, %v1564
        %v1566 = vrot.slane %v1565, 4
        %v1567 = vsel %vm1250, %v1566, %v1559
        %v1569 = vunpack.c.l.s4 1934713408
        %v1570 = vunpack.c.0.s8 %v1569
        %v1571 = vperm.slane %v1567, %v1570
        %v1572 = vrot.slane %v1571, 4
        %v1573 = vsel %vm1250, 0, %v1572
        %v1576 = vpack.i.b16 %v1571, %v1552
        %v1577 = vshrl.u32 %v1552, 16
        %v1578 = vshrl.u32 %v1571, 16
        %v1579 = vpack.i.b16 %v1578, %v1577
        %v1582 = vpack.i.b16 %v1573, %v1554
        %v1583 = vshrl.u32 %v1554, 16
        %v1584 = vshrl.u32 %v1573, 16
        %v1585 = vpack.i.b16 %v1584, %v1583
        %vm1586 = vcmask 64512
        %v1588 = vsel %vm1586, %v1332, 0
        %v1591 = vsel %vm1586, %v1454, 0
        %1593 = vmatpush.bf16.xpose.msra.mxu0 0
        %1594 = vmatpush.bf16.xpose.msra.mxu0 0
        %1595 = vmatpush.bf16.xpose.msra.mxu0 0
        %1596 = vmatpush.bf16.xpose.msra.mxu0 0
        %1597 = vmatpush.bf16.xpose.msra.mxu0 0
        %1598 = vmatpush.bf16.xpose.msra.mxu0 0
        %1599 = vmatpush.bf16.xpose.msra.mxu0 0
        %1600 = vmatpush.bf16.xpose.msra.mxu0 %v1591
        %1601 = vmatmul.bf16.gmra.mxu0 %v1588
        %v1602 = vpop.f32.mrf.mxu0
        %v1603 = vadd.f32 0.0, %v1602
        %v1604 = vpop.f32.mrf.mxu0
        %1605 = vdwg.mxu0
        %v1607 = vsel %vm1586, %v1335, 0
        %v1610 = vsel %vm1586, %v1457, 0
        %1612 = vmatpush.bf16.xpose.msra.mxu0 0
        %1613 = vmatpush.bf16.xpose.msra.mxu0 0
        %1614 = vmatpush.bf16.xpose.msra.mxu0 0
        %1615 = vmatpush.bf16.xpose.msra.mxu0 0
        %1616 = vmatpush.bf16.xpose.msra.mxu0 0
        %1617 = vmatpush.bf16.xpose.msra.mxu0 0
        %1618 = vmatpush.bf16.xpose.msra.mxu0 0
        %1619 = vmatpush.bf16.xpose.msra.mxu0 %v1610
        %1620 = vmatmul.bf16.gmra.mxu0 %v1607
        %v1621 = vpop.f32.mrf.mxu0
        %v1622 = vadd.f32 0.0, %v1621
        %v1623 = vpop.f32.mrf.mxu0
        %1624 = vdwg.mxu0
        %v1626 = vsel %vm1586, %v1338, 0
        %v1629 = vsel %vm1586, %v1460, 0
        %1631 = vmatpush.bf16.xpose.msra.mxu0 0
        %1632 = vmatpush.bf16.xpose.msra.mxu0 0
        %1633 = vmatpush.bf16.xpose.msra.mxu0 0
        %1634 = vmatpush.bf16.xpose.msra.mxu0 0
        %1635 = vmatpush.bf16.xpose.msra.mxu0 0
        %1636 = vmatpush.bf16.xpose.msra.mxu0 0
        %1637 = vmatpush.bf16.xpose.msra.mxu0 0
        %1638 = vmatpush.bf16.xpose.msra.mxu0 %v1629
        %1639 = vmatmul.bf16.gmra.mxu0 %v1626
        %v1640 = vpop.f32.mrf.mxu0
        %v1641 = vadd.f32 0.0, %v1640
        %v1642 = vpop.f32.mrf.mxu0
        %1643 = vdwg.mxu0
        %v1645 = vsel %vm1586, %v1341, 0
        %v1648 = vsel %vm1586, %v1463, 0
        %1650 = vmatpush.bf16.xpose.msra.mxu0 0
        %1651 = vmatpush.bf16.xpose.msra.mxu0 0
        %1652 = vmatpush.bf16.xpose.msra.mxu0 0
        %1653 = vmatpush.bf16.xpose.msra.mxu0 0
        %1654 = vmatpush.bf16.xpose.msra.mxu0 0
        %1655 = vmatpush.bf16.xpose.msra.mxu0 0
        %1656 = vmatpush.bf16.xpose.msra.mxu0 0
        %1657 = vmatpush.bf16.xpose.msra.mxu0 %v1648
        %1658 = vmatmul.bf16.gmra.mxu0 %v1645
        %v1659 = vpop.f32.mrf.mxu0
        %v1660 = vadd.f32 0.0, %v1659
        %v1661 = vpop.f32.mrf.mxu0
        %1662 = vdwg.mxu0
        %v1663 = vmul.f32 %v1603, 0.35355338
        %v1664 = vmul.f32 %v1622, 0.35355338
        %v1665 = vmul.f32 %v1641, 0.35355338
        %v1666 = vmul.f32 %v1660, 0.35355338
        %v1668 = vperm.slane %v1218, 0
        %v1670 = vadd.f32 %v1663, %v1668
        %v1671 = vadd.f32 %v1664, %v1668
        %v1672 = vadd.f32 %v1665, %v1668
        %v1673 = vadd.f32 %v1666, %v1668
        %v1674 = vsel %vm1586, %v1670, -inf
        %1675 = vmax.xlane.f32.xlu0 %v1674
        %v1676 = vpop.xlane.xlu0 %1675
        %v1677 = vsel %vm1586, %v1671, -inf
        %1678 = vmax.xlane.f32.xlu0 %v1677
        %v1679 = vpop.xlane.xlu0 %1678
        %v1680 = vsel %vm1586, %v1672, -inf
        %1681 = vmax.xlane.f32.xlu0 %v1680
        %v1682 = vpop.xlane.xlu0 %1681
        %v1683 = vsel %vm1586, %v1673, -inf
        %1684 = vmax.xlane.f32.xlu0 %v1683
        %v1685 = vpop.xlane.xlu0 %1684
        %v1686 = vsub.f32 %v1670, %v1676
        %v1687 = vsub.f32 %v1671, %v1679
        %v1688 = vsub.f32 %v1672, %v1682
        %v1689 = vsub.f32 %v1673, %v1685
        %v1690 = vmul.f32 %v1686, 1.442695
        %v1691 = vpow.pop %v1690
        %v1692 = vmul.f32 %v1687, 1.442695
        %v1693 = vpow.pop %v1692
        %v1694 = vmul.f32 %v1688, 1.442695
        %v1695 = vpow.pop %v1694
        %v1696 = vmul.f32 %v1689, 1.442695
        %v1697 = vpow.pop %v1696
        %v1698 = vsel %vm1586, %v1691, 0.0
        %1699 = vadd.xlane.f32.xlu0 %v1698
        %v1700 = vpop.xlane.xlu0 %1699
        %v1701 = vsel %vm1586, %v1693, 0.0
        %1702 = vadd.xlane.f32.xlu0 %v1701
        %v1703 = vpop.xlane.xlu0 %1702
        %v1704 = vsel %vm1586, %v1695, 0.0
        %1705 = vadd.xlane.f32.xlu0 %v1704
        %v1706 = vpop.xlane.xlu0 %1705
        %v1707 = vsel %vm1586, %v1697, 0.0
        %1708 = vadd.xlane.f32.xlu0 %v1707
        %v1709 = vpop.xlane.xlu0 %1708
        %v1710 = vrcp.pop %v1700
        %v1711 = vrcp.pop %v1703
        %v1712 = vrcp.pop %v1706
        %v1713 = vrcp.pop %v1709
        %v1714 = vmul.f32 %v1691, %v1710
        %v1715 = vmul.f32 %v1693, %v1711
        %v1716 = vmul.f32 %v1695, %v1712
        %v1717 = vmul.f32 %v1697, %v1713
        %v1718 = vpack.c.bf16 %v1714, %v1714
        %v1719 = vpack.c.bf16 %v1715, %v1715
        %v1720 = vpack.c.bf16 %v1716, %v1716
        %v1721 = vpack.c.bf16 %v1717, %v1717
        %v1723 = vsel %vm1586, %v1718, 0
        %vm1725 = vcmask 1043456
        %v1727 = vsel %vm1725, %v1576, 0
        %1729 = vmatpush.bf16.msra.mxu0 0
        %1730 = vmatpush.bf16.msra.mxu0 0
        %1731 = vmatpush.bf16.msra.mxu0 0
        %1732 = vmatpush.bf16.msra.mxu0 0
        %1733 = vmatpush.bf16.msra.mxu0 0
        %1734 = vmatpush.bf16.msra.mxu0 0
        %1735 = vmatpush.bf16.msra.mxu0 0
        %1736 = vmatpush.bf16.msra.mxu0 %v1727
        %1737 = vmatmul.bf16.gmra.mxu0 %v1723
        %v1738 = vpop.f32.mrf.mxu0
        %v1739 = vadd.f32 0.0, %v1738
        %v1740 = vpop.f32.mrf.mxu0
        %1741 = vdwg.mxu0
        %v1743 = vsel %vm1586, %v1719, 0
        %v1746 = vsel %vm1725, %v1579, 0
        %1748 = vmatpush.bf16.msra.mxu0 0
        %1749 = vmatpush.bf16.msra.mxu0 0
        %1750 = vmatpush.bf16.msra.mxu0 0
        %1751 = vmatpush.bf16.msra.mxu0 0
        %1752 = vmatpush.bf16.msra.mxu0 0
        %1753 = vmatpush.bf16.msra.mxu0 0
        %1754 = vmatpush.bf16.msra.mxu0 0
        %1755 = vmatpush.bf16.msra.mxu0 %v1746
        %1756 = vmatmul.bf16.gmra.mxu0 %v1743
        %v1757 = vpop.f32.mrf.mxu0
        %v1758 = vadd.f32 0.0, %v1757
        %v1759 = vpop.f32.mrf.mxu0
        %1760 = vdwg.mxu0
        %v1762 = vsel %vm1586, %v1720, 0
        %v1765 = vsel %vm1725, %v1582, 0
        %1767 = vmatpush.bf16.msra.mxu0 0
        %1768 = vmatpush.bf16.msra.mxu0 0
        %1769 = vmatpush.bf16.msra.mxu0 0
        %1770 = vmatpush.bf16.msra.mxu0 0
        %1771 = vmatpush.bf16.msra.mxu0 0
        %1772 = vmatpush.bf16.msra.mxu0 0
        %1773 = vmatpush.bf16.msra.mxu0 0
        %1774 = vmatpush.bf16.msra.mxu0 %v1765
        %1775 = vmatmul.bf16.gmra.mxu0 %v1762
        %v1776 = vpop.f32.mrf.mxu0
        %v1777 = vadd.f32 0.0, %v1776
        %v1778 = vpop.f32.mrf.mxu0
        %1779 = vdwg.mxu0
        %v1781 = vsel %vm1586, %v1721, 0
        %v1784 = vsel %vm1725, %v1585, 0
        %1786 = vmatpush.bf16.msra.mxu0 0
        %1787 = vmatpush.bf16.msra.mxu0 0
        %1788 = vmatpush.bf16.msra.mxu0 0
        %1789 = vmatpush.bf16.msra.mxu0 0
        %1790 = vmatpush.bf16.msra.mxu0 0
        %1791 = vmatpush.bf16.msra.mxu0 0
        %1792 = vmatpush.bf16.msra.mxu0 0
        %1793 = vmatpush.bf16.msra.mxu0 %v1784
        %1794 = vmatmul.bf16.gmra.mxu0 %v1781
        %v1795 = vpop.f32.mrf.mxu0
        %v1796 = vadd.f32 0.0, %v1795
        %v1797 = vpop.f32.mrf.mxu0
        %1798 = vdwg.mxu0
        %v1799 = vrot.slane %v1777, 4
        %vm1800 = vcmask 1047556
        %v1801 = vsel %vm1800, %v1799, %v1739
        %v1802 = vrot.slane %v1739, 4
        %v1803 = vsel %vm1800, %v1777, %v1802
        %v1805 = vunpack.c.l.s4 1983009808
        %v1806 = vunpack.c.0.s8 %v1805
        %v1807 = vperm.slane %v1801, %v1806
        %v1809 = vunpack.c.l.s4 1983009808
        %v1810 = vunpack.c.0.s8 %v1809
        %v1811 = vperm.slane %v1803, %v1810
        %v1812 = vrot.slane %v1796, 4
        %v1813 = vsel %vm1800, %v1812, %v1758
        %v1814 = vrot.slane %v1758, 4
        %v1815 = vsel %vm1800, %v1796, %v1814
        %v1817 = vunpack.c.l.s4 1983009808
        %v1818 = vunpack.c.0.s8 %v1817
        %v1819 = vperm.slane %v1813, %v1818
        %v1821 = vunpack.c.l.s4 1983009808
        %v1822 = vunpack.c.0.s8 %v1821
        %v1823 = vperm.slane %v1815, %v1822
        %v1824 = vrot.slane %v1819, 4
        %v1825 = vsel %vm1800, %v1824, %v1807
        %v1826 = vrot.slane %v1807, 4
        %v1827 = vsel %vm1800, %v1819, %v1826
        %v1829 = vunpack.c.l.s4 1934713408
        %v1830 = vunpack.c.0.s8 %v1829
        %v1831 = vperm.slane %v1825, %v1830
        %v1833 = vunpack.c.l.s4 1934713408
        %v1834 = vunpack.c.0.s8 %v1833
        %v1835 = vperm.slane %v1827, %v1834
        %v1836 = vrot.slane %v1823, 4
        %v1837 = vsel %vm1800, %v1836, %v1811
        %v1838 = vrot.slane %v1811, 4
        %v1839 = vsel %vm1800, %v1823, %v1838
        %v1841 = vunpack.c.l.s4 1934713408
        %v1842 = vunpack.c.0.s8 %v1841
        %v1843 = vperm.slane %v1837, %v1842
        %v1845 = vunpack.c.l.s4 1934713408
        %v1846 = vunpack.c.0.s8 %v1845
        %v1847 = vperm.slane %v1839, %v1846
        %v1848 = vrot.slane %v1831, 4
        %v1849 = vsel %vm1800, 0.0, %v1848
        %v1850 = vrot.slane %v1835, 4
        %v1851 = vsel %vm1800, 0.0, %v1850
        %v1852 = vrot.slane %v1843, 4
        %v1853 = vsel %vm1800, 0.0, %v1852
        %v1854 = vrot.slane %v1847, 4
        %v1855 = vsel %vm1800, 0.0, %v1854
        %v1856 = vsel %vm1800, %v1850, %v1831
        %v1858 = vunpack.c.l.s4 1983009808
        %v1859 = vunpack.c.0.s8 %v1858
        %v1860 = vperm.slane %v1856, %v1859
        %v1861 = vrot.slane %v1851, 4
        %v1862 = vsel %vm1800, %v1861, %v1849
        %v1864 = vunpack.c.l.s4 1983009808
        %v1865 = vunpack.c.0.s8 %v1864
        %v1866 = vperm.slane %v1862, %v1865
        %v1867 = vsel %vm1800, %v1854, %v1843
        %v1869 = vunpack.c.l.s4 1983009808
        %v1870 = vunpack.c.0.s8 %v1869
        %v1871 = vperm.slane %v1867, %v1870
        %v1872 = vrot.slane %v1855, 4
        %v1873 = vsel %vm1800, %v1872, %v1853
        %v1875 = vunpack.c.l.s4 1983009808
        %v1876 = vunpack.c.0.s8 %v1875
        %v1877 = vperm.slane %v1873, %v1876
        %v1878 = vrot.slane %v1866, 4
        %v1879 = vsel %vm1800, %v1878, %v1860
        %v1880 = vrot.slane %v1860, 4
        %v1881 = vsel %vm1800, %v1866, %v1880
        %v1883 = vunpack.c.l.s4 1934713408
        %v1884 = vunpack.c.0.s8 %v1883
        %v1885 = vperm.slane %v1879, %v1884
        %v1887 = vunpack.c.l.s4 1934713408
        %v1888 = vunpack.c.0.s8 %v1887
        %v1889 = vperm.slane %v1881, %v1888
        %v1890 = vrot.slane %v1877, 4
        %v1891 = vsel %vm1800, %v1890, %v1871
        %v1892 = vrot.slane %v1871, 4
        %v1893 = vsel %vm1800, %v1877, %v1892
        %v1895 = vunpack.c.l.s4 1934713408
        %v1896 = vunpack.c.0.s8 %v1895
        %v1897 = vperm.slane %v1891, %v1896
        %v1899 = vunpack.c.l.s4 1934713408
        %v1900 = vunpack.c.0.s8 %v1899
        %v1901 = vperm.slane %v1893, %v1900
        %v1902 = vrot.slane %v1897, 4
        %v1903 = vsel %vm1800, %v1902, %v1885
        %v1904 = vrot.slane %v1885, 4
        %v1905 = vsel %vm1800, %v1897, %v1904
        %v1906 = vrot.slane %v1901, 4
        %v1907 = vsel %vm1800, %v1906, %v1889
        %v1908 = vrot.slane %v1889, 4
        %v1909 = vsel %vm1800, %v1901, %v1908
        %1911 = vrot.lane.b32.xlu0 %v1905, 8
        %v1912 = vpop.permute.xlu0 %1911
        %1915 = vrot.lane.b32.xlu0 %v1907, 16
        %v1916 = vpop.permute.xlu0 %1915
        %1919 = vrot.lane.b32.xlu0 %v1909, 24
        %v1920 = vpop.permute.xlu0 %1919
        %v1922 = vsel %vm1586, %v1903, %v1912
        %vm1923 = vcmask 130048
        %v1924 = vsel %vm1923, %v1922, %v1916
        %vm1925 = vcmask 195584
        %v1926 = vsel %vm1925, %v1924, %v1920
        %vm1927 = vcmask 60416
        %1928 = vst.msk [vmem:[#allocation7] sm:$0xf] %vm1927, %v1718
        %1929 = vst.msk [vmem:[#allocation7 + $0x4] sm:$0xf] %vm1927, %v1719
        %1930 = vst.msk [vmem:[#allocation7 + $0x8] sm:$0xf] %vm1927, %v1720
        %1931 = vst.msk [vmem:[#allocation7 + $0xc] sm:$0xf] %vm1927, %v1721
        %s1932 = scalar_lea.vmem %s1090, 1
        %v1933 = vld [vmem:[%s1932] sm:$0x1]
        %v1934 = vpack.c.bf16 %v1216, %v1216
        %1936 = vrot.lane.b32.xlu0 %v1934, 120
        %v1937 = vpop.permute.xlu0 %1936
        %1938 = vrot.lane.b32.xlu0 %v1934, 112
        %v1939 = vpop.permute.xlu0 %1938
        %1940 = vrot.lane.b32.xlu0 %v1934, 104
        %v1941 = vpop.permute.xlu0 %1940
        %v1944 = vpack.i.b16 %v1937, %v1934
        %v1945 = vshrl.u32 %v1934, 16
        %v1946 = vshrl.u32 %v1937, 16
        %v1947 = vpack.i.b16 %v1946, %v1945
        %v1950 = vpack.i.b16 %v1941, %v1939
        %v1951 = vshrl.u32 %v1939, 16
        %v1952 = vshrl.u32 %v1941, 16
        %v1953 = vpack.i.b16 %v1952, %v1951
        %v1956 = vunpack.c.l.s4 1983009808
        %v1957 = vunpack.c.0.s8 %v1956
        %v1958 = vperm.slane %v1944, %v1957
        %v1961 = vunpack.c.l.s4 1983009808
        %v1962 = vunpack.c.0.s8 %v1961
        %v1963 = vperm.slane %v1950, %v1962
        %v1964 = vrot.slane %v1963, 4
        %v1965 = vsel %vm1250, %v1964, %v1958
        %v1966 = vrot.slane %v1958, 4
        %v1967 = vsel %vm1250, %v1963, %v1966
        %v1969 = vunpack.c.l.s4 1934713408
        %v1970 = vunpack.c.0.s8 %v1969
        %v1971 = vperm.slane %v1965, %v1970
        %v1973 = vunpack.c.l.s4 1934713408
        %v1974 = vunpack.c.0.s8 %v1973
        %v1975 = vperm.slane %v1967, %v1974
        %v1976 = vrot.slane %v1971, 4
        %v1977 = vsel %vm1250, 0, %v1976
        %v1978 = vrot.slane %v1975, 4
        %v1979 = vsel %vm1250, 0, %v1978
        %v1982 = vunpack.c.l.s4 1983009808
        %v1983 = vunpack.c.0.s8 %v1982
        %v1984 = vperm.slane %v1947, %v1983
        %v1987 = vunpack.c.l.s4 1983009808
        %v1988 = vunpack.c.0.s8 %v1987
        %v1989 = vperm.slane %v1953, %v1988
        %v1990 = vrot.slane %v1989, 4
        %v1991 = vsel %vm1250, %v1990, %v1984
        %v1992 = vrot.slane %v1984, 4
        %v1993 = vsel %vm1250, %v1989, %v1992
        %v1995 = vunpack.c.l.s4 1934713408
        %v1996 = vunpack.c.0.s8 %v1995
        %v1997 = vperm.slane %v1991, %v1996
        %v1999 = vunpack.c.l.s4 1934713408
        %v2000 = vunpack.c.0.s8 %v1999
        %v2001 = vperm.slane %v1993, %v2000
        %v2002 = vrot.slane %v1997, 4
        %v2003 = vsel %vm1250, 0, %v2002
        %v2004 = vrot.slane %v2001, 4
        %v2005 = vsel %vm1250, 0, %v2004
        %v2006 = vsel %vm1250, %v1978, %v1971
        %v2008 = vunpack.c.l.s4 1983009808
        %v2009 = vunpack.c.0.s8 %v2008
        %v2010 = vperm.slane %v2006, %v2009
        %v2011 = vrot.slane %v1979, 4
        %v2012 = vsel %vm1250, %v2011, %v1977
        %v2014 = vunpack.c.l.s4 1983009808
        %v2015 = vunpack.c.0.s8 %v2014
        %v2016 = vperm.slane %v2012, %v2015
        %v2017 = vrot.slane %v2016, 4
        %v2018 = vsel %vm1250, %v2017, %v2010
        %v2020 = vunpack.c.l.s4 1934713408
        %v2021 = vunpack.c.0.s8 %v2020
        %v2022 = vperm.slane %v2018, %v2021
        %v2023 = vrot.slane %v2022, 4
        %v2024 = vsel %vm1250, 0, %v2023
        %v2025 = vsel %vm1250, %v2004, %v1997
        %v2027 = vunpack.c.l.s4 1983009808
        %v2028 = vunpack.c.0.s8 %v2027
        %v2029 = vperm.slane %v2025, %v2028
        %v2030 = vrot.slane %v2005, 4
        %v2031 = vsel %vm1250, %v2030, %v2003
        %v2033 = vunpack.c.l.s4 1983009808
        %v2034 = vunpack.c.0.s8 %v2033
        %v2035 = vperm.slane %v2031, %v2034
        %v2036 = vrot.slane %v2035, 4
        %v2037 = vsel %vm1250, %v2036, %v2029
        %v2039 = vunpack.c.l.s4 1934713408
        %v2040 = vunpack.c.0.s8 %v2039
        %v2041 = vperm.slane %v2037, %v2040
        %v2042 = vrot.slane %v2041, 4
        %v2043 = vsel %vm1250, 0, %v2042
        %v2046 = vpack.i.b16 %v2041, %v2022
        %v2047 = vshrl.u32 %v2022, 16
        %v2048 = vshrl.u32 %v2041, 16
        %v2049 = vpack.i.b16 %v2048, %v2047
        %v2052 = vpack.i.b16 %v2043, %v2024
        %v2053 = vshrl.u32 %v2024, 16
        %v2054 = vshrl.u32 %v2043, 16
        %v2055 = vpack.i.b16 %v2054, %v2053
        %2056 = vrot.lane.b32.xlu0 %v1934, 96
        %v2057 = vpop.permute.xlu0 %2056
        %2058 = vrot.lane.b32.xlu0 %v1937, 96
        %v2059 = vpop.permute.xlu0 %2058
        %2060 = vrot.lane.b32.xlu0 %v1939, 96
        %v2061 = vpop.permute.xlu0 %2060
        %2062 = vrot.lane.b32.xlu0 %v1941, 96
        %v2063 = vpop.permute.xlu0 %2062
        %v2066 = vpack.i.b16 %v2059, %v2057
        %v2067 = vshrl.u32 %v2057, 16
        %v2068 = vshrl.u32 %v2059, 16
        %v2069 = vpack.i.b16 %v2068, %v2067
        %v2072 = vpack.i.b16 %v2063, %v2061
        %v2073 = vshrl.u32 %v2061, 16
        %v2074 = vshrl.u32 %v2063, 16
        %v2075 = vpack.i.b16 %v2074, %v2073
        %v2078 = vunpack.c.l.s4 1983009808
        %v2079 = vunpack.c.0.s8 %v2078
        %v2080 = vperm.slane %v2066, %v2079
        %v2083 = vunpack.c.l.s4 1983009808
        %v2084 = vunpack.c.0.s8 %v2083
        %v2085 = vperm.slane %v2072, %v2084
        %v2086 = vrot.slane %v2085, 4
        %v2087 = vsel %vm1250, %v2086, %v2080
        %v2088 = vrot.slane %v2080, 4
        %v2089 = vsel %vm1250, %v2085, %v2088
        %v2091 = vunpack.c.l.s4 1934713408
        %v2092 = vunpack.c.0.s8 %v2091
        %v2093 = vperm.slane %v2087, %v2092
        %v2095 = vunpack.c.l.s4 1934713408
        %v2096 = vunpack.c.0.s8 %v2095
        %v2097 = vperm.slane %v2089, %v2096
        %v2098 = vrot.slane %v2093, 4
        %v2099 = vsel %vm1250, 0, %v2098
        %v2100 = vrot.slane %v2097, 4
        %v2101 = vsel %vm1250, 0, %v2100
        %v2104 = vunpack.c.l.s4 1983009808
        %v2105 = vunpack.c.0.s8 %v2104
        %v2106 = vperm.slane %v2069, %v2105
        %v2109 = vunpack.c.l.s4 1983009808
        %v2110 = vunpack.c.0.s8 %v2109
        %v2111 = vperm.slane %v2075, %v2110
        %v2112 = vrot.slane %v2111, 4
        %v2113 = vsel %vm1250, %v2112, %v2106
        %v2114 = vrot.slane %v2106, 4
        %v2115 = vsel %vm1250, %v2111, %v2114
        %v2117 = vunpack.c.l.s4 1934713408
        %v2118 = vunpack.c.0.s8 %v2117
        %v2119 = vperm.slane %v2113, %v2118
        %v2121 = vunpack.c.l.s4 1934713408
        %v2122 = vunpack.c.0.s8 %v2121
        %v2123 = vperm.slane %v2115, %v2122
        %v2124 = vrot.slane %v2119, 4
        %v2125 = vsel %vm1250, 0, %v2124
        %v2126 = vrot.slane %v2123, 4
        %v2127 = vsel %vm1250, 0, %v2126
        %v2128 = vsel %vm1250, %v2100, %v2093
        %v2130 = vunpack.c.l.s4 1983009808
        %v2131 = vunpack.c.0.s8 %v2130
        %v2132 = vperm.slane %v2128, %v2131
        %v2133 = vrot.slane %v2101, 4
        %v2134 = vsel %vm1250, %v2133, %v2099
        %v2136 = vunpack.c.l.s4 1983009808
        %v2137 = vunpack.c.0.s8 %v2136
        %v2138 = vperm.slane %v2134, %v2137
        %v2139 = vrot.slane %v2138, 4
        %v2140 = vsel %vm1250, %v2139, %v2132
        %v2142 = vunpack.c.l.s4 1934713408
        %v2143 = vunpack.c.0.s8 %v2142
        %v2144 = vperm.slane %v2140, %v2143
        %v2145 = vrot.slane %v2144, 4
        %v2146 = vsel %vm1250, 0, %v2145
        %v2147 = vsel %vm1250, %v2126, %v2119
        %v2149 = vunpack.c.l.s4 1983009808
        %v2150 = vunpack.c.0.s8 %v2149
        %v2151 = vperm.slane %v2147, %v2150
        %v2152 = vrot.slane %v2127, 4
        %v2153 = vsel %vm1250, %v2152, %v2125
        %v2155 = vunpack.c.l.s4 1983009808
        %v2156 = vunpack.c.0.s8 %v2155
        %v2157 = vperm.slane %v2153, %v2156
        %v2158 = vrot.slane %v2157, 4
        %v2159 = vsel %vm1250, %v2158, %v2151
        %v2161 = vunpack.c.l.s4 1934713408
        %v2162 = vunpack.c.0.s8 %v2161
        %v2163 = vperm.slane %v2159, %v2162
        %v2164 = vrot.slane %v2163, 4
        %v2165 = vsel %vm1250, 0, %v2164
        %v2168 = vpack.i.b16 %v2163, %v2144
        %v2169 = vshrl.u32 %v2144, 16
        %v2170 = vshrl.u32 %v2163, 16
        %v2171 = vpack.i.b16 %v2170, %v2169
        %v2174 = vpack.i.b16 %v2165, %v2146
        %v2175 = vshrl.u32 %v2146, 16
        %v2176 = vshrl.u32 %v2165, 16
        %v2177 = vpack.i.b16 %v2176, %v2175
        %2178 = vrot.lane.b32.xlu0 %v1934, 64
        %v2179 = vpop.permute.xlu0 %2178
        %2180 = vrot.lane.b32.xlu0 %v1937, 64
        %v2181 = vpop.permute.xlu0 %2180
        %2182 = vrot.lane.b32.xlu0 %v1939, 64
        %v2183 = vpop.permute.xlu0 %2182
        %2184 = vrot.lane.b32.xlu0 %v1941, 64
        %v2185 = vpop.permute.xlu0 %2184
        %v2188 = vpack.i.b16 %v2181, %v2179
        %v2189 = vshrl.u32 %v2179, 16
        %v2190 = vshrl.u32 %v2181, 16
        %v2191 = vpack.i.b16 %v2190, %v2189
        %v2194 = vpack.i.b16 %v2185, %v2183
        %v2195 = vshrl.u32 %v2183, 16
        %v2196 = vshrl.u32 %v2185, 16
        %v2197 = vpack.i.b16 %v2196, %v2195
        %v2200 = vunpack.c.l.s4 1983009808
        %v2201 = vunpack.c.0.s8 %v2200
        %v2202 = vperm.slane %v2188, %v2201
        %v2205 = vunpack.c.l.s4 1983009808
        %v2206 = vunpack.c.0.s8 %v2205
        %v2207 = vperm.slane %v2194, %v2206
        %v2208 = vrot.slane %v2207, 4
        %v2209 = vsel %vm1250, %v2208, %v2202
        %v2210 = vrot.slane %v2202, 4
        %v2211 = vsel %vm1250, %v2207, %v2210
        %v2213 = vunpack.c.l.s4 1934713408
        %v2214 = vunpack.c.0.s8 %v2213
        %v2215 = vperm.slane %v2209, %v2214
        %v2217 = vunpack.c.l.s4 1934713408
        %v2218 = vunpack.c.0.s8 %v2217
        %v2219 = vperm.slane %v2211, %v2218
        %v2220 = vrot.slane %v2215, 4
        %v2221 = vsel %vm1250, 0, %v2220
        %v2222 = vrot.slane %v2219, 4
        %v2223 = vsel %vm1250, 0, %v2222
        %v2226 = vunpack.c.l.s4 1983009808
        %v2227 = vunpack.c.0.s8 %v2226
        %v2228 = vperm.slane %v2191, %v2227
        %v2231 = vunpack.c.l.s4 1983009808
        %v2232 = vunpack.c.0.s8 %v2231
        %v2233 = vperm.slane %v2197, %v2232
        %v2234 = vrot.slane %v2233, 4
        %v2235 = vsel %vm1250, %v2234, %v2228
        %v2236 = vrot.slane %v2228, 4
        %v2237 = vsel %vm1250, %v2233, %v2236
        %v2239 = vunpack.c.l.s4 1934713408
        %v2240 = vunpack.c.0.s8 %v2239
        %v2241 = vperm.slane %v2235, %v2240
        %v2243 = vunpack.c.l.s4 1934713408
        %v2244 = vunpack.c.0.s8 %v2243
        %v2245 = vperm.slane %v2237, %v2244
        %v2246 = vrot.slane %v2241, 4
        %v2247 = vsel %vm1250, 0, %v2246
        %v2248 = vrot.slane %v2245, 4
        %v2249 = vsel %vm1250, 0, %v2248
        %v2250 = vsel %vm1250, %v2222, %v2215
        %v2252 = vunpack.c.l.s4 1983009808
        %v2253 = vunpack.c.0.s8 %v2252
        %v2254 = vperm.slane %v2250, %v2253
        %v2255 = vrot.slane %v2223, 4
        %v2256 = vsel %vm1250, %v2255, %v2221
        %v2258 = vunpack.c.l.s4 1983009808
        %v2259 = vunpack.c.0.s8 %v2258
        %v2260 = vperm.slane %v2256, %v2259
        %v2261 = vrot.slane %v2260, 4
        %v2262 = vsel %vm1250, %v2261, %v2254
        %v2264 = vunpack.c.l.s4 1934713408
        %v2265 = vunpack.c.0.s8 %v2264
        %v2266 = vperm.slane %v2262, %v2265
        %v2267 = vrot.slane %v2266, 4
        %v2268 = vsel %vm1250, 0, %v2267
        %v2269 = vsel %vm1250, %v2248, %v2241
        %v2271 = vunpack.c.l.s4 1983009808
        %v2272 = vunpack.c.0.s8 %v2271
        %v2273 = vperm.slane %v2269, %v2272
        %v2274 = vrot.slane %v2249, 4
        %v2275 = vsel %vm1250, %v2274, %v2247
        %v2277 = vunpack.c.l.s4 1983009808
        %v2278 = vunpack.c.0.s8 %v2277
        %v2279 = vperm.slane %v2275, %v2278
        %v2280 = vrot.slane %v2279, 4
        %v2281 = vsel %vm1250, %v2280, %v2273
        %v2283 = vunpack.c.l.s4 1934713408
        %v2284 = vunpack.c.0.s8 %v2283
        %v2285 = vperm.slane %v2281, %v2284
        %v2286 = vrot.slane %v2285, 4
        %v2287 = vsel %vm1250, 0, %v2286
        %v2290 = vpack.i.b16 %v2285, %v2266
        %v2291 = vshrl.u32 %v2266, 16
        %v2292 = vshrl.u32 %v2285, 16
        %v2293 = vpack.i.b16 %v2292, %v2291
        %v2296 = vpack.i.b16 %v2287, %v2268
        %v2297 = vshrl.u32 %v2268, 16
        %v2298 = vshrl.u32 %v2287, 16
        %v2299 = vpack.i.b16 %v2298, %v2297
        %v2301 = vsel %vm1586, %v2046, 0
        %v2304 = vsel %vm1586, %v2168, 0
        %2306 = vmatpush.bf16.xpose.msra.mxu0 0
        %2307 = vmatpush.bf16.xpose.msra.mxu0 0
        %2308 = vmatpush.bf16.xpose.msra.mxu0 0
        %2309 = vmatpush.bf16.xpose.msra.mxu0 0
        %2310 = vmatpush.bf16.xpose.msra.mxu0 0
        %2311 = vmatpush.bf16.xpose.msra.mxu0 0
        %2312 = vmatpush.bf16.xpose.msra.mxu0 0
        %2313 = vmatpush.bf16.xpose.msra.mxu0 %v2304
        %2314 = vmatmul.bf16.gmra.mxu0 %v2301
        %v2315 = vpop.f32.mrf.mxu0
        %v2316 = vadd.f32 0.0, %v2315
        %v2317 = vpop.f32.mrf.mxu0
        %2318 = vdwg.mxu0
        %v2320 = vsel %vm1586, %v2049, 0
        %v2323 = vsel %vm1586, %v2171, 0
        %2325 = vmatpush.bf16.xpose.msra.mxu0 0
        %2326 = vmatpush.bf16.xpose.msra.mxu0 0
        %2327 = vmatpush.bf16.xpose.msra.mxu0 0
        %2328 = vmatpush.bf16.xpose.msra.mxu0 0
        %2329 = vmatpush.bf16.xpose.msra.mxu0 0
        %2330 = vmatpush.bf16.xpose.msra.mxu0 0
        %2331 = vmatpush.bf16.xpose.msra.mxu0 0
        %2332 = vmatpush.bf16.xpose.msra.mxu0 %v2323
        %2333 = vmatmul.bf16.gmra.mxu0 %v2320
        %v2334 = vpop.f32.mrf.mxu0
        %v2335 = vadd.f32 0.0, %v2334
        %v2336 = vpop.f32.mrf.mxu0
        %2337 = vdwg.mxu0
        %v2339 = vsel %vm1586, %v2052, 0
        %v2342 = vsel %vm1586, %v2174, 0
        %2344 = vmatpush.bf16.xpose.msra.mxu0 0
        %2345 = vmatpush.bf16.xpose.msra.mxu0 0
        %2346 = vmatpush.bf16.xpose.msra.mxu0 0
        %2347 = vmatpush.bf16.xpose.msra.mxu0 0
        %2348 = vmatpush.bf16.xpose.msra.mxu0 0
        %2349 = vmatpush.bf16.xpose.msra.mxu0 0
        %2350 = vmatpush.bf16.xpose.msra.mxu0 0
        %2351 = vmatpush.bf16.xpose.msra.mxu0 %v2342
        %2352 = vmatmul.bf16.gmra.mxu0 %v2339
        %v2353 = vpop.f32.mrf.mxu0
        %v2354 = vadd.f32 0.0, %v2353
        %v2355 = vpop.f32.mrf.mxu0
        %2356 = vdwg.mxu0
        %v2358 = vsel %vm1586, %v2055, 0
        %v2361 = vsel %vm1586, %v2177, 0
        %2363 = vmatpush.bf16.xpose.msra.mxu0 0
        %2364 = vmatpush.bf16.xpose.msra.mxu0 0
        %2365 = vmatpush.bf16.xpose.msra.mxu0 0
        %2366 = vmatpush.bf16.xpose.msra.mxu0 0
        %2367 = vmatpush.bf16.xpose.msra.mxu0 0
        %2368 = vmatpush.bf16.xpose.msra.mxu0 0
        %2369 = vmatpush.bf16.xpose.msra.mxu0 0
        %2370 = vmatpush.bf16.xpose.msra.mxu0 %v2361
        %2371 = vmatmul.bf16.gmra.mxu0 %v2358
        %v2372 = vpop.f32.mrf.mxu0
        %v2373 = vadd.f32 0.0, %v2372
        %v2374 = vpop.f32.mrf.mxu0
        %2375 = vdwg.mxu0
        %v2376 = vmul.f32 %v2316, 0.35355338
        %v2377 = vmul.f32 %v2335, 0.35355338
        %v2378 = vmul.f32 %v2354, 0.35355338
        %v2379 = vmul.f32 %v2373, 0.35355338
        %v2381 = vperm.slane %v1933, 0
        %v2383 = vadd.f32 %v2376, %v2381
        %v2384 = vadd.f32 %v2377, %v2381
        %v2385 = vadd.f32 %v2378, %v2381
        %v2386 = vadd.f32 %v2379, %v2381
        %v2387 = vsel %vm1586, %v2383, -inf
        %2388 = vmax.xlane.f32.xlu0 %v2387
        %v2389 = vpop.xlane.xlu0 %2388
        %v2390 = vsel %vm1586, %v2384, -inf
        %2391 = vmax.xlane.f32.xlu0 %v2390
        %v2392 = vpop.xlane.xlu0 %2391
        %v2393 = vsel %vm1586, %v2385, -inf
        %2394 = vmax.xlane.f32.xlu0 %v2393
        %v2395 = vpop.xlane.xlu0 %2394
        %v2396 = vsel %vm1586, %v2386, -inf
        %2397 = vmax.xlane.f32.xlu0 %v2396
        %v2398 = vpop.xlane.xlu0 %2397
        %v2399 = vsub.f32 %v2383, %v2389
        %v2400 = vsub.f32 %v2384, %v2392
        %v2401 = vsub.f32 %v2385, %v2395
        %v2402 = vsub.f32 %v2386, %v2398
        %v2403 = vmul.f32 %v2399, 1.442695
        %v2404 = vpow.pop %v2403
        %v2405 = vmul.f32 %v2400, 1.442695
        %v2406 = vpow.pop %v2405
        %v2407 = vmul.f32 %v2401, 1.442695
        %v2408 = vpow.pop %v2407
        %v2409 = vmul.f32 %v2402, 1.442695
        %v2410 = vpow.pop %v2409
        %v2411 = vsel %vm1586, %v2404, 0.0
        %2412 = vadd.xlane.f32.xlu0 %v2411
        %v2413 = vpop.xlane.xlu0 %2412
        %v2414 = vsel %vm1586, %v2406, 0.0
        %2415 = vadd.xlane.f32.xlu0 %v2414
        %v2416 = vpop.xlane.xlu0 %2415
        %v2417 = vsel %vm1586, %v2408, 0.0
        %2418 = vadd.xlane.f32.xlu0 %v2417
        %v2419 = vpop.xlane.xlu0 %2418
        %v2420 = vsel %vm1586, %v2410, 0.0
        %2421 = vadd.xlane.f32.xlu0 %v2420
        %v2422 = vpop.xlane.xlu0 %2421
        %v2423 = vrcp.pop %v2413
        %v2424 = vrcp.pop %v2416
        %v2425 = vrcp.pop %v2419
        %v2426 = vrcp.pop %v2422
        %v2427 = vmul.f32 %v2404, %v2423
        %v2428 = vmul.f32 %v2406, %v2424
        %v2429 = vmul.f32 %v2408, %v2425
        %v2430 = vmul.f32 %v2410, %v2426
        %v2431 = vpack.c.bf16 %v2427, %v2427
        %v2432 = vpack.c.bf16 %v2428, %v2428
        %v2433 = vpack.c.bf16 %v2429, %v2429
        %v2434 = vpack.c.bf16 %v2430, %v2430
        %v2436 = vsel %vm1586, %v2431, 0
        %v2439 = vsel %vm1725, %v2290, 0
        %2441 = vmatpush.bf16.msra.mxu0 0
        %2442 = vmatpush.bf16.msra.mxu0 0
        %2443 = vmatpush.bf16.msra.mxu0 0
        %2444 = vmatpush.bf16.msra.mxu0 0
        %2445 = vmatpush.bf16.msra.mxu0 0
        %2446 = vmatpush.bf16.msra.mxu0 0
        %2447 = vmatpush.bf16.msra.mxu0 0
        %2448 = vmatpush.bf16.msra.mxu0 %v2439
        %2449 = vmatmul.bf16.gmra.mxu0 %v2436
        %v2450 = vpop.f32.mrf.mxu0
        %v2451 = vadd.f32 0.0, %v2450
        %v2452 = vpop.f32.mrf.mxu0
        %2453 = vdwg.mxu0
        %v2455 = vsel %vm1586, %v2432, 0
        %v2458 = vsel %vm1725, %v2293, 0
        %2460 = vmatpush.bf16.msra.mxu0 0
        %2461 = vmatpush.bf16.msra.mxu0 0
        %2462 = vmatpush.bf16.msra.mxu0 0
        %2463 = vmatpush.bf16.msra.mxu0 0
        %2464 = vmatpush.bf16.msra.mxu0 0
        %2465 = vmatpush.bf16.msra.mxu0 0
        %2466 = vmatpush.bf16.msra.mxu0 0
        %2467 = vmatpush.bf16.msra.mxu0 %v2458
        %2468 = vmatmul.bf16.gmra.mxu0 %v2455
        %v2469 = vpop.f32.mrf.mxu0
        %v2470 = vadd.f32 0.0, %v2469
        %v2471 = vpop.f32.mrf.mxu0
        %2472 = vdwg.mxu0
        %v2474 = vsel %vm1586, %v2433, 0
        %v2477 = vsel %vm1725, %v2296, 0
        %2479 = vmatpush.bf16.msra.mxu0 0
        %2480 = vmatpush.bf16.msra.mxu0 0
        %2481 = vmatpush.bf16.msra.mxu0 0
        %2482 = vmatpush.bf16.msra.mxu0 0
        %2483 = vmatpush.bf16.msra.mxu0 0
        %2484 = vmatpush.bf16.msra.mxu0 0
        %2485 = vmatpush.bf16.msra.mxu0 0
        %2486 = vmatpush.bf16.msra.mxu0 %v2477
        %2487 = vmatmul.bf16.gmra.mxu0 %v2474
        %v2488 = vpop.f32.mrf.mxu0
        %v2489 = vadd.f32 0.0, %v2488
        %v2490 = vpop.f32.mrf.mxu0
        %2491 = vdwg.mxu0
        %v2493 = vsel %vm1586, %v2434, 0
        %v2496 = vsel %vm1725, %v2299, 0
        %2498 = vmatpush.bf16.msra.mxu0 0
        %2499 = vmatpush.bf16.msra.mxu0 0
        %2500 = vmatpush.bf16.msra.mxu0 0
        %2501 = vmatpush.bf16.msra.mxu0 0
        %2502 = vmatpush.bf16.msra.mxu0 0
        %2503 = vmatpush.bf16.msra.mxu0 0
        %2504 = vmatpush.bf16.msra.mxu0 0
        %2505 = vmatpush.bf16.msra.mxu0 %v2496
        %2506 = vmatmul.bf16.gmra.mxu0 %v2493
        %v2507 = vpop.f32.mrf.mxu0
        %v2508 = vadd.f32 0.0, %v2507
        %v2509 = vpop.f32.mrf.mxu0
        %2510 = vdwg.mxu0
        %v2511 = vrot.slane %v2489, 4
        %v2512 = vsel %vm1800, %v2511, %v2451
        %v2513 = vrot.slane %v2451, 4
        %v2514 = vsel %vm1800, %v2489, %v2513
        %v2516 = vunpack.c.l.s4 1983009808
        %v2517 = vunpack.c.0.s8 %v2516
        %v2518 = vperm.slane %v2512, %v2517
        %v2520 = vunpack.c.l.s4 1983009808
        %v2521 = vunpack.c.0.s8 %v2520
        %v2522 = vperm.slane %v2514, %v2521
        %v2523 = vrot.slane %v2508, 4
        %v2524 = vsel %vm1800, %v2523, %v2470
        %v2525 = vrot.slane %v2470, 4
        %v2526 = vsel %vm1800, %v2508, %v2525
        %v2528 = vunpack.c.l.s4 1983009808
        %v2529 = vunpack.c.0.s8 %v2528
        %v2530 = vperm.slane %v2524, %v2529
        %v2532 = vunpack.c.l.s4 1983009808
        %v2533 = vunpack.c.0.s8 %v2532
        %v2534 = vperm.slane %v2526, %v2533
        %v2535 = vrot.slane %v2530, 4
        %v2536 = vsel %vm1800, %v2535, %v2518
        %v2537 = vrot.slane %v2518, 4
        %v2538 = vsel %vm1800, %v2530, %v2537
        %v2540 = vunpack.c.l.s4 1934713408
        %v2541 = vunpack.c.0.s8 %v2540
        %v2542 = vperm.slane %v2536, %v2541
        %v2544 = vunpack.c.l.s4 1934713408
        %v2545 = vunpack.c.0.s8 %v2544
        %v2546 = vperm.slane %v2538, %v2545
        %v2547 = vrot.slane %v2534, 4
        %v2548 = vsel %vm1800, %v2547, %v2522
        %v2549 = vrot.slane %v2522, 4
        %v2550 = vsel %vm1800, %v2534, %v2549
        %v2552 = vunpack.c.l.s4 1934713408
        %v2553 = vunpack.c.0.s8 %v2552
        %v2554 = vperm.slane %v2548, %v2553
        %v2556 = vunpack.c.l.s4 1934713408
        %v2557 = vunpack.c.0.s8 %v2556
        %v2558 = vperm.slane %v2550, %v2557
        %v2559 = vrot.slane %v2542, 4
        %v2560 = vsel %vm1800, 0.0, %v2559
        %v2561 = vrot.slane %v2546, 4
        %v2562 = vsel %vm1800, 0.0, %v2561
        %v2563 = vrot.slane %v2554, 4
        %v2564 = vsel %vm1800, 0.0, %v2563
        %v2565 = vrot.slane %v2558, 4
        %v2566 = vsel %vm1800, 0.0, %v2565
        %v2567 = vsel %vm1800, %v2561, %v2542
        %v2569 = vunpack.c.l.s4 1983009808
        %v2570 = vunpack.c.0.s8 %v2569
        %v2571 = vperm.slane %v2567, %v2570
        %v2572 = vrot.slane %v2562, 4
        %v2573 = vsel %vm1800, %v2572, %v2560
        %v2575 = vunpack.c.l.s4 1983009808
        %v2576 = vunpack.c.0.s8 %v2575
        %v2577 = vperm.slane %v2573, %v2576
        %v2578 = vsel %vm1800, %v2565, %v2554
        %v2580 = vunpack.c.l.s4 1983009808
        %v2581 = vunpack.c.0.s8 %v2580
        %v2582 = vperm.slane %v2578, %v2581
        %v2583 = vrot.slane %v2566, 4
        %v2584 = vsel %vm1800, %v2583, %v2564
        %v2586 = vunpack.c.l.s4 1983009808
        %v2587 = vunpack.c.0.s8 %v2586
        %v2588 = vperm.slane %v2584, %v2587
        %v2589 = vrot.slane %v2577, 4
        %v2590 = vsel %vm1800, %v2589, %v2571
        %v2591 = vrot.slane %v2571, 4
        %v2592 = vsel %vm1800, %v2577, %v2591
        %v2594 = vunpack.c.l.s4 1934713408
        %v2595 = vunpack.c.0.s8 %v2594
        %v2596 = vperm.slane %v2590, %v2595
        %v2598 = vunpack.c.l.s4 1934713408
        %v2599 = vunpack.c.0.s8 %v2598
        %v2600 = vperm.slane %v2592, %v2599
        %v2601 = vrot.slane %v2588, 4
        %v2602 = vsel %vm1800, %v2601, %v2582
        %v2603 = vrot.slane %v2582, 4
        %v2604 = vsel %vm1800, %v2588, %v2603
        %v2606 = vunpack.c.l.s4 1934713408
        %v2607 = vunpack.c.0.s8 %v2606
        %v2608 = vperm.slane %v2602, %v2607
        %v2610 = vunpack.c.l.s4 1934713408
        %v2611 = vunpack.c.0.s8 %v2610
        %v2612 = vperm.slane %v2604, %v2611
        %v2613 = vrot.slane %v2608, 4
        %v2614 = vsel %vm1800, %v2613, %v2596
        %v2615 = vrot.slane %v2596, 4
        %v2616 = vsel %vm1800, %v2608, %v2615
        %v2617 = vrot.slane %v2612, 4
        %v2618 = vsel %vm1800, %v2617, %v2600
        %v2619 = vrot.slane %v2600, 4
        %v2620 = vsel %vm1800, %v2612, %v2619
        %2622 = vrot.lane.b32.xlu0 %v2616, 8
        %v2623 = vpop.permute.xlu0 %2622
        %2626 = vrot.lane.b32.xlu0 %v2618, 16
        %v2627 = vpop.permute.xlu0 %2626
        %2630 = vrot.lane.b32.xlu0 %v2620, 24
        %v2631 = vpop.permute.xlu0 %2630
        %v2633 = vsel %vm1586, %v2614, %v2623
        %v2634 = vsel %vm1923, %v2633, %v2627
        %v2635 = vsel %vm1925, %v2634, %v2631
        %s2636 = scalar_lea.vmem [#allocation7], 16
        %2637 = vst.msk [vmem:[%s2636] sm:$0xf] %vm1927, %v2431
        %2638 = vst.msk [vmem:[%s2636 + $0x4] sm:$0xf] %vm1927, %v2432
        %2639 = vst.msk [vmem:[%s2636 + $0x8] sm:$0xf] %vm1927, %v2433
        %2640 = vst.msk [vmem:[%s2636 + $0xc] sm:$0xf] %vm1927, %v2434
        %v2641 = vpack.c.bf16 %v2635, %v1926
        %v2642 = vld [vmem:[%s1109] sm:$0xf]
        %v2643 = vld [vmem:[%s1109 + $0x4] sm:$0xf]
        %v2644 = vld [vmem:[%s1109 + $0x8] sm:$0xf]
        %v2645 = vld [vmem:[%s1109 + $0xc] sm:$0xf]
        %v2646 = vld [vmem:[%s1112] sm:$0x1]
        %v2648 = vperm.slane %v2646, 0
        %v2654 = vunpack.c.l.b16 %v2642
        %v2655 = vunpack.c.l.b16 %v2643
        %v2656 = vunpack.c.l.b16 %v2644
        %v2657 = vunpack.c.l.b16 %v2645
        %v2658 = vpack.c.b16 %v2655, %v2654
        %v2659 = vpack.c.b16 %v2657, %v2656
        %v2663 = vsel %vm1200, %v2641, 0
        %2665 = vmatpush.bf16.msra.mxu0 0
        %2666 = vmatpush.bf16.msra.mxu0 0
        %2667 = vmatpush.bf16.msra.mxu0 0
        %2668 = vmatpush.bf16.msra.mxu0 0
        %2669 = vmatpush.bf16.msra.mxu0 0
        %2670 = vmatpush.bf16.msra.mxu0 0
        %2671 = vmatpush.bf16.msra.mxu0 %v2659
        %2672 = vmatpush.bf16.msra.mxu0 %v2658
        %2673 = vmatmul.bf16.gmra.mxu0 %v2663
        %v2674 = vpop.f32.mrf.mxu0
        %v2675 = vadd.f32 %v2648, %v2674
        %v2676 = vpop.f32.mrf.mxu0
        %v2677 = vadd.f32 %v2648, %v2676
        %2678 = vdwg.mxu0
        %v2679 = vadd.f32 %v1173, %v2675
        %v2680 = vadd.f32 %v1174, %v2677
        %v2681 = vld [vmem:[%s1134] sm:$0x1]
        %v2682 = vld [vmem:[%s1137] sm:$0x1]
        %v2683 = vsel %vm1200, %v2679, 0.0
        %2684 = vadd.xlane.f32.xlu0 %v2683
        %v2685 = vpop.xlane.xlu0 %2684
        %v2686 = vsel %vm1200, %v2680, 0.0
        %2687 = vadd.xlane.f32.xlu0 %v2686
        %v2688 = vpop.xlane.xlu0 %2687
        %v2689 = vrcp.pop 32.0
        %v2690 = vmul.f32 32.0, %v2689
        %v2691 = vsub.f32 1.0, %v2690
        %v2692 = vmul.f32 %v2689, %v2691
        %v2693 = vadd.f32 %v2689, %v2692
        %vm2694 = vweird.f32 %v2689
        %v2695 = vsel %vm2694, %v2689, %v2693
        %v2696 = vmul.f32 %v2685, %v2695
        %v2697 = vmul.f32 %v2688, %v2695
        %v2698 = vsub.f32 %v2679, %v2696
        %v2699 = vsub.f32 %v2680, %v2697
        %v2700 = vmul.f32 %v2698, %v2698
        %v2701 = vmul.f32 %v2699, %v2699
        %v2702 = vsel %vm1200, %v2700, 0.0
        %2703 = vadd.xlane.f32.xlu0 %v2702
        %v2704 = vpop.xlane.xlu0 %2703
        %v2705 = vsel %vm1200, %v2701, 0.0
        %2706 = vadd.xlane.f32.xlu0 %v2705
        %v2707 = vpop.xlane.xlu0 %2706
        %v2708 = vmul.f32 %v2704, %v2695
        %v2709 = vmul.f32 %v2707, %v2695
        %v2710 = vadd.f32 %v2708, 1e-05
        %v2711 = vadd.f32 %v2709, 1e-05
        %v2712 = vrsqrt.pop %v2710
        %v2713 = vmul.f32 %v2712, %v2710
        %v2714 = vmul.f32 %v2713, %v2712
        %v2715 = vmul.f32 0.5, %v2714
        %v2716 = vsub.f32 1.5, %v2715
        %v2717 = vmul.f32 %v2712, %v2716
        %vm2718 = vweird.f32 %v2710
        %vm2719 = vweird.f32 %v2712
        %vm2720 = vmor %vm2718, %vm2719
        %v2721 = vsel %vm2720, %v2712, %v2717
        %v2722 = vrsqrt.pop %v2711
        %v2723 = vmul.f32 %v2722, %v2711
        %v2724 = vmul.f32 %v2723, %v2722
        %v2725 = vmul.f32 0.5, %v2724
        %v2726 = vsub.f32 1.5, %v2725
        %v2727 = vmul.f32 %v2722, %v2726
        %vm2728 = vweird.f32 %v2711
        %vm2729 = vweird.f32 %v2722
        %vm2730 = vmor %vm2728, %vm2729
        %v2731 = vsel %vm2730, %v2722, %v2727
        %v2732 = vmul.f32 %v2698, %v2721
        %v2733 = vmul.f32 %v2699, %v2731
        %v2735 = vperm.slane %v2681, 0
        %v2737 = vmul.f32 %v2732, %v2735
        %v2738 = vmul.f32 %v2733, %v2735
        %v2740 = vperm.slane %v2682, 0
        %v2742 = vadd.f32 %v2737, %v2740
        %v2743 = vadd.f32 %v2738, %v2740
        %v2744 = vpack.c.bf16 %v2743, %v2742
        %v2745 = vld [vmem:[%s1117] sm:$0xf]
        %v2746 = vld [vmem:[%s1117 + $0x4] sm:$0xf]
        %v2747 = vld [vmem:[%s1117 + $0x8] sm:$0xf]
        %v2748 = vld [vmem:[%s1117 + $0xc] sm:$0xf]
        %v2749 = vld [vmem:[%s1120] sm:$0x1]
        %v2751 = vperm.slane %v2749, 0
        %v2757 = vunpack.c.l.b16 %v2745
        %v2758 = vunpack.c.l.b16 %v2746
        %v2759 = vunpack.c.l.b16 %v2747
        %v2760 = vunpack.c.l.b16 %v2748
        %v2761 = vpack.c.b16 %v2758, %v2757
        %v2762 = vpack.c.b16 %v2760, %v2759
        %v2766 = vsel %vm1200, %v2744, 0
        %2768 = vmatpush.bf16.msra.mxu0 0
        %2769 = vmatpush.bf16.msra.mxu0 0
        %2770 = vmatpush.bf16.msra.mxu0 0
        %2771 = vmatpush.bf16.msra.mxu0 0
        %2772 = vmatpush.bf16.msra.mxu0 0
        %2773 = vmatpush.bf16.msra.mxu0 0
        %2774 = vmatpush.bf16.msra.mxu0 %v2762
        %2775 = vmatpush.bf16.msra.mxu0 %v2761
        %2776 = vmatmul.bf16.gmra.mxu0 %v2766
        %v2777 = vpop.f32.mrf.mxu0
        %v2778 = vadd.f32 %v2751, %v2777
        %v2779 = vpop.f32.mrf.mxu0
        %v2780 = vadd.f32 %v2751, %v2779
        %2781 = vdwg.mxu0
        %v2782 = vld [vmem:[%s1125] sm:$0xf]
        %v2783 = vld [vmem:[%s1125 + $0x4] sm:$0xf]
        %v2784 = vld [vmem:[%s1125 + $0x8] sm:$0xf]
        %v2785 = vld [vmem:[%s1125 + $0xc] sm:$0xf]
        %v2786 = vld [vmem:[%s1128] sm:$0x1]
        %v2788 = vperm.slane %v2786, 0
        %v2794 = vunpack.c.l.b16 %v1175
        %v2795 = vunpack.c.l.b16 %v1176
        %v2796 = vunpack.c.l.b16 %v1177
        %v2797 = vunpack.c.l.b16 %v1178
        %v2798 = vpack.c.b16 %v2795, %v2794
        %v2799 = vpack.c.b16 %v2797, %v2796
        %v2804 = vunpack.c.l.b16 %v2782
        %v2805 = vunpack.c.l.b16 %v2783
        %v2806 = vunpack.c.l.b16 %v2784
        %v2807 = vunpack.c.l.b16 %v2785
        %v2808 = vpack.c.b16 %v2805, %v2804
        %v2809 = vpack.c.b16 %v2807, %v2806
        %v2813 = vsel %vm1200, %v2798, 0
        %v2816 = vsel %vm1200, %v2799, 0
        %2818 = vmatpush.bf16.msra.mxu0 0
        %2819 = vmatpush.bf16.msra.mxu0 0
        %2820 = vmatpush.bf16.msra.mxu0 0
        %2821 = vmatpush.bf16.msra.mxu0 0
        %2822 = vmatpush.bf16.msra.mxu0 0
        %2823 = vmatpush.bf16.msra.mxu0 0
        %2824 = vmatpush.bf16.msra.mxu0 %v2809
        %2825 = vmatpush.bf16.msra.mxu0 %v2808
        %2826 = vmatmul.bf16.gmra.mxu0 %v2813
        %v2827 = vpop.f32.mrf.mxu0
        %v2828 = vadd.f32 %v2788, %v2827
        %v2829 = vpop.f32.mrf.mxu0
        %v2830 = vadd.f32 %v2788, %v2829
        %2831 = vmatmul.bf16.gmra.mxu0 %v2816
        %v2832 = vpop.f32.mrf.mxu0
        %v2833 = vadd.f32 %v2788, %v2832
        %v2834 = vpop.f32.mrf.mxu0
        %v2835 = vadd.f32 %v2788, %v2834
        %2836 = vdwg.mxu0
        %v2837 = vld [vmem:[%s1095] sm:$0x1]
        %v2838 = vpack.c.bf16 %v2778, %v2778
        %2840 = vrot.lane.b32.xlu0 %v2838, 120
        %v2841 = vpop.permute.xlu0 %2840
        %2842 = vrot.lane.b32.xlu0 %v2838, 112
        %v2843 = vpop.permute.xlu0 %2842
        %2844 = vrot.lane.b32.xlu0 %v2838, 104
        %v2845 = vpop.permute.xlu0 %2844
        %v2848 = vpack.i.b16 %v2841, %v2838
        %v2849 = vshrl.u32 %v2838, 16
        %v2850 = vshrl.u32 %v2841, 16
        %v2851 = vpack.i.b16 %v2850, %v2849
        %v2854 = vpack.i.b16 %v2845, %v2843
        %v2855 = vshrl.u32 %v2843, 16
        %v2856 = vshrl.u32 %v2845, 16
        %v2857 = vpack.i.b16 %v2856, %v2855
        %v2860 = vunpack.c.l.s4 1983009808
        %v2861 = vunpack.c.0.s8 %v2860
        %v2862 = vperm.slane %v2848, %v2861
        %v2865 = vunpack.c.l.s4 1983009808
        %v2866 = vunpack.c.0.s8 %v2865
        %v2867 = vperm.slane %v2854, %v2866
        %v2868 = vrot.slane %v2867, 4
        %v2869 = vsel %vm1250, %v2868, %v2862
        %v2870 = vrot.slane %v2862, 4
        %v2871 = vsel %vm1250, %v2867, %v2870
        %v2873 = vunpack.c.l.s4 1934713408
        %v2874 = vunpack.c.0.s8 %v2873
        %v2875 = vperm.slane %v2869, %v2874
        %v2877 = vunpack.c.l.s4 1934713408
        %v2878 = vunpack.c.0.s8 %v2877
        %v2879 = vperm.slane %v2871, %v2878
        %v2880 = vrot.slane %v2875, 4
        %v2881 = vsel %vm1250, 0, %v2880
        %v2882 = vrot.slane %v2879, 4
        %v2883 = vsel %vm1250, 0, %v2882
        %v2886 = vunpack.c.l.s4 1983009808
        %v2887 = vunpack.c.0.s8 %v2886
        %v2888 = vperm.slane %v2851, %v2887
        %v2891 = vunpack.c.l.s4 1983009808
        %v2892 = vunpack.c.0.s8 %v2891
        %v2893 = vperm.slane %v2857, %v2892
        %v2894 = vrot.slane %v2893, 4
        %v2895 = vsel %vm1250, %v2894, %v2888
        %v2896 = vrot.slane %v2888, 4
        %v2897 = vsel %vm1250, %v2893, %v2896
        %v2899 = vunpack.c.l.s4 1934713408
        %v2900 = vunpack.c.0.s8 %v2899
        %v2901 = vperm.slane %v2895, %v2900
        %v2903 = vunpack.c.l.s4 1934713408
        %v2904 = vunpack.c.0.s8 %v2903
        %v2905 = vperm.slane %v2897, %v2904
        %v2906 = vrot.slane %v2901, 4
        %v2907 = vsel %vm1250, 0, %v2906
        %v2908 = vrot.slane %v2905, 4
        %v2909 = vsel %vm1250, 0, %v2908
        %v2910 = vsel %vm1250, %v2882, %v2875
        %v2912 = vunpack.c.l.s4 1983009808
        %v2913 = vunpack.c.0.s8 %v2912
        %v2914 = vperm.slane %v2910, %v2913
        %v2915 = vrot.slane %v2883, 4
        %v2916 = vsel %vm1250, %v2915, %v2881
        %v2918 = vunpack.c.l.s4 1983009808
        %v2919 = vunpack.c.0.s8 %v2918
        %v2920 = vperm.slane %v2916, %v2919
        %v2921 = vrot.slane %v2920, 4
        %v2922 = vsel %vm1250, %v2921, %v2914
        %v2924 = vunpack.c.l.s4 1934713408
        %v2925 = vunpack.c.0.s8 %v2924
        %v2926 = vperm.slane %v2922, %v2925
        %v2927 = vrot.slane %v2926, 4
        %v2928 = vsel %vm1250, 0, %v2927
        %v2929 = vsel %vm1250, %v2908, %v2901
        %v2931 = vunpack.c.l.s4 1983009808
        %v2932 = vunpack.c.0.s8 %v2931
        %v2933 = vperm.slane %v2929, %v2932
        %v2934 = vrot.slane %v2909, 4
        %v2935 = vsel %vm1250, %v2934, %v2907
        %v2937 = vunpack.c.l.s4 1983009808
        %v2938 = vunpack.c.0.s8 %v2937
        %v2939 = vperm.slane %v2935, %v2938
        %v2940 = vrot.slane %v2939, 4
        %v2941 = vsel %vm1250, %v2940, %v2933
        %v2943 = vunpack.c.l.s4 1934713408
        %v2944 = vunpack.c.0.s8 %v2943
        %v2945 = vperm.slane %v2941, %v2944
        %v2946 = vrot.slane %v2945, 4
        %v2947 = vsel %vm1250, 0, %v2946
        %v2950 = vpack.i.b16 %v2945, %v2926
        %v2951 = vshrl.u32 %v2926, 16
        %v2952 = vshrl.u32 %v2945, 16
        %v2953 = vpack.i.b16 %v2952, %v2951
        %v2956 = vpack.i.b16 %v2947, %v2928
        %v2957 = vshrl.u32 %v2928, 16
        %v2958 = vshrl.u32 %v2947, 16
        %v2959 = vpack.i.b16 %v2958, %v2957
        %v2960 = vpack.c.bf16 %v2828, %v2828
        %v2961 = vpack.c.bf16 %v2830, %v2830
        %2964 = vrot.lane.b32.xlu0 %v2960, 120
        %v2965 = vpop.permute.xlu0 %2964
        %2966 = vrot.lane.b32.xlu0 %v2961, 120
        %v2967 = vpop.permute.xlu0 %2966
        %2968 = vrot.lane.b32.xlu0 %v2960, 112
        %v2969 = vpop.permute.xlu0 %2968
        %2970 = vrot.lane.b32.xlu0 %v2961, 112
        %v2971 = vpop.permute.xlu0 %2970
        %2972 = vrot.lane.b32.xlu0 %v2960, 104
        %v2973 = vpop.permute.xlu0 %2972
        %2974 = vrot.lane.b32.xlu0 %v2961, 104
        %v2975 = vpop.permute.xlu0 %2974
        %v2978 = vpack.i.b16 %v2965, %v2960
        %v2979 = vshrl.u32 %v2960, 16
        %v2980 = vshrl.u32 %v2965, 16
        %v2981 = vpack.i.b16 %v2980, %v2979
        %v2984 = vpack.i.b16 %v2973, %v2969
        %v2985 = vshrl.u32 %v2969, 16
        %v2986 = vshrl.u32 %v2973, 16
        %v2987 = vpack.i.b16 %v2986, %v2985
        %v2990 = vpack.i.b16 %v2967, %v2961
        %v2991 = vshrl.u32 %v2961, 16
        %v2992 = vshrl.u32 %v2967, 16
        %v2993 = vpack.i.b16 %v2992, %v2991
        %v2996 = vpack.i.b16 %v2975, %v2971
        %v2997 = vshrl.u32 %v2971, 16
        %v2998 = vshrl.u32 %v2975, 16
        %v2999 = vpack.i.b16 %v2998, %v2997
        %v3002 = vunpack.c.l.s4 1983009808
        %v3003 = vunpack.c.0.s8 %v3002
        %v3004 = vperm.slane %v2978, %v3003
        %v3007 = vunpack.c.l.s4 1983009808
        %v3008 = vunpack.c.0.s8 %v3007
        %v3009 = vperm.slane %v2984, %v3008
        %v3010 = vrot.slane %v3009, 4
        %v3011 = vsel %vm1250, %v3010, %v3004
        %v3012 = vrot.slane %v3004, 4
        %v3013 = vsel %vm1250, %v3009, %v3012
        %v3015 = vunpack.c.l.s4 1934713408
        %v3016 = vunpack.c.0.s8 %v3015
        %v3017 = vperm.slane %v3011, %v3016
        %v3019 = vunpack.c.l.s4 1934713408
        %v3020 = vunpack.c.0.s8 %v3019
        %v3021 = vperm.slane %v3013, %v3020
        %v3022 = vrot.slane %v3017, 4
        %v3023 = vsel %vm1250, 0, %v3022
        %v3024 = vrot.slane %v3021, 4
        %v3025 = vsel %vm1250, 0, %v3024
        %v3028 = vunpack.c.l.s4 1983009808
        %v3029 = vunpack.c.0.s8 %v3028
        %v3030 = vperm.slane %v2981, %v3029
        %v3033 = vunpack.c.l.s4 1983009808
        %v3034 = vunpack.c.0.s8 %v3033
        %v3035 = vperm.slane %v2987, %v3034
        %v3036 = vrot.slane %v3035, 4
        %v3037 = vsel %vm1250, %v3036, %v3030
        %v3038 = vrot.slane %v3030, 4
        %v3039 = vsel %vm1250, %v3035, %v3038
        %v3041 = vunpack.c.l.s4 1934713408
        %v3042 = vunpack.c.0.s8 %v3041
        %v3043 = vperm.slane %v3037, %v3042
        %v3045 = vunpack.c.l.s4 1934713408
        %v3046 = vunpack.c.0.s8 %v3045
        %v3047 = vperm.slane %v3039, %v3046
        %v3048 = vrot.slane %v3043, 4
        %v3049 = vsel %vm1250, 0, %v3048
        %v3050 = vrot.slane %v3047, 4
        %v3051 = vsel %vm1250, 0, %v3050
        %v3054 = vunpack.c.l.s4 1983009808
        %v3055 = vunpack.c.0.s8 %v3054
        %v3056 = vperm.slane %v2990, %v3055
        %v3059 = vunpack.c.l.s4 1983009808
        %v3060 = vunpack.c.0.s8 %v3059
        %v3061 = vperm.slane %v2996, %v3060
        %v3062 = vrot.slane %v3061, 4
        %v3063 = vsel %vm1250, %v3062, %v3056
        %v3064 = vrot.slane %v3056, 4
        %v3065 = vsel %vm1250, %v3061, %v3064
        %v3067 = vunpack.c.l.s4 1934713408
        %v3068 = vunpack.c.0.s8 %v3067
        %v3069 = vperm.slane %v3063, %v3068
        %v3071 = vunpack.c.l.s4 1934713408
        %v3072 = vunpack.c.0.s8 %v3071
        %v3073 = vperm.slane %v3065, %v3072
        %v3074 = vrot.slane %v3069, 4
        %v3075 = vsel %vm1250, 0, %v3074
        %v3076 = vrot.slane %v3073, 4
        %v3077 = vsel %vm1250, 0, %v3076
        %v3080 = vunpack.c.l.s4 1983009808
        %v3081 = vunpack.c.0.s8 %v3080
        %v3082 = vperm.slane %v2993, %v3081
        %v3085 = vunpack.c.l.s4 1983009808
        %v3086 = vunpack.c.0.s8 %v3085
        %v3087 = vperm.slane %v2999, %v3086
        %v3088 = vrot.slane %v3087, 4
        %v3089 = vsel %vm1250, %v3088, %v3082
        %v3090 = vrot.slane %v3082, 4
        %v3091 = vsel %vm1250, %v3087, %v3090
        %v3093 = vunpack.c.l.s4 1934713408
        %v3094 = vunpack.c.0.s8 %v3093
        %v3095 = vperm.slane %v3089, %v3094
        %v3097 = vunpack.c.l.s4 1934713408
        %v3098 = vunpack.c.0.s8 %v3097
        %v3099 = vperm.slane %v3091, %v3098
        %v3100 = vrot.slane %v3095, 4
        %v3101 = vsel %vm1250, 0, %v3100
        %v3102 = vrot.slane %v3099, 4
        %v3103 = vsel %vm1250, 0, %v3102
        %v3104 = vsel %vm1250, %v3024, %v3017
        %v3106 = vunpack.c.l.s4 1983009808
        %v3107 = vunpack.c.0.s8 %v3106
        %v3108 = vperm.slane %v3104, %v3107
        %v3109 = vrot.slane %v3025, 4
        %v3110 = vsel %vm1250, %v3109, %v3023
        %v3112 = vunpack.c.l.s4 1983009808
        %v3113 = vunpack.c.0.s8 %v3112
        %v3114 = vperm.slane %v3110, %v3113
        %v3115 = vrot.slane %v3114, 4
        %v3116 = vsel %vm1250, %v3115, %v3108
        %v3118 = vunpack.c.l.s4 1934713408
        %v3119 = vunpack.c.0.s8 %v3118
        %v3120 = vperm.slane %v3116, %v3119
        %v3121 = vrot.slane %v3120, 4
        %v3122 = vsel %vm1250, 0, %v3121
        %v3123 = vsel %vm1250, %v3050, %v3043
        %v3125 = vunpack.c.l.s4 1983009808
        %v3126 = vunpack.c.0.s8 %v3125
        %v3127 = vperm.slane %v3123, %v3126
        %v3128 = vrot.slane %v3051, 4
        %v3129 = vsel %vm1250, %v3128, %v3049
        %v3131 = vunpack.c.l.s4 1983009808
        %v3132 = vunpack.c.0.s8 %v3131
        %v3133 = vperm.slane %v3129, %v3132
        %v3134 = vrot.slane %v3133, 4
        %v3135 = vsel %vm1250, %v3134, %v3127
        %v3137 = vunpack.c.l.s4 1934713408
        %v3138 = vunpack.c.0.s8 %v3137
        %v3139 = vperm.slane %v3135, %v3138
        %v3140 = vrot.slane %v3139, 4
        %v3141 = vsel %vm1250, 0, %v3140
        %v3142 = vsel %vm1250, %v3076, %v3069
        %v3144 = vunpack.c.l.s4 1983009808
        %v3145 = vunpack.c.0.s8 %v3144
        %v3146 = vperm.slane %v3142, %v3145
        %v3147 = vrot.slane %v3077, 4
        %v3148 = vsel %vm1250, %v3147, %v3075
        %v3150 = vunpack.c.l.s4 1983009808
        %v3151 = vunpack.c.0.s8 %v3150
        %v3152 = vperm.slane %v3148, %v3151
        %v3153 = vrot.slane %v3152, 4
        %v3154 = vsel %vm1250, %v3153, %v3146
        %v3156 = vunpack.c.l.s4 1934713408
        %v3157 = vunpack.c.0.s8 %v3156
        %v3158 = vperm.slane %v3154, %v3157
        %v3159 = vrot.slane %v3158, 4
        %v3160 = vsel %vm1250, 0, %v3159
        %v3161 = vsel %vm1250, %v3102, %v3095
        %v3163 = vunpack.c.l.s4 1983009808
        %v3164 = vunpack.c.0.s8 %v3163
        %v3165 = vperm.slane %v3161, %v3164
        %v3166 = vrot.slane %v3103, 4
        %v3167 = vsel %vm1250, %v3166, %v3101
        %v3169 = vunpack.c.l.s4 1983009808
        %v3170 = vunpack.c.0.s8 %v3169
        %v3171 = vperm.slane %v3167, %v3170
        %v3172 = vrot.slane %v3171, 4
        %v3173 = vsel %vm1250, %v3172, %v3165
        %v3175 = vunpack.c.l.s4 1934713408
        %v3176 = vunpack.c.0.s8 %v3175
        %v3177 = vperm.slane %v3173, %v3176
        %v3178 = vrot.slane %v3177, 4
        %v3179 = vsel %vm1250, 0, %v3178
        %v3182 = vpack.i.b16 %v3139, %v3120
        %v3183 = vshrl.u32 %v3120, 16
        %v3184 = vshrl.u32 %v3139, 16
        %v3185 = vpack.i.b16 %v3184, %v3183
        %v3188 = vpack.i.b16 %v3141, %v3122
        %v3189 = vshrl.u32 %v3122, 16
        %v3190 = vshrl.u32 %v3141, 16
        %v3191 = vpack.i.b16 %v3190, %v3189
        %v3194 = vpack.i.b16 %v3177, %v3158
        %v3195 = vshrl.u32 %v3158, 16
        %v3196 = vshrl.u32 %v3177, 16
        %v3197 = vpack.i.b16 %v3196, %v3195
        %v3200 = vpack.i.b16 %v3179, %v3160
        %v3201 = vshrl.u32 %v3160, 16
        %v3202 = vshrl.u32 %v3179, 16
        %v3203 = vpack.i.b16 %v3202, %v3201
        %3204 = vrot.lane.b32.xlu0 %v2960, 96
        %v3205 = vpop.permute.xlu0 %3204
        %3206 = vrot.lane.b32.xlu0 %v2961, 96
        %v3207 = vpop.permute.xlu0 %3206
        %3208 = vrot.lane.b32.xlu0 %v2965, 96
        %v3209 = vpop.permute.xlu0 %3208
        %3210 = vrot.lane.b32.xlu0 %v2967, 96
        %v3211 = vpop.permute.xlu0 %3210
        %3212 = vrot.lane.b32.xlu0 %v2969, 96
        %v3213 = vpop.permute.xlu0 %3212
        %3214 = vrot.lane.b32.xlu0 %v2971, 96
        %v3215 = vpop.permute.xlu0 %3214
        %3216 = vrot.lane.b32.xlu0 %v2973, 96
        %v3217 = vpop.permute.xlu0 %3216
        %3218 = vrot.lane.b32.xlu0 %v2975, 96
        %v3219 = vpop.permute.xlu0 %3218
        %v3222 = vpack.i.b16 %v3209, %v3205
        %v3223 = vshrl.u32 %v3205, 16
        %v3224 = vshrl.u32 %v3209, 16
        %v3225 = vpack.i.b16 %v3224, %v3223
        %v3228 = vpack.i.b16 %v3217, %v3213
        %v3229 = vshrl.u32 %v3213, 16
        %v3230 = vshrl.u32 %v3217, 16
        %v3231 = vpack.i.b16 %v3230, %v3229
        %v3234 = vpack.i.b16 %v3211, %v3207
        %v3235 = vshrl.u32 %v3207, 16
        %v3236 = vshrl.u32 %v3211, 16
        %v3237 = vpack.i.b16 %v3236, %v3235
        %v3240 = vpack.i.b16 %v3219, %v3215
        %v3241 = vshrl.u32 %v3215, 16
        %v3242 = vshrl.u32 %v3219, 16
        %v3243 = vpack.i.b16 %v3242, %v3241
        %v3246 = vunpack.c.l.s4 1983009808
        %v3247 = vunpack.c.0.s8 %v3246
        %v3248 = vperm.slane %v3222, %v3247
        %v3251 = vunpack.c.l.s4 1983009808
        %v3252 = vunpack.c.0.s8 %v3251
        %v3253 = vperm.slane %v3228, %v3252
        %v3254 = vrot.slane %v3253, 4
        %v3255 = vsel %vm1250, %v3254, %v3248
        %v3256 = vrot.slane %v3248, 4
        %v3257 = vsel %vm1250, %v3253, %v3256
        %v3259 = vunpack.c.l.s4 1934713408
        %v3260 = vunpack.c.0.s8 %v3259
        %v3261 = vperm.slane %v3255, %v3260
        %v3263 = vunpack.c.l.s4 1934713408
        %v3264 = vunpack.c.0.s8 %v3263
        %v3265 = vperm.slane %v3257, %v3264
        %v3266 = vrot.slane %v3261, 4
        %v3267 = vsel %vm1250, 0, %v3266
        %v3268 = vrot.slane %v3265, 4
        %v3269 = vsel %vm1250, 0, %v3268
        %v3272 = vunpack.c.l.s4 1983009808
        %v3273 = vunpack.c.0.s8 %v3272
        %v3274 = vperm.slane %v3225, %v3273
        %v3277 = vunpack.c.l.s4 1983009808
        %v3278 = vunpack.c.0.s8 %v3277
        %v3279 = vperm.slane %v3231, %v3278
        %v3280 = vrot.slane %v3279, 4
        %v3281 = vsel %vm1250, %v3280, %v3274
        %v3282 = vrot.slane %v3274, 4
        %v3283 = vsel %vm1250, %v3279, %v3282
        %v3285 = vunpack.c.l.s4 1934713408
        %v3286 = vunpack.c.0.s8 %v3285
        %v3287 = vperm.slane %v3281, %v3286
        %v3289 = vunpack.c.l.s4 1934713408
        %v3290 = vunpack.c.0.s8 %v3289
        %v3291 = vperm.slane %v3283, %v3290
        %v3292 = vrot.slane %v3287, 4
        %v3293 = vsel %vm1250, 0, %v3292
        %v3294 = vrot.slane %v3291, 4
        %v3295 = vsel %vm1250, 0, %v3294
        %v3298 = vunpack.c.l.s4 1983009808
        %v3299 = vunpack.c.0.s8 %v3298
        %v3300 = vperm.slane %v3234, %v3299
        %v3303 = vunpack.c.l.s4 1983009808
        %v3304 = vunpack.c.0.s8 %v3303
        %v3305 = vperm.slane %v3240, %v3304
        %v3306 = vrot.slane %v3305, 4
        %v3307 = vsel %vm1250, %v3306, %v3300
        %v3308 = vrot.slane %v3300, 4
        %v3309 = vsel %vm1250, %v3305, %v3308
        %v3311 = vunpack.c.l.s4 1934713408
        %v3312 = vunpack.c.0.s8 %v3311
        %v3313 = vperm.slane %v3307, %v3312
        %v3315 = vunpack.c.l.s4 1934713408
        %v3316 = vunpack.c.0.s8 %v3315
        %v3317 = vperm.slane %v3309, %v3316
        %v3318 = vrot.slane %v3313, 4
        %v3319 = vsel %vm1250, 0, %v3318
        %v3320 = vrot.slane %v3317, 4
        %v3321 = vsel %vm1250, 0, %v3320
        %v3324 = vunpack.c.l.s4 1983009808
        %v3325 = vunpack.c.0.s8 %v3324
        %v3326 = vperm.slane %v3237, %v3325
        %v3329 = vunpack.c.l.s4 1983009808
        %v3330 = vunpack.c.0.s8 %v3329
        %v3331 = vperm.slane %v3243, %v3330
        %v3332 = vrot.slane %v3331, 4
        %v3333 = vsel %vm1250, %v3332, %v3326
        %v3334 = vrot.slane %v3326, 4
        %v3335 = vsel %vm1250, %v3331, %v3334
        %v3337 = vunpack.c.l.s4 1934713408
        %v3338 = vunpack.c.0.s8 %v3337
        %v3339 = vperm.slane %v3333, %v3338
        %v3341 = vunpack.c.l.s4 1934713408
        %v3342 = vunpack.c.0.s8 %v3341
        %v3343 = vperm.slane %v3335, %v3342
        %v3344 = vrot.slane %v3339, 4
        %v3345 = vsel %vm1250, 0, %v3344
        %v3346 = vrot.slane %v3343, 4
        %v3347 = vsel %vm1250, 0, %v3346
        %v3348 = vsel %vm1250, %v3268, %v3261
        %v3350 = vunpack.c.l.s4 1983009808
        %v3351 = vunpack.c.0.s8 %v3350
        %v3352 = vperm.slane %v3348, %v3351
        %v3353 = vrot.slane %v3269, 4
        %v3354 = vsel %vm1250, %v3353, %v3267
        %v3356 = vunpack.c.l.s4 1983009808
        %v3357 = vunpack.c.0.s8 %v3356
        %v3358 = vperm.slane %v3354, %v3357
        %v3359 = vrot.slane %v3358, 4
        %v3360 = vsel %vm1250, %v3359, %v3352
        %v3362 = vunpack.c.l.s4 1934713408
        %v3363 = vunpack.c.0.s8 %v3362
        %v3364 = vperm.slane %v3360, %v3363
        %v3365 = vrot.slane %v3364, 4
        %v3366 = vsel %vm1250, 0, %v3365
        %v3367 = vsel %vm1250, %v3294, %v3287
        %v3369 = vunpack.c.l.s4 1983009808
        %v3370 = vunpack.c.0.s8 %v3369
        %v3371 = vperm.slane %v3367, %v3370
        %v3372 = vrot.slane %v3295, 4
        %v3373 = vsel %vm1250, %v3372, %v3293
        %v3375 = vunpack.c.l.s4 1983009808
        %v3376 = vunpack.c.0.s8 %v3375
        %v3377 = vperm.slane %v3373, %v3376
        %v3378 = vrot.slane %v3377, 4
        %v3379 = vsel %vm1250, %v3378, %v3371
        %v3381 = vunpack.c.l.s4 1934713408
        %v3382 = vunpack.c.0.s8 %v3381
        %v3383 = vperm.slane %v3379, %v3382
        %v3384 = vrot.slane %v3383, 4
        %v3385 = vsel %vm1250, 0, %v3384
        %v3386 = vsel %vm1250, %v3320, %v3313
        %v3388 = vunpack.c.l.s4 1983009808
        %v3389 = vunpack.c.0.s8 %v3388
        %v3390 = vperm.slane %v3386, %v3389
        %v3391 = vrot.slane %v3321, 4
        %v3392 = vsel %vm1250, %v3391, %v3319
        %v3394 = vunpack.c.l.s4 1983009808
        %v3395 = vunpack.c.0.s8 %v3394
        %v3396 = vperm.slane %v3392, %v3395
        %v3397 = vrot.slane %v3396, 4
        %v3398 = vsel %vm1250, %v3397, %v3390
        %v3400 = vunpack.c.l.s4 1934713408
        %v3401 = vunpack.c.0.s8 %v3400
        %v3402 = vperm.slane %v3398, %v3401
        %v3403 = vrot.slane %v3402, 4
        %v3404 = vsel %vm1250, 0, %v3403
        %v3405 = vsel %vm1250, %v3346, %v3339
        %v3407 = vunpack.c.l.s4 1983009808
        %v3408 = vunpack.c.0.s8 %v3407
        %v3409 = vperm.slane %v3405, %v3408
        %v3410 = vrot.slane %v3347, 4
        %v3411 = vsel %vm1250, %v3410, %v3345
        %v3413 = vunpack.c.l.s4 1983009808
        %v3414 = vunpack.c.0.s8 %v3413
        %v3415 = vperm.slane %v3411, %v3414
        %v3416 = vrot.slane %v3415, 4
        %v3417 = vsel %vm1250, %v3416, %v3409
        %v3419 = vunpack.c.l.s4 1934713408
        %v3420 = vunpack.c.0.s8 %v3419
        %v3421 = vperm.slane %v3417, %v3420
        %v3422 = vrot.slane %v3421, 4
        %v3423 = vsel %vm1250, 0, %v3422
        %v3426 = vpack.i.b16 %v3383, %v3364
        %v3427 = vshrl.u32 %v3364, 16
        %v3428 = vshrl.u32 %v3383, 16
        %v3429 = vpack.i.b16 %v3428, %v3427
        %v3432 = vpack.i.b16 %v3385, %v3366
        %v3433 = vshrl.u32 %v3366, 16
        %v3434 = vshrl.u32 %v3385, 16
        %v3435 = vpack.i.b16 %v3434, %v3433
        %v3438 = vpack.i.b16 %v3421, %v3402
        %v3439 = vshrl.u32 %v3402, 16
        %v3440 = vshrl.u32 %v3421, 16
        %v3441 = vpack.i.b16 %v3440, %v3439
        %v3444 = vpack.i.b16 %v3423, %v3404
        %v3445 = vshrl.u32 %v3404, 16
        %v3446 = vshrl.u32 %v3423, 16
        %v3447 = vpack.i.b16 %v3446, %v3445
        %v3448 = vunpack.c.l.b16 %v3182
        %v3449 = vunpack.c.l.b16 %v3194
        %v3450 = vpack.c.b16 %v3449, %v3448
        %v3452 = vsel %vm1586, %v2950, 0
        %v3455 = vsel %vm1586, %v3450, 0
        %3457 = vmatpush.bf16.xpose.msra.mxu0 0
        %3458 = vmatpush.bf16.xpose.msra.mxu0 0
        %3459 = vmatpush.bf16.xpose.msra.mxu0 0
        %3460 = vmatpush.bf16.xpose.msra.mxu0 0
        %3461 = vmatpush.bf16.xpose.msra.mxu0 0
        %3462 = vmatpush.bf16.xpose.msra.mxu0 0
        %3463 = vmatpush.bf16.xpose.msra.mxu0 0
        %3464 = vmatpush.bf16.xpose.msra.mxu0 %v3455
        %3465 = vmatmul.bf16.gmra.mxu0 %v3452
        %v3466 = vpop.f32.mrf.mxu0
        %v3467 = vadd.f32 0.0, %v3466
        %v3468 = vpop.f32.mrf.mxu0
        %3469 = vdwg.mxu0
        %v3470 = vunpack.c.l.b16 %v3185
        %v3471 = vunpack.c.l.b16 %v3197
        %v3472 = vpack.c.b16 %v3471, %v3470
        %v3474 = vsel %vm1586, %v2953, 0
        %v3477 = vsel %vm1586, %v3472, 0
        %3479 = vmatpush.bf16.xpose.msra.mxu0 0
        %3480 = vmatpush.bf16.xpose.msra.mxu0 0
        %3481 = vmatpush.bf16.xpose.msra.mxu0 0
        %3482 = vmatpush.bf16.xpose.msra.mxu0 0
        %3483 = vmatpush.bf16.xpose.msra.mxu0 0
        %3484 = vmatpush.bf16.xpose.msra.mxu0 0
        %3485 = vmatpush.bf16.xpose.msra.mxu0 0
        %3486 = vmatpush.bf16.xpose.msra.mxu0 %v3477
        %3487 = vmatmul.bf16.gmra.mxu0 %v3474
        %v3488 = vpop.f32.mrf.mxu0
        %v3489 = vadd.f32 0.0, %v3488
        %v3490 = vpop.f32.mrf.mxu0
        %3491 = vdwg.mxu0
        %v3492 = vunpack.c.l.b16 %v3188
        %v3493 = vunpack.c.l.b16 %v3200
        %v3494 = vpack.c.b16 %v3493, %v3492
        %v3496 = vsel %vm1586, %v2956, 0
        %v3499 = vsel %vm1586, %v3494, 0
        %3501 = vmatpush.bf16.xpose.msra.mxu0 0
        %3502 = vmatpush.bf16.xpose.msra.mxu0 0
        %3503 = vmatpush.bf16.xpose.msra.mxu0 0
        %3504 = vmatpush.bf16.xpose.msra.mxu0 0
        %3505 = vmatpush.bf16.xpose.msra.mxu0 0
        %3506 = vmatpush.bf16.xpose.msra.mxu0 0
        %3507 = vmatpush.bf16.xpose.msra.mxu0 0
        %3508 = vmatpush.bf16.xpose.msra.mxu0 %v3499
        %3509 = vmatmul.bf16.gmra.mxu0 %v3496
        %v3510 = vpop.f32.mrf.mxu0
        %v3511 = vadd.f32 0.0, %v3510
        %v3512 = vpop.f32.mrf.mxu0
        %3513 = vdwg.mxu0
        %v3514 = vunpack.c.l.b16 %v3191
        %v3515 = vunpack.c.l.b16 %v3203
        %v3516 = vpack.c.b16 %v3515, %v3514
        %v3518 = vsel %vm1586, %v2959, 0
        %v3521 = vsel %vm1586, %v3516, 0
        %3523 = vmatpush.bf16.xpose.msra.mxu0 0
        %3524 = vmatpush.bf16.xpose.msra.mxu0 0
        %3525 = vmatpush.bf16.xpose.msra.mxu0 0
        %3526 = vmatpush.bf16.xpose.msra.mxu0 0
        %3527 = vmatpush.bf16.xpose.msra.mxu0 0
        %3528 = vmatpush.bf16.xpose.msra.mxu0 0
        %3529 = vmatpush.bf16.xpose.msra.mxu0 0
        %3530 = vmatpush.bf16.xpose.msra.mxu0 %v3521
        %3531 = vmatmul.bf16.gmra.mxu0 %v3518
        %v3532 = vpop.f32.mrf.mxu0
        %v3533 = vadd.f32 0.0, %v3532
        %v3534 = vpop.f32.mrf.mxu0
        %3535 = vdwg.mxu0
        %v3536 = vmul.f32 %v3467, 0.35355338
        %v3537 = vmul.f32 %v3489, 0.35355338
        %v3538 = vmul.f32 %v3511, 0.35355338
        %v3539 = vmul.f32 %v3533, 0.35355338
        %v3541 = vperm.slane %v2837, 0
        %v3543 = vadd.f32 %v3536, %v3541
        %v3544 = vadd.f32 %v3537, %v3541
        %v3545 = vadd.f32 %v3538, %v3541
        %v3546 = vadd.f32 %v3539, %v3541
        %v3547 = vsel %vm1923, %v3543, -inf
        %3548 = vmax.xlane.f32.xlu0 %v3547
        %v3549 = vpop.xlane.xlu0 %3548
        %v3550 = vsel %vm1923, %v3544, -inf
        %3551 = vmax.xlane.f32.xlu0 %v3550
        %v3552 = vpop.xlane.xlu0 %3551
        %v3553 = vsel %vm1923, %v3545, -inf
        %3554 = vmax.xlane.f32.xlu0 %v3553
        %v3555 = vpop.xlane.xlu0 %3554
        %v3556 = vsel %vm1923, %v3546, -inf
        %3557 = vmax.xlane.f32.xlu0 %v3556
        %v3558 = vpop.xlane.xlu0 %3557
        %v3559 = vsub.f32 %v3543, %v3549
        %v3560 = vsub.f32 %v3544, %v3552
        %v3561 = vsub.f32 %v3545, %v3555
        %v3562 = vsub.f32 %v3546, %v3558
        %v3563 = vmul.f32 %v3559, 1.442695
        %v3564 = vpow.pop %v3563
        %v3565 = vmul.f32 %v3560, 1.442695
        %v3566 = vpow.pop %v3565
        %v3567 = vmul.f32 %v3561, 1.442695
        %v3568 = vpow.pop %v3567
        %v3569 = vmul.f32 %v3562, 1.442695
        %v3570 = vpow.pop %v3569
        %v3571 = vsel %vm1923, %v3564, 0.0
        %3572 = vadd.xlane.f32.xlu0 %v3571
        %v3573 = vpop.xlane.xlu0 %3572
        %v3574 = vsel %vm1923, %v3566, 0.0
        %3575 = vadd.xlane.f32.xlu0 %v3574
        %v3576 = vpop.xlane.xlu0 %3575
        %v3577 = vsel %vm1923, %v3568, 0.0
        %3578 = vadd.xlane.f32.xlu0 %v3577
        %v3579 = vpop.xlane.xlu0 %3578
        %v3580 = vsel %vm1923, %v3570, 0.0
        %3581 = vadd.xlane.f32.xlu0 %v3580
        %v3582 = vpop.xlane.xlu0 %3581
        %v3583 = vrcp.pop %v3573
        %v3584 = vrcp.pop %v3576
        %v3585 = vrcp.pop %v3579
        %v3586 = vrcp.pop %v3582
        %v3587 = vmul.f32 %v3564, %v3583
        %v3588 = vmul.f32 %v3566, %v3584
        %v3589 = vmul.f32 %v3568, %v3585
        %v3590 = vmul.f32 %v3570, %v3586
        %v3591 = vpack.c.bf16 %v3587, %v3587
        %v3592 = vpack.c.bf16 %v3588, %v3588
        %v3593 = vpack.c.bf16 %v3589, %v3589
        %v3594 = vpack.c.bf16 %v3590, %v3590
        %v3595 = vunpack.c.l.b16 %v3426
        %v3596 = vunpack.c.l.b16 %v3438
        %v3597 = vpack.c.b16 %v3596, %v3595
        %v3600 = vsel %vm1923, %v3591, 0
        %3602 = vmatpush.bf16.msra.mxu0 0
        %3603 = vmatpush.bf16.msra.mxu0 0
        %3604 = vmatpush.bf16.msra.mxu0 0
        %3605 = vmatpush.bf16.msra.mxu0 0
        %3606 = vmatpush.bf16.msra.mxu0 0
        %3607 = vmatpush.bf16.msra.mxu0 0
        %3608 = vmatpush.bf16.msra.mxu0 0
        %3609 = vmatpush.bf16.msra.mxu0 %v3597
        %3610 = vmatmul.bf16.gmra.mxu0 %v3600
        %v3611 = vpop.f32.mrf.mxu0
        %v3612 = vadd.f32 0.0, %v3611
        %v3613 = vpop.f32.mrf.mxu0
        %3614 = vdwg.mxu0
        %v3615 = vunpack.c.l.b16 %v3429
        %v3616 = vunpack.c.l.b16 %v3441
        %v3617 = vpack.c.b16 %v3616, %v3615
        %v3620 = vsel %vm1923, %v3592, 0
        %3622 = vmatpush.bf16.msra.mxu0 0
        %3623 = vmatpush.bf16.msra.mxu0 0
        %3624 = vmatpush.bf16.msra.mxu0 0
        %3625 = vmatpush.bf16.msra.mxu0 0
        %3626 = vmatpush.bf16.msra.mxu0 0
        %3627 = vmatpush.bf16.msra.mxu0 0
        %3628 = vmatpush.bf16.msra.mxu0 0
        %3629 = vmatpush.bf16.msra.mxu0 %v3617
        %3630 = vmatmul.bf16.gmra.mxu0 %v3620
        %v3631 = vpop.f32.mrf.mxu0
        %v3632 = vadd.f32 0.0, %v3631
        %v3633 = vpop.f32.mrf.mxu0
        %3634 = vdwg.mxu0
        %v3635 = vunpack.c.l.b16 %v3432
        %v3636 = vunpack.c.l.b16 %v3444
        %v3637 = vpack.c.b16 %v3636, %v3635
        %v3640 = vsel %vm1923, %v3593, 0
        %3642 = vmatpush.bf16.msra.mxu0 0
        %3643 = vmatpush.bf16.msra.mxu0 0
        %3644 = vmatpush.bf16.msra.mxu0 0
        %3645 = vmatpush.bf16.msra.mxu0 0
        %3646 = vmatpush.bf16.msra.mxu0 0
        %3647 = vmatpush.bf16.msra.mxu0 0
        %3648 = vmatpush.bf16.msra.mxu0 0
        %3649 = vmatpush.bf16.msra.mxu0 %v3637
        %3650 = vmatmul.bf16.gmra.mxu0 %v3640
        %v3651 = vpop.f32.mrf.mxu0
        %v3652 = vadd.f32 0.0, %v3651
        %v3653 = vpop.f32.mrf.mxu0
        %3654 = vdwg.mxu0
        %v3655 = vunpack.c.l.b16 %v3435
        %v3656 = vunpack.c.l.b16 %v3447
        %v3657 = vpack.c.b16 %v3656, %v3655
        %v3660 = vsel %vm1923, %v3594, 0
        %3662 = vmatpush.bf16.msra.mxu0 0
        %3663 = vmatpush.bf16.msra.mxu0 0
        %3664 = vmatpush.bf16.msra.mxu0 0
        %3665 = vmatpush.bf16.msra.mxu0 0
        %3666 = vmatpush.bf16.msra.mxu0 0
        %3667 = vmatpush.bf16.msra.mxu0 0
        %3668 = vmatpush.bf16.msra.mxu0 0
        %3669 = vmatpush.bf16.msra.mxu0 %v3657
        %3670 = vmatmul.bf16.gmra.mxu0 %v3660
        %v3671 = vpop.f32.mrf.mxu0
        %v3672 = vadd.f32 0.0, %v3671
        %v3673 = vpop.f32.mrf.mxu0
        %3674 = vdwg.mxu0
        %v3675 = vrot.slane %v3652, 4
        %v3676 = vsel %vm1800, %v3675, %v3612
        %v3677 = vrot.slane %v3612, 4
        %v3678 = vsel %vm1800, %v3652, %v3677
        %v3680 = vunpack.c.l.s4 1983009808
        %v3681 = vunpack.c.0.s8 %v3680
        %v3682 = vperm.slane %v3676, %v3681
        %v3684 = vunpack.c.l.s4 1983009808
        %v3685 = vunpack.c.0.s8 %v3684
        %v3686 = vperm.slane %v3678, %v3685
        %v3687 = vrot.slane %v3672, 4
        %v3688 = vsel %vm1800, %v3687, %v3632
        %v3689 = vrot.slane %v3632, 4
        %v3690 = vsel %vm1800, %v3672, %v3689
        %v3692 = vunpack.c.l.s4 1983009808
        %v3693 = vunpack.c.0.s8 %v3692
        %v3694 = vperm.slane %v3688, %v3693
        %v3696 = vunpack.c.l.s4 1983009808
        %v3697 = vunpack.c.0.s8 %v3696
        %v3698 = vperm.slane %v3690, %v3697
        %v3699 = vrot.slane %v3694, 4
        %v3700 = vsel %vm1800, %v3699, %v3682
        %v3701 = vrot.slane %v3682, 4
        %v3702 = vsel %vm1800, %v3694, %v3701
        %v3704 = vunpack.c.l.s4 1934713408
        %v3705 = vunpack.c.0.s8 %v3704
        %v3706 = vperm.slane %v3700, %v3705
        %v3708 = vunpack.c.l.s4 1934713408
        %v3709 = vunpack.c.0.s8 %v3708
        %v3710 = vperm.slane %v3702, %v3709
        %v3711 = vrot.slane %v3698, 4
        %v3712 = vsel %vm1800, %v3711, %v3686
        %v3713 = vrot.slane %v3686, 4
        %v3714 = vsel %vm1800, %v3698, %v3713
        %v3716 = vunpack.c.l.s4 1934713408
        %v3717 = vunpack.c.0.s8 %v3716
        %v3718 = vperm.slane %v3712, %v3717
        %v3720 = vunpack.c.l.s4 1934713408
        %v3721 = vunpack.c.0.s8 %v3720
        %v3722 = vperm.slane %v3714, %v3721
        %v3723 = vrot.slane %v3706, 4
        %v3724 = vsel %vm1800, 0.0, %v3723
        %v3725 = vrot.slane %v3710, 4
        %v3726 = vsel %vm1800, 0.0, %v3725
        %v3727 = vrot.slane %v3718, 4
        %v3728 = vsel %vm1800, 0.0, %v3727
        %v3729 = vrot.slane %v3722, 4
        %v3730 = vsel %vm1800, 0.0, %v3729
        %v3731 = vsel %vm1800, %v3725, %v3706
        %v3733 = vunpack.c.l.s4 1983009808
        %v3734 = vunpack.c.0.s8 %v3733
        %v3735 = vperm.slane %v3731, %v3734
        %v3736 = vrot.slane %v3726, 4
        %v3737 = vsel %vm1800, %v3736, %v3724
        %v3739 = vunpack.c.l.s4 1983009808
        %v3740 = vunpack.c.0.s8 %v3739
        %v3741 = vperm.slane %v3737, %v3740
        %v3742 = vsel %vm1800, %v3729, %v3718
        %v3744 = vunpack.c.l.s4 1983009808
        %v3745 = vunpack.c.0.s8 %v3744
        %v3746 = vperm.slane %v3742, %v3745
        %v3747 = vrot.slane %v3730, 4
        %v3748 = vsel %vm1800, %v3747, %v3728
        %v3750 = vunpack.c.l.s4 1983009808
        %v3751 = vunpack.c.0.s8 %v3750
        %v3752 = vperm.slane %v3748, %v3751
        %v3753 = vrot.slane %v3741, 4
        %v3754 = vsel %vm1800, %v3753, %v3735
        %v3755 = vrot.slane %v3735, 4
        %v3756 = vsel %vm1800, %v3741, %v3755
        %v3758 = vunpack.c.l.s4 1934713408
        %v3759 = vunpack.c.0.s8 %v3758
        %v3760 = vperm.slane %v3754, %v3759
        %v3762 = vunpack.c.l.s4 1934713408
        %v3763 = vunpack.c.0.s8 %v3762
        %v3764 = vperm.slane %v3756, %v3763
        %v3765 = vrot.slane %v3752, 4
        %v3766 = vsel %vm1800, %v3765, %v3746
        %v3767 = vrot.slane %v3746, 4
        %v3768 = vsel %vm1800, %v3752, %v3767
        %v3770 = vunpack.c.l.s4 1934713408
        %v3771 = vunpack.c.0.s8 %v3770
        %v3772 = vperm.slane %v3766, %v3771
        %v3774 = vunpack.c.l.s4 1934713408
        %v3775 = vunpack.c.0.s8 %v3774
        %v3776 = vperm.slane %v3768, %v3775
        %v3777 = vrot.slane %v3772, 4
        %v3778 = vsel %vm1800, %v3777, %v3760
        %v3779 = vrot.slane %v3760, 4
        %v3780 = vsel %vm1800, %v3772, %v3779
        %v3781 = vrot.slane %v3776, 4
        %v3782 = vsel %vm1800, %v3781, %v3764
        %v3783 = vrot.slane %v3764, 4
        %v3784 = vsel %vm1800, %v3776, %v3783
        %3786 = vrot.lane.b32.xlu0 %v3780, 8
        %v3787 = vpop.permute.xlu0 %3786
        %3790 = vrot.lane.b32.xlu0 %v3782, 16
        %v3791 = vpop.permute.xlu0 %3790
        %3794 = vrot.lane.b32.xlu0 %v3784, 24
        %v3795 = vpop.permute.xlu0 %3794
        %v3797 = vsel %vm1586, %v3778, %v3787
        %v3798 = vsel %vm1923, %v3797, %v3791
        %v3799 = vsel %vm1925, %v3798, %v3795
        %vm3800 = vcmask 125952
        %3801 = vst.msk [vmem:[#allocation8] sm:$0xf] %vm3800, %v3591
        %3802 = vst.msk [vmem:[#allocation8 + $0x4] sm:$0xf] %vm3800, %v3592
        %3803 = vst.msk [vmem:[#allocation8 + $0x8] sm:$0xf] %vm3800, %v3593
        %3804 = vst.msk [vmem:[#allocation8 + $0xc] sm:$0xf] %vm3800, %v3594
        %s3805 = scalar_lea.vmem %s1095, 1
        %v3806 = vld [vmem:[%s3805] sm:$0x1]
        %v3807 = vpack.c.bf16 %v2780, %v2780
        %3809 = vrot.lane.b32.xlu0 %v3807, 120
        %v3810 = vpop.permute.xlu0 %3809
        %3811 = vrot.lane.b32.xlu0 %v3807, 112
        %v3812 = vpop.permute.xlu0 %3811
        %3813 = vrot.lane.b32.xlu0 %v3807, 104
        %v3814 = vpop.permute.xlu0 %3813
        %v3817 = vpack.i.b16 %v3810, %v3807
        %v3818 = vshrl.u32 %v3807, 16
        %v3819 = vshrl.u32 %v3810, 16
        %v3820 = vpack.i.b16 %v3819, %v3818
        %v3823 = vpack.i.b16 %v3814, %v3812
        %v3824 = vshrl.u32 %v3812, 16
        %v3825 = vshrl.u32 %v3814, 16
        %v3826 = vpack.i.b16 %v3825, %v3824
        %v3829 = vunpack.c.l.s4 1983009808
        %v3830 = vunpack.c.0.s8 %v3829
        %v3831 = vperm.slane %v3817, %v3830
        %v3834 = vunpack.c.l.s4 1983009808
        %v3835 = vunpack.c.0.s8 %v3834
        %v3836 = vperm.slane %v3823, %v3835
        %v3837 = vrot.slane %v3836, 4
        %v3838 = vsel %vm1250, %v3837, %v3831
        %v3839 = vrot.slane %v3831, 4
        %v3840 = vsel %vm1250, %v3836, %v3839
        %v3842 = vunpack.c.l.s4 1934713408
        %v3843 = vunpack.c.0.s8 %v3842
        %v3844 = vperm.slane %v3838, %v3843
        %v3846 = vunpack.c.l.s4 1934713408
        %v3847 = vunpack.c.0.s8 %v3846
        %v3848 = vperm.slane %v3840, %v3847
        %v3849 = vrot.slane %v3844, 4
        %v3850 = vsel %vm1250, 0, %v3849
        %v3851 = vrot.slane %v3848, 4
        %v3852 = vsel %vm1250, 0, %v3851
        %v3855 = vunpack.c.l.s4 1983009808
        %v3856 = vunpack.c.0.s8 %v3855
        %v3857 = vperm.slane %v3820, %v3856
        %v3860 = vunpack.c.l.s4 1983009808
        %v3861 = vunpack.c.0.s8 %v3860
        %v3862 = vperm.slane %v3826, %v3861
        %v3863 = vrot.slane %v3862, 4
        %v3864 = vsel %vm1250, %v3863, %v3857
        %v3865 = vrot.slane %v3857, 4
        %v3866 = vsel %vm1250, %v3862, %v3865
        %v3868 = vunpack.c.l.s4 1934713408
        %v3869 = vunpack.c.0.s8 %v3868
        %v3870 = vperm.slane %v3864, %v3869
        %v3872 = vunpack.c.l.s4 1934713408
        %v3873 = vunpack.c.0.s8 %v3872
        %v3874 = vperm.slane %v3866, %v3873
        %v3875 = vrot.slane %v3870, 4
        %v3876 = vsel %vm1250, 0, %v3875
        %v3877 = vrot.slane %v3874, 4
        %v3878 = vsel %vm1250, 0, %v3877
        %v3879 = vsel %vm1250, %v3851, %v3844
        %v3881 = vunpack.c.l.s4 1983009808
        %v3882 = vunpack.c.0.s8 %v3881
        %v3883 = vperm.slane %v3879, %v3882
        %v3884 = vrot.slane %v3852, 4
        %v3885 = vsel %vm1250, %v3884, %v3850
        %v3887 = vunpack.c.l.s4 1983009808
        %v3888 = vunpack.c.0.s8 %v3887
        %v3889 = vperm.slane %v3885, %v3888
        %v3890 = vrot.slane %v3889, 4
        %v3891 = vsel %vm1250, %v3890, %v3883
        %v3893 = vunpack.c.l.s4 1934713408
        %v3894 = vunpack.c.0.s8 %v3893
        %v3895 = vperm.slane %v3891, %v3894
        %v3896 = vrot.slane %v3895, 4
        %v3897 = vsel %vm1250, 0, %v3896
        %v3898 = vsel %vm1250, %v3877, %v3870
        %v3900 = vunpack.c.l.s4 1983009808
        %v3901 = vunpack.c.0.s8 %v3900
        %v3902 = vperm.slane %v3898, %v3901
        %v3903 = vrot.slane %v3878, 4
        %v3904 = vsel %vm1250, %v3903, %v3876
        %v3906 = vunpack.c.l.s4 1983009808
        %v3907 = vunpack.c.0.s8 %v3906
        %v3908 = vperm.slane %v3904, %v3907
        %v3909 = vrot.slane %v3908, 4
        %v3910 = vsel %vm1250, %v3909, %v3902
        %v3912 = vunpack.c.l.s4 1934713408
        %v3913 = vunpack.c.0.s8 %v3912
        %v3914 = vperm.slane %v3910, %v3913
        %v3915 = vrot.slane %v3914, 4
        %v3916 = vsel %vm1250, 0, %v3915
        %v3919 = vpack.i.b16 %v3914, %v3895
        %v3920 = vshrl.u32 %v3895, 16
        %v3921 = vshrl.u32 %v3914, 16
        %v3922 = vpack.i.b16 %v3921, %v3920
        %v3925 = vpack.i.b16 %v3916, %v3897
        %v3926 = vshrl.u32 %v3897, 16
        %v3927 = vshrl.u32 %v3916, 16
        %v3928 = vpack.i.b16 %v3927, %v3926
        %v3929 = vpack.c.bf16 %v2833, %v2833
        %v3930 = vpack.c.bf16 %v2835, %v2835
        %3933 = vrot.lane.b32.xlu0 %v3929, 120
        %v3934 = vpop.permute.xlu0 %3933
        %3935 = vrot.lane.b32.xlu0 %v3930, 120
        %v3936 = vpop.permute.xlu0 %3935
        %3937 = vrot.lane.b32.xlu0 %v3929, 112
        %v3938 = vpop.permute.xlu0 %3937
        %3939 = vrot.lane.b32.xlu0 %v3930, 112
        %v3940 = vpop.permute.xlu0 %3939
        %3941 = vrot.lane.b32.xlu0 %v3929, 104
        %v3942 = vpop.permute.xlu0 %3941
        %3943 = vrot.lane.b32.xlu0 %v3930, 104
        %v3944 = vpop.permute.xlu0 %3943
        %v3947 = vpack.i.b16 %v3934, %v3929
        %v3948 = vshrl.u32 %v3929, 16
        %v3949 = vshrl.u32 %v3934, 16
        %v3950 = vpack.i.b16 %v3949, %v3948
        %v3953 = vpack.i.b16 %v3942, %v3938
        %v3954 = vshrl.u32 %v3938, 16
        %v3955 = vshrl.u32 %v3942, 16
        %v3956 = vpack.i.b16 %v3955, %v3954
        %v3959 = vpack.i.b16 %v3936, %v3930
        %v3960 = vshrl.u32 %v3930, 16
        %v3961 = vshrl.u32 %v3936, 16
        %v3962 = vpack.i.b16 %v3961, %v3960
        %v3965 = vpack.i.b16 %v3944, %v3940
        %v3966 = vshrl.u32 %v3940, 16
        %v3967 = vshrl.u32 %v3944, 16
        %v3968 = vpack.i.b16 %v3967, %v3966
        %v3971 = vunpack.c.l.s4 1983009808
        %v3972 = vunpack.c.0.s8 %v3971
        %v3973 = vperm.slane %v3947, %v3972
        %v3976 = vunpack.c.l.s4 1983009808
        %v3977 = vunpack.c.0.s8 %v3976
        %v3978 = vperm.slane %v3953, %v3977
        %v3979 = vrot.slane %v3978, 4
        %v3980 = vsel %vm1250, %v3979, %v3973
        %v3981 = vrot.slane %v3973, 4
        %v3982 = vsel %vm1250, %v3978, %v3981
        %v3984 = vunpack.c.l.s4 1934713408
        %v3985 = vunpack.c.0.s8 %v3984
        %v3986 = vperm.slane %v3980, %v3985
        %v3988 = vunpack.c.l.s4 1934713408
        %v3989 = vunpack.c.0.s8 %v3988
        %v3990 = vperm.slane %v3982, %v3989
        %v3991 = vrot.slane %v3986, 4
        %v3992 = vsel %vm1250, 0, %v3991
        %v3993 = vrot.slane %v3990, 4
        %v3994 = vsel %vm1250, 0, %v3993
        %v3997 = vunpack.c.l.s4 1983009808
        %v3998 = vunpack.c.0.s8 %v3997
        %v3999 = vperm.slane %v3950, %v3998
        %v4002 = vunpack.c.l.s4 1983009808
        %v4003 = vunpack.c.0.s8 %v4002
        %v4004 = vperm.slane %v3956, %v4003
        %v4005 = vrot.slane %v4004, 4
        %v4006 = vsel %vm1250, %v4005, %v3999
        %v4007 = vrot.slane %v3999, 4
        %v4008 = vsel %vm1250, %v4004, %v4007
        %v4010 = vunpack.c.l.s4 1934713408
        %v4011 = vunpack.c.0.s8 %v4010
        %v4012 = vperm.slane %v4006, %v4011
        %v4014 = vunpack.c.l.s4 1934713408
        %v4015 = vunpack.c.0.s8 %v4014
        %v4016 = vperm.slane %v4008, %v4015
        %v4017 = vrot.slane %v4012, 4
        %v4018 = vsel %vm1250, 0, %v4017
        %v4019 = vrot.slane %v4016, 4
        %v4020 = vsel %vm1250, 0, %v4019
        %v4023 = vunpack.c.l.s4 1983009808
        %v4024 = vunpack.c.0.s8 %v4023
        %v4025 = vperm.slane %v3959, %v4024
        %v4028 = vunpack.c.l.s4 1983009808
        %v4029 = vunpack.c.0.s8 %v4028
        %v4030 = vperm.slane %v3965, %v4029
        %v4031 = vrot.slane %v4030, 4
        %v4032 = vsel %vm1250, %v4031, %v4025
        %v4033 = vrot.slane %v4025, 4
        %v4034 = vsel %vm1250, %v4030, %v4033
        %v4036 = vunpack.c.l.s4 1934713408
        %v4037 = vunpack.c.0.s8 %v4036
        %v4038 = vperm.slane %v4032, %v4037
        %v4040 = vunpack.c.l.s4 1934713408
        %v4041 = vunpack.c.0.s8 %v4040
        %v4042 = vperm.slane %v4034, %v4041
        %v4043 = vrot.slane %v4038, 4
        %v4044 = vsel %vm1250, 0, %v4043
        %v4045 = vrot.slane %v4042, 4
        %v4046 = vsel %vm1250, 0, %v4045
        %v4049 = vunpack.c.l.s4 1983009808
        %v4050 = vunpack.c.0.s8 %v4049
        %v4051 = vperm.slane %v3962, %v4050
        %v4054 = vunpack.c.l.s4 1983009808
        %v4055 = vunpack.c.0.s8 %v4054
        %v4056 = vperm.slane %v3968, %v4055
        %v4057 = vrot.slane %v4056, 4
        %v4058 = vsel %vm1250, %v4057, %v4051
        %v4059 = vrot.slane %v4051, 4
        %v4060 = vsel %vm1250, %v4056, %v4059
        %v4062 = vunpack.c.l.s4 1934713408
        %v4063 = vunpack.c.0.s8 %v4062
        %v4064 = vperm.slane %v4058, %v4063
        %v4066 = vunpack.c.l.s4 1934713408
        %v4067 = vunpack.c.0.s8 %v4066
        %v4068 = vperm.slane %v4060, %v4067
        %v4069 = vrot.slane %v4064, 4
        %v4070 = vsel %vm1250, 0, %v4069
        %v4071 = vrot.slane %v4068, 4
        %v4072 = vsel %vm1250, 0, %v4071
        %v4073 = vsel %vm1250, %v3993, %v3986
        %v4075 = vunpack.c.l.s4 1983009808
        %v4076 = vunpack.c.0.s8 %v4075
        %v4077 = vperm.slane %v4073, %v4076
        %v4078 = vrot.slane %v3994, 4
        %v4079 = vsel %vm1250, %v4078, %v3992
        %v4081 = vunpack.c.l.s4 1983009808
        %v4082 = vunpack.c.0.s8 %v4081
        %v4083 = vperm.slane %v4079, %v4082
        %v4084 = vrot.slane %v4083, 4
        %v4085 = vsel %vm1250, %v4084, %v4077
        %v4087 = vunpack.c.l.s4 1934713408
        %v4088 = vunpack.c.0.s8 %v4087
        %v4089 = vperm.slane %v4085, %v4088
        %v4090 = vrot.slane %v4089, 4
        %v4091 = vsel %vm1250, 0, %v4090
        %v4092 = vsel %vm1250, %v4019, %v4012
        %v4094 = vunpack.c.l.s4 1983009808
        %v4095 = vunpack.c.0.s8 %v4094
        %v4096 = vperm.slane %v4092, %v4095
        %v4097 = vrot.slane %v4020, 4
        %v4098 = vsel %vm1250, %v4097, %v4018
        %v4100 = vunpack.c.l.s4 1983009808
        %v4101 = vunpack.c.0.s8 %v4100
        %v4102 = vperm.slane %v4098, %v4101
        %v4103 = vrot.slane %v4102, 4
        %v4104 = vsel %vm1250, %v4103, %v4096
        %v4106 = vunpack.c.l.s4 1934713408
        %v4107 = vunpack.c.0.s8 %v4106
        %v4108 = vperm.slane %v4104, %v4107
        %v4109 = vrot.slane %v4108, 4
        %v4110 = vsel %vm1250, 0, %v4109
        %v4111 = vsel %vm1250, %v4045, %v4038
        %v4113 = vunpack.c.l.s4 1983009808
        %v4114 = vunpack.c.0.s8 %v4113
        %v4115 = vperm.slane %v4111, %v4114
        %v4116 = vrot.slane %v4046, 4
        %v4117 = vsel %vm1250, %v4116, %v4044
        %v4119 = vunpack.c.l.s4 1983009808
        %v4120 = vunpack.c.0.s8 %v4119
        %v4121 = vperm.slane %v4117, %v4120
        %v4122 = vrot.slane %v4121, 4
        %v4123 = vsel %vm1250, %v4122, %v4115
        %v4125 = vunpack.c.l.s4 1934713408
        %v4126 = vunpack.c.0.s8 %v4125
        %v4127 = vperm.slane %v4123, %v4126
        %v4128 = vrot.slane %v4127, 4
        %v4129 = vsel %vm1250, 0, %v4128
        %v4130 = vsel %vm1250, %v4071, %v4064
        %v4132 = vunpack.c.l.s4 1983009808
        %v4133 = vunpack.c.0.s8 %v4132
        %v4134 = vperm.slane %v4130, %v4133
        %v4135 = vrot.slane %v4072, 4
        %v4136 = vsel %vm1250, %v4135, %v4070
        %v4138 = vunpack.c.l.s4 1983009808
        %v4139 = vunpack.c.0.s8 %v4138
        %v4140 = vperm.slane %v4136, %v4139
        %v4141 = vrot.slane %v4140, 4
        %v4142 = vsel %vm1250, %v4141, %v4134
        %v4144 = vunpack.c.l.s4 1934713408
        %v4145 = vunpack.c.0.s8 %v4144
        %v4146 = vperm.slane %v4142, %v4145
        %v4147 = vrot.slane %v4146, 4
        %v4148 = vsel %vm1250, 0, %v4147
        %v4151 = vpack.i.b16 %v4108, %v4089
        %v4152 = vshrl.u32 %v4089, 16
        %v4153 = vshrl.u32 %v4108, 16
        %v4154 = vpack.i.b16 %v4153, %v4152
        %v4157 = vpack.i.b16 %v4110, %v4091
        %v4158 = vshrl.u32 %v4091, 16
        %v4159 = vshrl.u32 %v4110, 16
        %v4160 = vpack.i.b16 %v4159, %v4158
        %v4163 = vpack.i.b16 %v4146, %v4127
        %v4164 = vshrl.u32 %v4127, 16
        %v4165 = vshrl.u32 %v4146, 16
        %v4166 = vpack.i.b16 %v4165, %v4164
        %v4169 = vpack.i.b16 %v4148, %v4129
        %v4170 = vshrl.u32 %v4129, 16
        %v4171 = vshrl.u32 %v4148, 16
        %v4172 = vpack.i.b16 %v4171, %v4170
        %4173 = vrot.lane.b32.xlu0 %v3929, 96
        %v4174 = vpop.permute.xlu0 %4173
        %4175 = vrot.lane.b32.xlu0 %v3930, 96
        %v4176 = vpop.permute.xlu0 %4175
        %4177 = vrot.lane.b32.xlu0 %v3934, 96
        %v4178 = vpop.permute.xlu0 %4177
        %4179 = vrot.lane.b32.xlu0 %v3936, 96
        %v4180 = vpop.permute.xlu0 %4179
        %4181 = vrot.lane.b32.xlu0 %v3938, 96
        %v4182 = vpop.permute.xlu0 %4181
        %4183 = vrot.lane.b32.xlu0 %v3940, 96
        %v4184 = vpop.permute.xlu0 %4183
        %4185 = vrot.lane.b32.xlu0 %v3942, 96
        %v4186 = vpop.permute.xlu0 %4185
        %4187 = vrot.lane.b32.xlu0 %v3944, 96
        %v4188 = vpop.permute.xlu0 %4187
        %v4191 = vpack.i.b16 %v4178, %v4174
        %v4192 = vshrl.u32 %v4174, 16
        %v4193 = vshrl.u32 %v4178, 16
        %v4194 = vpack.i.b16 %v4193, %v4192
        %v4197 = vpack.i.b16 %v4186, %v4182
        %v4198 = vshrl.u32 %v4182, 16
        %v4199 = vshrl.u32 %v4186, 16
        %v4200 = vpack.i.b16 %v4199, %v4198
        %v4203 = vpack.i.b16 %v4180, %v4176
        %v4204 = vshrl.u32 %v4176, 16
        %v4205 = vshrl.u32 %v4180, 16
        %v4206 = vpack.i.b16 %v4205, %v4204
        %v4209 = vpack.i.b16 %v4188, %v4184
        %v4210 = vshrl.u32 %v4184, 16
        %v4211 = vshrl.u32 %v4188, 16
        %v4212 = vpack.i.b16 %v4211, %v4210
        %v4215 = vunpack.c.l.s4 1983009808
        %v4216 = vunpack.c.0.s8 %v4215
        %v4217 = vperm.slane %v4191, %v4216
        %v4220 = vunpack.c.l.s4 1983009808
        %v4221 = vunpack.c.0.s8 %v4220
        %v4222 = vperm.slane %v4197, %v4221
        %v4223 = vrot.slane %v4222, 4
        %v4224 = vsel %vm1250, %v4223, %v4217
        %v4225 = vrot.slane %v4217, 4
        %v4226 = vsel %vm1250, %v4222, %v4225
        %v4228 = vunpack.c.l.s4 1934713408
        %v4229 = vunpack.c.0.s8 %v4228
        %v4230 = vperm.slane %v4224, %v4229
        %v4232 = vunpack.c.l.s4 1934713408
        %v4233 = vunpack.c.0.s8 %v4232
        %v4234 = vperm.slane %v4226, %v4233
        %v4235 = vrot.slane %v4230, 4
        %v4236 = vsel %vm1250, 0, %v4235
        %v4237 = vrot.slane %v4234, 4
        %v4238 = vsel %vm1250, 0, %v4237
        %v4241 = vunpack.c.l.s4 1983009808
        %v4242 = vunpack.c.0.s8 %v4241
        %v4243 = vperm.slane %v4194, %v4242
        %v4246 = vunpack.c.l.s4 1983009808
        %v4247 = vunpack.c.0.s8 %v4246
        %v4248 = vperm.slane %v4200, %v4247
        %v4249 = vrot.slane %v4248, 4
        %v4250 = vsel %vm1250, %v4249, %v4243
        %v4251 = vrot.slane %v4243, 4
        %v4252 = vsel %vm1250, %v4248, %v4251
        %v4254 = vunpack.c.l.s4 1934713408
        %v4255 = vunpack.c.0.s8 %v4254
        %v4256 = vperm.slane %v4250, %v4255
        %v4258 = vunpack.c.l.s4 1934713408
        %v4259 = vunpack.c.0.s8 %v4258
        %v4260 = vperm.slane %v4252, %v4259
        %v4261 = vrot.slane %v4256, 4
        %v4262 = vsel %vm1250, 0, %v4261
        %v4263 = vrot.slane %v4260, 4
        %v4264 = vsel %vm1250, 0, %v4263
        %v4267 = vunpack.c.l.s4 1983009808
        %v4268 = vunpack.c.0.s8 %v4267
        %v4269 = vperm.slane %v4203, %v4268
        %v4272 = vunpack.c.l.s4 1983009808
        %v4273 = vunpack.c.0.s8 %v4272
        %v4274 = vperm.slane %v4209, %v4273
        %v4275 = vrot.slane %v4274, 4
        %v4276 = vsel %vm1250, %v4275, %v4269
        %v4277 = vrot.slane %v4269, 4
        %v4278 = vsel %vm1250, %v4274, %v4277
        %v4280 = vunpack.c.l.s4 1934713408
        %v4281 = vunpack.c.0.s8 %v4280
        %v4282 = vperm.slane %v4276, %v4281
        %v4284 = vunpack.c.l.s4 1934713408
        %v4285 = vunpack.c.0.s8 %v4284
        %v4286 = vperm.slane %v4278, %v4285
        %v4287 = vrot.slane %v4282, 4
        %v4288 = vsel %vm1250, 0, %v4287
        %v4289 = vrot.slane %v4286, 4
        %v4290 = vsel %vm1250, 0, %v4289
        %v4293 = vunpack.c.l.s4 1983009808
        %v4294 = vunpack.c.0.s8 %v4293
        %v4295 = vperm.slane %v4206, %v4294
        %v4298 = vunpack.c.l.s4 1983009808
        %v4299 = vunpack.c.0.s8 %v4298
        %v4300 = vperm.slane %v4212, %v4299
        %v4301 = vrot.slane %v4300, 4
        %v4302 = vsel %vm1250, %v4301, %v4295
        %v4303 = vrot.slane %v4295, 4
        %v4304 = vsel %vm1250, %v4300, %v4303
        %v4306 = vunpack.c.l.s4 1934713408
        %v4307 = vunpack.c.0.s8 %v4306
        %v4308 = vperm.slane %v4302, %v4307
        %v4310 = vunpack.c.l.s4 1934713408
        %v4311 = vunpack.c.0.s8 %v4310
        %v4312 = vperm.slane %v4304, %v4311
        %v4313 = vrot.slane %v4308, 4
        %v4314 = vsel %vm1250, 0, %v4313
        %v4315 = vrot.slane %v4312, 4
        %v4316 = vsel %vm1250, 0, %v4315
        %v4317 = vsel %vm1250, %v4237, %v4230
        %v4319 = vunpack.c.l.s4 1983009808
        %v4320 = vunpack.c.0.s8 %v4319
        %v4321 = vperm.slane %v4317, %v4320
        %v4322 = vrot.slane %v4238, 4
        %v4323 = vsel %vm1250, %v4322, %v4236
        %v4325 = vunpack.c.l.s4 1983009808
        %v4326 = vunpack.c.0.s8 %v4325
        %v4327 = vperm.slane %v4323, %v4326
        %v4328 = vrot.slane %v4327, 4
        %v4329 = vsel %vm1250, %v4328, %v4321
        %v4331 = vunpack.c.l.s4 1934713408
        %v4332 = vunpack.c.0.s8 %v4331
        %v4333 = vperm.slane %v4329, %v4332
        %v4334 = vrot.slane %v4333, 4
        %v4335 = vsel %vm1250, 0, %v4334
        %v4336 = vsel %vm1250, %v4263, %v4256
        %v4338 = vunpack.c.l.s4 1983009808
        %v4339 = vunpack.c.0.s8 %v4338
        %v4340 = vperm.slane %v4336, %v4339
        %v4341 = vrot.slane %v4264, 4
        %v4342 = vsel %vm1250, %v4341, %v4262
        %v4344 = vunpack.c.l.s4 1983009808
        %v4345 = vunpack.c.0.s8 %v4344
        %v4346 = vperm.slane %v4342, %v4345
        %v4347 = vrot.slane %v4346, 4
        %v4348 = vsel %vm1250, %v4347, %v4340
        %v4350 = vunpack.c.l.s4 1934713408
        %v4351 = vunpack.c.0.s8 %v4350
        %v4352 = vperm.slane %v4348, %v4351
        %v4353 = vrot.slane %v4352, 4
        %v4354 = vsel %vm1250, 0, %v4353
        %v4355 = vsel %vm1250, %v4289, %v4282
        %v4357 = vunpack.c.l.s4 1983009808
        %v4358 = vunpack.c.0.s8 %v4357
        %v4359 = vperm.slane %v4355, %v4358
        %v4360 = vrot.slane %v4290, 4
        %v4361 = vsel %vm1250, %v4360, %v4288
        %v4363 = vunpack.c.l.s4 1983009808
        %v4364 = vunpack.c.0.s8 %v4363
        %v4365 = vperm.slane %v4361, %v4364
        %v4366 = vrot.slane %v4365, 4
        %v4367 = vsel %vm1250, %v4366, %v4359
        %v4369 = vunpack.c.l.s4 1934713408
        %v4370 = vunpack.c.0.s8 %v4369
        %v4371 = vperm.slane %v4367, %v4370
        %v4372 = vrot.slane %v4371, 4
        %v4373 = vsel %vm1250, 0, %v4372
        %v4374 = vsel %vm1250, %v4315, %v4308
        %v4376 = vunpack.c.l.s4 1983009808
        %v4377 = vunpack.c.0.s8 %v4376
        %v4378 = vperm.slane %v4374, %v4377
        %v4379 = vrot.slane %v4316, 4
        %v4380 = vsel %vm1250, %v4379, %v4314
        %v4382 = vunpack.c.l.s4 1983009808
        %v4383 = vunpack.c.0.s8 %v4382
        %v4384 = vperm.slane %v4380, %v4383
        %v4385 = vrot.slane %v4384, 4
        %v4386 = vsel %vm1250, %v4385, %v4378
        %v4388 = vunpack.c.l.s4 1934713408
        %v4389 = vunpack.c.0.s8 %v4388
        %v4390 = vperm.slane %v4386, %v4389
        %v4391 = vrot.slane %v4390, 4
        %v4392 = vsel %vm1250, 0, %v4391
        %v4395 = vpack.i.b16 %v4352, %v4333
        %v4396 = vshrl.u32 %v4333, 16
        %v4397 = vshrl.u32 %v4352, 16
        %v4398 = vpack.i.b16 %v4397, %v4396
        %v4401 = vpack.i.b16 %v4354, %v4335
        %v4402 = vshrl.u32 %v4335, 16
        %v4403 = vshrl.u32 %v4354, 16
        %v4404 = vpack.i.b16 %v4403, %v4402
        %v4407 = vpack.i.b16 %v4390, %v4371
        %v4408 = vshrl.u32 %v4371, 16
        %v4409 = vshrl.u32 %v4390, 16
        %v4410 = vpack.i.b16 %v4409, %v4408
        %v4413 = vpack.i.b16 %v4392, %v4373
        %v4414 = vshrl.u32 %v4373, 16
        %v4415 = vshrl.u32 %v4392, 16
        %v4416 = vpack.i.b16 %v4415, %v4414
        %v4417 = vunpack.c.l.b16 %v4151
        %v4418 = vunpack.c.l.b16 %v4163
        %v4419 = vpack.c.b16 %v4418, %v4417
        %v4421 = vsel %vm1586, %v3919, 0
        %v4424 = vsel %vm1586, %v4419, 0
        %4426 = vmatpush.bf16.xpose.msra.mxu0 0
        %4427 = vmatpush.bf16.xpose.msra.mxu0 0
        %4428 = vmatpush.bf16.xpose.msra.mxu0 0
        %4429 = vmatpush.bf16.xpose.msra.mxu0 0
        %4430 = vmatpush.bf16.xpose.msra.mxu0 0
        %4431 = vmatpush.bf16.xpose.msra.mxu0 0
        %4432 = vmatpush.bf16.xpose.msra.mxu0 0
        %4433 = vmatpush.bf16.xpose.msra.mxu0 %v4424
        %4434 = vmatmul.bf16.gmra.mxu0 %v4421
        %v4435 = vpop.f32.mrf.mxu0
        %v4436 = vadd.f32 0.0, %v4435
        %v4437 = vpop.f32.mrf.mxu0
        %4438 = vdwg.mxu0
        %v4439 = vunpack.c.l.b16 %v4154
        %v4440 = vunpack.c.l.b16 %v4166
        %v4441 = vpack.c.b16 %v4440, %v4439
        %v4443 = vsel %vm1586, %v3922, 0
        %v4446 = vsel %vm1586, %v4441, 0
        %4448 = vmatpush.bf16.xpose.msra.mxu0 0
        %4449 = vmatpush.bf16.xpose.msra.mxu0 0
        %4450 = vmatpush.bf16.xpose.msra.mxu0 0
        %4451 = vmatpush.bf16.xpose.msra.mxu0 0
        %4452 = vmatpush.bf16.xpose.msra.mxu0 0
        %4453 = vmatpush.bf16.xpose.msra.mxu0 0
        %4454 = vmatpush.bf16.xpose.msra.mxu0 0
        %4455 = vmatpush.bf16.xpose.msra.mxu0 %v4446
        %4456 = vmatmul.bf16.gmra.mxu0 %v4443
        %v4457 = vpop.f32.mrf.mxu0
        %v4458 = vadd.f32 0.0, %v4457
        %v4459 = vpop.f32.mrf.mxu0
        %4460 = vdwg.mxu0
        %v4461 = vunpack.c.l.b16 %v4157
        %v4462 = vunpack.c.l.b16 %v4169
        %v4463 = vpack.c.b16 %v4462, %v4461
        %v4465 = vsel %vm1586, %v3925, 0
        %v4468 = vsel %vm1586, %v4463, 0
        %4470 = vmatpush.bf16.xpose.msra.mxu0 0
        %4471 = vmatpush.bf16.xpose.msra.mxu0 0
        %4472 = vmatpush.bf16.xpose.msra.mxu0 0
        %4473 = vmatpush.bf16.xpose.msra.mxu0 0
        %4474 = vmatpush.bf16.xpose.msra.mxu0 0
        %4475 = vmatpush.bf16.xpose.msra.mxu0 0
        %4476 = vmatpush.bf16.xpose.msra.mxu0 0
        %4477 = vmatpush.bf16.xpose.msra.mxu0 %v4468
        %4478 = vmatmul.bf16.gmra.mxu0 %v4465
        %v4479 = vpop.f32.mrf.mxu0
        %v4480 = vadd.f32 0.0, %v4479
        %v4481 = vpop.f32.mrf.mxu0
        %4482 = vdwg.mxu0
        %v4483 = vunpack.c.l.b16 %v4160
        %v4484 = vunpack.c.l.b16 %v4172
        %v4485 = vpack.c.b16 %v4484, %v4483
        %v4487 = vsel %vm1586, %v3928, 0
        %v4490 = vsel %vm1586, %v4485, 0
        %4492 = vmatpush.bf16.xpose.msra.mxu0 0
        %4493 = vmatpush.bf16.xpose.msra.mxu0 0
        %4494 = vmatpush.bf16.xpose.msra.mxu0 0
        %4495 = vmatpush.bf16.xpose.msra.mxu0 0
        %4496 = vmatpush.bf16.xpose.msra.mxu0 0
        %4497 = vmatpush.bf16.xpose.msra.mxu0 0
        %4498 = vmatpush.bf16.xpose.msra.mxu0 0
        %4499 = vmatpush.bf16.xpose.msra.mxu0 %v4490
        %4500 = vmatmul.bf16.gmra.mxu0 %v4487
        %v4501 = vpop.f32.mrf.mxu0
        %v4502 = vadd.f32 0.0, %v4501
        %v4503 = vpop.f32.mrf.mxu0
        %4504 = vdwg.mxu0
        %v4505 = vmul.f32 %v4436, 0.35355338
        %v4506 = vmul.f32 %v4458, 0.35355338
        %v4507 = vmul.f32 %v4480, 0.35355338
        %v4508 = vmul.f32 %v4502, 0.35355338
        %v4510 = vperm.slane %v3806, 0
        %v4512 = vadd.f32 %v4505, %v4510
        %v4513 = vadd.f32 %v4506, %v4510
        %v4514 = vadd.f32 %v4507, %v4510
        %v4515 = vadd.f32 %v4508, %v4510
        %v4516 = vsel %vm1923, %v4512, -inf
        %4517 = vmax.xlane.f32.xlu0 %v4516
        %v4518 = vpop.xlane.xlu0 %4517
        %v4519 = vsel %vm1923, %v4513, -inf
        %4520 = vmax.xlane.f32.xlu0 %v4519
        %v4521 = vpop.xlane.xlu0 %4520
        %v4522 = vsel %vm1923, %v4514, -inf
        %4523 = vmax.xlane.f32.xlu0 %v4522
        %v4524 = vpop.xlane.xlu0 %4523
        %v4525 = vsel %vm1923, %v4515, -inf
        %4526 = vmax.xlane.f32.xlu0 %v4525
        %v4527 = vpop.xlane.xlu0 %4526
        %v4528 = vsub.f32 %v4512, %v4518
        %v4529 = vsub.f32 %v4513, %v4521
        %v4530 = vsub.f32 %v4514, %v4524
        %v4531 = vsub.f32 %v4515, %v4527
        %v4532 = vmul.f32 %v4528, 1.442695
        %v4533 = vpow.pop %v4532
        %v4534 = vmul.f32 %v4529, 1.442695
        %v4535 = vpow.pop %v4534
        %v4536 = vmul.f32 %v4530, 1.442695
        %v4537 = vpow.pop %v4536
        %v4538 = vmul.f32 %v4531, 1.442695
        %v4539 = vpow.pop %v4538
        %v4540 = vsel %vm1923, %v4533, 0.0
        %4541 = vadd.xlane.f32.xlu0 %v4540
        %v4542 = vpop.xlane.xlu0 %4541
        %v4543 = vsel %vm1923, %v4535, 0.0
        %4544 = vadd.xlane.f32.xlu0 %v4543
        %v4545 = vpop.xlane.xlu0 %4544
        %v4546 = vsel %vm1923, %v4537, 0.0
        %4547 = vadd.xlane.f32.xlu0 %v4546
        %v4548 = vpop.xlane.xlu0 %4547
        %v4549 = vsel %vm1923, %v4539, 0.0
        %4550 = vadd.xlane.f32.xlu0 %v4549
        %v4551 = vpop.xlane.xlu0 %4550
        %v4552 = vrcp.pop %v4542
        %v4553 = vrcp.pop %v4545
        %v4554 = vrcp.pop %v4548
        %v4555 = vrcp.pop %v4551
        %v4556 = vmul.f32 %v4533, %v4552
        %v4557 = vmul.f32 %v4535, %v4553
        %v4558 = vmul.f32 %v4537, %v4554
        %v4559 = vmul.f32 %v4539, %v4555
        %v4560 = vpack.c.bf16 %v4556, %v4556
        %v4561 = vpack.c.bf16 %v4557, %v4557
        %v4562 = vpack.c.bf16 %v4558, %v4558
        %v4563 = vpack.c.bf16 %v4559, %v4559
        %v4564 = vunpack.c.l.b16 %v4395
        %v4565 = vunpack.c.l.b16 %v4407
        %v4566 = vpack.c.b16 %v4565, %v4564
        %v4569 = vsel %vm1923, %v4560, 0
        %4571 = vmatpush.bf16.msra.mxu0 0
        %4572 = vmatpush.bf16.msra.mxu0 0
        %4573 = vmatpush.bf16.msra.mxu0 0
        %4574 = vmatpush.bf16.msra.mxu0 0
        %4575 = vmatpush.bf16.msra.mxu0 0
        %4576 = vmatpush.bf16.msra.mxu0 0
        %4577 = vmatpush.bf16.msra.mxu0 0
        %4578 = vmatpush.bf16.msra.mxu0 %v4566
        %4579 = vmatmul.bf16.gmra.mxu0 %v4569
        %v4580 = vpop.f32.mrf.mxu0
        %v4581 = vadd.f32 0.0, %v4580
        %v4582 = vpop.f32.mrf.mxu0
        %4583 = vdwg.mxu0
        %v4584 = vunpack.c.l.b16 %v4398
        %v4585 = vunpack.c.l.b16 %v4410
        %v4586 = vpack.c.b16 %v4585, %v4584
        %v4589 = vsel %vm1923, %v4561, 0
        %4591 = vmatpush.bf16.msra.mxu0 0
        %4592 = vmatpush.bf16.msra.mxu0 0
        %4593 = vmatpush.bf16.msra.mxu0 0
        %4594 = vmatpush.bf16.msra.mxu0 0
        %4595 = vmatpush.bf16.msra.mxu0 0
        %4596 = vmatpush.bf16.msra.mxu0 0
        %4597 = vmatpush.bf16.msra.mxu0 0
        %4598 = vmatpush.bf16.msra.mxu0 %v4586
        %4599 = vmatmul.bf16.gmra.mxu0 %v4589
        %v4600 = vpop.f32.mrf.mxu0
        %v4601 = vadd.f32 0.0, %v4600
        %v4602 = vpop.f32.mrf.mxu0
        %4603 = vdwg.mxu0
        %v4604 = vunpack.c.l.b16 %v4401
        %v4605 = vunpack.c.l.b16 %v4413
        %v4606 = vpack.c.b16 %v4605, %v4604
        %v4609 = vsel %vm1923, %v4562, 0
        %4611 = vmatpush.bf16.msra.mxu0 0
        %4612 = vmatpush.bf16.msra.mxu0 0
        %4613 = vmatpush.bf16.msra.mxu0 0
        %4614 = vmatpush.bf16.msra.mxu0 0
        %4615 = vmatpush.bf16.msra.mxu0 0
        %4616 = vmatpush.bf16.msra.mxu0 0
        %4617 = vmatpush.bf16.msra.mxu0 0
        %4618 = vmatpush.bf16.msra.mxu0 %v4606
        %4619 = vmatmul.bf16.gmra.mxu0 %v4609
        %v4620 = vpop.f32.mrf.mxu0
        %v4621 = vadd.f32 0.0, %v4620
        %v4622 = vpop.f32.mrf.mxu0
        %4623 = vdwg.mxu0
        %v4624 = vunpack.c.l.b16 %v4404
        %v4625 = vunpack.c.l.b16 %v4416
        %v4626 = vpack.c.b16 %v4625, %v4624
        %v4629 = vsel %vm1923, %v4563, 0
        %4631 = vmatpush.bf16.msra.mxu0 0
        %4632 = vmatpush.bf16.msra.mxu0 0
        %4633 = vmatpush.bf16.msra.mxu0 0
        %4634 = vmatpush.bf16.msra.mxu0 0
        %4635 = vmatpush.bf16.msra.mxu0 0
        %4636 = vmatpush.bf16.msra.mxu0 0
        %4637 = vmatpush.bf16.msra.mxu0 0
        %4638 = vmatpush.bf16.msra.mxu0 %v4626
        %4639 = vmatmul.bf16.gmra.mxu0 %v4629
        %v4640 = vpop.f32.mrf.mxu0
        %v4641 = vadd.f32 0.0, %v4640
        %v4642 = vpop.f32.mrf.mxu0
        %4643 = vdwg.mxu0
        %v4644 = vrot.slane %v4621, 4
        %v4645 = vsel %vm1800, %v4644, %v4581
        %v4646 = vrot.slane %v4581, 4
        %v4647 = vsel %vm1800, %v4621, %v4646
        %v4649 = vunpack.c.l.s4 1983009808
        %v4650 = vunpack.c.0.s8 %v4649
        %v4651 = vperm.slane %v4645, %v4650
        %v4653 = vunpack.c.l.s4 1983009808
        %v4654 = vunpack.c.0.s8 %v4653
        %v4655 = vperm.slane %v4647, %v4654
        %v4656 = vrot.slane %v4641, 4
        %v4657 = vsel %vm1800, %v4656, %v4601
        %v4658 = vrot.slane %v4601, 4
        %v4659 = vsel %vm1800, %v4641, %v4658
        %v4661 = vunpack.c.l.s4 1983009808
        %v4662 = vunpack.c.0.s8 %v4661
        %v4663 = vperm.slane %v4657, %v4662
        %v4665 = vunpack.c.l.s4 1983009808
        %v4666 = vunpack.c.0.s8 %v4665
        %v4667 = vperm.slane %v4659, %v4666
        %v4668 = vrot.slane %v4663, 4
        %v4669 = vsel %vm1800, %v4668, %v4651
        %v4670 = vrot.slane %v4651, 4
        %v4671 = vsel %vm1800, %v4663, %v4670
        %v4673 = vunpack.c.l.s4 1934713408
        %v4674 = vunpack.c.0.s8 %v4673
        %v4675 = vperm.slane %v4669, %v4674
        %v4677 = vunpack.c.l.s4 1934713408
        %v4678 = vunpack.c.0.s8 %v4677
        %v4679 = vperm.slane %v4671, %v4678
        %v4680 = vrot.slane %v4667, 4
        %v4681 = vsel %vm1800, %v4680, %v4655
        %v4682 = vrot.slane %v4655, 4
        %v4683 = vsel %vm1800, %v4667, %v4682
        %v4685 = vunpack.c.l.s4 1934713408
        %v4686 = vunpack.c.0.s8 %v4685
        %v4687 = vperm.slane %v4681, %v4686
        %v4689 = vunpack.c.l.s4 1934713408
        %v4690 = vunpack.c.0.s8 %v4689
        %v4691 = vperm.slane %v4683, %v4690
        %v4692 = vrot.slane %v4675, 4
        %v4693 = vsel %vm1800, 0.0, %v4692
        %v4694 = vrot.slane %v4679, 4
        %v4695 = vsel %vm1800, 0.0, %v4694
        %v4696 = vrot.slane %v4687, 4
        %v4697 = vsel %vm1800, 0.0, %v4696
        %v4698 = vrot.slane %v4691, 4
        %v4699 = vsel %vm1800, 0.0, %v4698
        %v4700 = vsel %vm1800, %v4694, %v4675
        %v4702 = vunpack.c.l.s4 1983009808
        %v4703 = vunpack.c.0.s8 %v4702
        %v4704 = vperm.slane %v4700, %v4703
        %v4705 = vrot.slane %v4695, 4
        %v4706 = vsel %vm1800, %v4705, %v4693
        %v4708 = vunpack.c.l.s4 1983009808
        %v4709 = vunpack.c.0.s8 %v4708
        %v4710 = vperm.slane %v4706, %v4709
        %v4711 = vsel %vm1800, %v4698, %v4687
        %v4713 = vunpack.c.l.s4 1983009808
        %v4714 = vunpack.c.0.s8 %v4713
        %v4715 = vperm.slane %v4711, %v4714
        %v4716 = vrot.slane %v4699, 4
        %v4717 = vsel %vm1800, %v4716, %v4697
        %v4719 = vunpack.c.l.s4 1983009808
        %v4720 = vunpack.c.0.s8 %v4719
        %v4721 = vperm.slane %v4717, %v4720
        %v4722 = vrot.slane %v4710, 4
        %v4723 = vsel %vm1800, %v4722, %v4704
        %v4724 = vrot.slane %v4704, 4
        %v4725 = vsel %vm1800, %v4710, %v4724
        %v4727 = vunpack.c.l.s4 1934713408
        %v4728 = vunpack.c.0.s8 %v4727
        %v4729 = vperm.slane %v4723, %v4728
        %v4731 = vunpack.c.l.s4 1934713408
        %v4732 = vunpack.c.0.s8 %v4731
        %v4733 = vperm.slane %v4725, %v4732
        %v4734 = vrot.slane %v4721, 4
        %v4735 = vsel %vm1800, %v4734, %v4715
        %v4736 = vrot.slane %v4715, 4
        %v4737 = vsel %vm1800, %v4721, %v4736
        %v4739 = vunpack.c.l.s4 1934713408
        %v4740 = vunpack.c.0.s8 %v4739
        %v4741 = vperm.slane %v4735, %v4740
        %v4743 = vunpack.c.l.s4 1934713408
        %v4744 = vunpack.c.0.s8 %v4743
        %v4745 = vperm.slane %v4737, %v4744
        %v4746 = vrot.slane %v4741, 4
        %v4747 = vsel %vm1800, %v4746, %v4729
        %v4748 = vrot.slane %v4729, 4
        %v4749 = vsel %vm1800, %v4741, %v4748
        %v4750 = vrot.slane %v4745, 4
        %v4751 = vsel %vm1800, %v4750, %v4733
        %v4752 = vrot.slane %v4733, 4
        %v4753 = vsel %vm1800, %v4745, %v4752
        %4755 = vrot.lane.b32.xlu0 %v4749, 8
        %v4756 = vpop.permute.xlu0 %4755
        %4759 = vrot.lane.b32.xlu0 %v4751, 16
        %v4760 = vpop.permute.xlu0 %4759
        %4763 = vrot.lane.b32.xlu0 %v4753, 24
        %v4764 = vpop.permute.xlu0 %4763
        %v4766 = vsel %vm1586, %v4747, %v4756
        %v4767 = vsel %vm1923, %v4766, %v4760
        %v4768 = vsel %vm1925, %v4767, %v4764
        %s4769 = scalar_lea.vmem [#allocation8], 16
        %4770 = vst.msk [vmem:[%s4769] sm:$0xf] %vm3800, %v4560
        %4771 = vst.msk [vmem:[%s4769 + $0x4] sm:$0xf] %vm3800, %v4561
        %4772 = vst.msk [vmem:[%s4769 + $0x8] sm:$0xf] %vm3800, %v4562
        %4773 = vst.msk [vmem:[%s4769 + $0xc] sm:$0xf] %vm3800, %v4563
        %v4774 = vpack.c.bf16 %v4768, %v3799
        %v4775 = vld [vmem:[%s916] sm:$0xf]
        %v4776 = vld [vmem:[%s916 + $0x4] sm:$0xf]
        %v4777 = vld [vmem:[%s916 + $0x8] sm:$0xf]
        %v4778 = vld [vmem:[%s916 + $0xc] sm:$0xf]
        %v4779 = vld [vmem:[%s1131] sm:$0x1]
        %v4781 = vperm.slane %v4779, 0
        %v4787 = vunpack.c.l.b16 %v4775
        %v4788 = vunpack.c.l.b16 %v4776
        %v4789 = vunpack.c.l.b16 %v4777
        %v4790 = vunpack.c.l.b16 %v4778
        %v4791 = vpack.c.b16 %v4788, %v4787
        %v4792 = vpack.c.b16 %v4790, %v4789
        %v4796 = vsel %vm1200, %v4774, 0
        %4798 = vmatpush.bf16.msra.mxu0 0
        %4799 = vmatpush.bf16.msra.mxu0 0
        %4800 = vmatpush.bf16.msra.mxu0 0
        %4801 = vmatpush.bf16.msra.mxu0 0
        %4802 = vmatpush.bf16.msra.mxu0 0
        %4803 = vmatpush.bf16.msra.mxu0 0
        %4804 = vmatpush.bf16.msra.mxu0 %v4792
        %4805 = vmatpush.bf16.msra.mxu0 %v4791
        %4806 = vmatmul.bf16.gmra.mxu0 %v4796
        %v4807 = vpop.f32.mrf.mxu0
        %v4808 = vadd.f32 %v4781, %v4807
        %v4809 = vpop.f32.mrf.mxu0
        %v4810 = vadd.f32 %v4781, %v4809
        %4811 = vdwg.mxu0
        %v4812 = vadd.f32 %v2742, %v4808
        %v4813 = vadd.f32 %v2743, %v4810
        %v4814 = vld [vmem:[%s1140] sm:$0x1]
        %v4815 = vld [vmem:[%s1143] sm:$0x1]
        %v4816 = vsel %vm1200, %v4812, 0.0
        %4817 = vadd.xlane.f32.xlu0 %v4816
        %v4818 = vpop.xlane.xlu0 %4817
        %v4819 = vsel %vm1200, %v4813, 0.0
        %4820 = vadd.xlane.f32.xlu0 %v4819
        %v4821 = vpop.xlane.xlu0 %4820
        %v4822 = vmul.f32 %v4818, %v2695
        %v4823 = vmul.f32 %v4821, %v2695
        %v4824 = vsub.f32 %v4812, %v4822
        %v4825 = vsub.f32 %v4813, %v4823
        %v4826 = vmul.f32 %v4824, %v4824
        %v4827 = vmul.f32 %v4825, %v4825
        %v4828 = vsel %vm1200, %v4826, 0.0
        %4829 = vadd.xlane.f32.xlu0 %v4828
        %v4830 = vpop.xlane.xlu0 %4829
        %v4831 = vsel %vm1200, %v4827, 0.0
        %4832 = vadd.xlane.f32.xlu0 %v4831
        %v4833 = vpop.xlane.xlu0 %4832
        %v4834 = vmul.f32 %v4830, %v2695
        %v4835 = vmul.f32 %v4833, %v2695
        %v4836 = vadd.f32 %v4834, 1e-05
        %v4837 = vadd.f32 %v4835, 1e-05
        %v4838 = vrsqrt.pop %v4836
        %v4839 = vmul.f32 %v4838, %v4836
        %v4840 = vmul.f32 %v4839, %v4838
        %v4841 = vmul.f32 0.5, %v4840
        %v4842 = vsub.f32 1.5, %v4841
        %v4843 = vmul.f32 %v4838, %v4842
        %vm4844 = vweird.f32 %v4836
        %vm4845 = vweird.f32 %v4838
        %vm4846 = vmor %vm4844, %vm4845
        %v4847 = vsel %vm4846, %v4838, %v4843
        %v4848 = vrsqrt.pop %v4837
        %v4849 = vmul.f32 %v4848, %v4837
        %v4850 = vmul.f32 %v4849, %v4848
        %v4851 = vmul.f32 0.5, %v4850
        %v4852 = vsub.f32 1.5, %v4851
        %v4853 = vmul.f32 %v4848, %v4852
        %vm4854 = vweird.f32 %v4837
        %vm4855 = vweird.f32 %v4848
        %vm4856 = vmor %vm4854, %vm4855
        %v4857 = vsel %vm4856, %v4848, %v4853
        %v4858 = vmul.f32 %v4824, %v4847
        %v4859 = vmul.f32 %v4825, %v4857
        %v4861 = vperm.slane %v4814, 0
        %v4863 = vmul.f32 %v4858, %v4861
        %v4864 = vmul.f32 %v4859, %v4861
        %v4866 = vperm.slane %v4815, 0
        %v4868 = vadd.f32 %v4863, %v4866
        %v4869 = vadd.f32 %v4864, %v4866
        %v4870 = vpack.c.bf16 %v4869, %v4868
        %v4871 = vld [vmem:[%s926] sm:$0xf]
        %v4872 = vld [vmem:[%s926 + $0x4] sm:$0xf]
        %v4873 = vld [vmem:[%s926 + $0x8] sm:$0xf]
        %v4874 = vld [vmem:[%s926 + $0xc] sm:$0xf]
        %v4875 = vld [vmem:[%s1146] sm:$0x1]
        %v4877 = vperm.slane %v4875, 0
        %v4883 = vunpack.c.l.b16 %v4871
        %v4884 = vunpack.c.l.b16 %v4872
        %v4885 = vunpack.c.l.b16 %v4873
        %v4886 = vunpack.c.l.b16 %v4874
        %v4887 = vpack.c.b16 %v4884, %v4883
        %v4888 = vpack.c.b16 %v4886, %v4885
        %v4892 = vsel %vm1200, %v4870, 0
        %4894 = vmatpush.bf16.msra.mxu0 0
        %4895 = vmatpush.bf16.msra.mxu0 0
        %4896 = vmatpush.bf16.msra.mxu0 0
        %4897 = vmatpush.bf16.msra.mxu0 0
        %4898 = vmatpush.bf16.msra.mxu0 0
        %4899 = vmatpush.bf16.msra.mxu0 0
        %4900 = vmatpush.bf16.msra.mxu0 %v4888
        %4901 = vmatpush.bf16.msra.mxu0 %v4887
        %4902 = vmatmul.bf16.gmra.mxu0 %v4892
        %v4903 = vpop.f32.mrf.mxu0
        %v4904 = vadd.f32 %v4877, %v4903
        %v4905 = vpop.f32.mrf.mxu0
        %v4906 = vadd.f32 %v4877, %v4905
        %4907 = vdwg.mxu0
        %v4908 = vmax.f32 %v4904, 0.0
        %v4909 = vmax.f32 %v4906, 0.0
        %v4910 = vpack.c.bf16 %v4909, %v4908
        %v4911 = vld [vmem:[%s1151] sm:$0xf]
        %v4912 = vld [vmem:[%s1151 + $0x4] sm:$0xf]
        %v4913 = vld [vmem:[%s1151 + $0x8] sm:$0xf]
        %v4914 = vld [vmem:[%s1151 + $0xc] sm:$0xf]
        %v4915 = vld [vmem:[%s1151 + $0x10] sm:$0xf]
        %v4916 = vld [vmem:[%s1151 + $0x14] sm:$0xf]
        %v4917 = vld [vmem:[%s1151 + $0x18] sm:$0xf]
        %v4918 = vld [vmem:[%s1151 + $0x1c] sm:$0xf]
        %v4919 = vld [vmem:[%s1154] sm:$0x1]
        %v4921 = vperm.slane %v4919, 0
        %v4931 = vunpack.c.l.b16 %v4911
        %v4932 = vunpack.c.l.b16 %v4912
        %v4933 = vunpack.c.l.b16 %v4913
        %v4934 = vunpack.c.l.b16 %v4914
        %v4935 = vunpack.c.l.b16 %v4915
        %v4936 = vunpack.c.l.b16 %v4916
        %v4937 = vunpack.c.l.b16 %v4917
        %v4938 = vunpack.c.l.b16 %v4918
        %v4939 = vpack.c.b16 %v4932, %v4931
        %v4940 = vpack.c.b16 %v4934, %v4933
        %v4941 = vpack.c.b16 %v4936, %v4935
        %v4942 = vpack.c.b16 %v4938, %v4937
        %vm4947 = vcmask 523264
        %v4949 = vsel %vm4947, %v4910, 0
        %4951 = vmatpush.bf16.msra.mxu0 0
        %4952 = vmatpush.bf16.msra.mxu0 0
        %4953 = vmatpush.bf16.msra.mxu0 0
        %4954 = vmatpush.bf16.msra.mxu0 0
        %4955 = vmatpush.bf16.msra.mxu0 %v4942
        %4956 = vmatpush.bf16.msra.mxu0 %v4941
        %4957 = vmatpush.bf16.msra.mxu0 %v4940
        %4958 = vmatpush.bf16.msra.mxu0 %v4939
        %4959 = vmatmul.bf16.gmra.mxu0 %v4949
        %v4960 = vpop.f32.mrf.mxu0
        %v4961 = vadd.f32 %v4921, %v4960
        %v4962 = vpop.f32.mrf.mxu0
        %v4963 = vadd.f32 %v4921, %v4962
        %4964 = vdwg.mxu0
        %v4965 = vadd.f32 %v4868, %v4961
        %v4966 = vadd.f32 %v4869, %v4963
        %v4967 = vsel %vm1200, %v4965, 0.0
        %4968 = vadd.xlane.f32.xlu0 %v4967
        %v4969 = vpop.xlane.xlu0 %4968
        %v4970 = vsel %vm1200, %v4966, 0.0
        %4971 = vadd.xlane.f32.xlu0 %v4970
        %v4972 = vpop.xlane.xlu0 %4971
        %v4973 = vmul.f32 %v4969, %v2695
        %v4974 = vmul.f32 %v4972, %v2695
        %v4975 = vsub.f32 %v4965, %v4973
        %v4976 = vsub.f32 %v4966, %v4974
        %v4977 = vmul.f32 %v4975, %v4975
        %v4978 = vmul.f32 %v4976, %v4976
        %v4979 = vsel %vm1200, %v4977, 0.0
        %4980 = vadd.xlane.f32.xlu0 %v4979
        %v4981 = vpop.xlane.xlu0 %4980
        %v4982 = vsel %vm1200, %v4978, 0.0
        %4983 = vadd.xlane.f32.xlu0 %v4982
        %v4984 = vpop.xlane.xlu0 %4983
        %v4985 = vmul.f32 %v4981, %v2695
        %v4986 = vmul.f32 %v4984, %v2695
        %v4987 = vadd.f32 %v4985, 1e-05
        %v4988 = vadd.f32 %v4986, 1e-05
        %v4989 = vrsqrt.pop %v4987
        %v4990 = vmul.f32 %v4989, %v4987
        %v4991 = vmul.f32 %v4990, %v4989
        %v4992 = vmul.f32 0.5, %v4991
        %v4993 = vsub.f32 1.5, %v4992
        %v4994 = vmul.f32 %v4989, %v4993
        %vm4995 = vweird.f32 %v4987
        %vm4996 = vweird.f32 %v4989
        %vm4997 = vmor %vm4995, %vm4996
        %v4998 = vsel %vm4997, %v4989, %v4994
        %v4999 = vrsqrt.pop %v4988
        %v5000 = vmul.f32 %v4999, %v4988
        %v5001 = vmul.f32 %v5000, %v4999
        %v5002 = vmul.f32 0.5, %v5001
        %v5003 = vsub.f32 1.5, %v5002
        %v5004 = vmul.f32 %v4999, %v5003
        %vm5005 = vweird.f32 %v4988
        %vm5006 = vweird.f32 %v4999
        %vm5007 = vmor %vm5005, %vm5006
        %v5008 = vsel %vm5007, %v4999, %v5004
        %v5009 = vmul.f32 %v4975, %v4998
        %v5010 = vmul.f32 %v4976, %v5008
        %v5011 = vmul.f32 %v5009, %v4861
        %v5012 = vmul.f32 %v5010, %v4861
        %v5013 = vadd.f32 %v5011, %v4866
        %v5014 = vadd.f32 %v5012, %v4866
        %5015 = vst.msk [vmem:[%s1159] sm:$0xff] %vm1200, %v5013
        %5016 = vst.msk [vmem:[%s1159 + $0x8] sm:$0xff] %vm1200, %v5014
        %s5017 = smul.u32 2, %s48
        %p5018 = scmp.lt.s32.totalorder %s5017, 1
        %s5019 = scalar_select %p5018, %s5017, 1
        %s5020 = smul.addr %s5019, 8
        %s5021 = scalar_lea.vmem %s22, %s5020
        // Predicated region
        $region121: #{decoder_forward.2} parent=107 // pred_check
          %p5022 = pneg %p646
        $region122: #{decoder_forward.2} parent=107 // pred_check_branch
          %5024 = sbr.rel (%p5022) target = $region124
        $region123: #{decoder_forward.2} parent=107 // pred_region
          %s5025 = smul.u32 2, %s48
        $region124: #{decoder_forward.2} parent=107 // pred_fallthru
          _
        // Predicated region
        $region125: #{decoder_forward.2} parent=107 // pred_check
          %p5026 = pneg %p672
        $region126: #{decoder_forward.2} parent=107 // pred_check_branch
          %5028 = sbr.rel (%p5026) target = $region128
        $region127: #{decoder_forward.2} parent=107 // pred_region
          %s5029 = smul.u32 2, %s48
          %5031 = vsyncadd [#allocation4], 0
          %s5032 = smul.addr %s5029, 4
          %s5033 = smul.addr %s5032, 4
          %s5034 = scalar_lea.hbm %s23, %s5033
          %s5035 = sshll.u32 [#allocation7], 4
          %s5036 = int_to_ptr.vmem [resolvable:$true] %s5035
          %s5037 = sshll.u32 %s5034, 4
          %s5038 = int_to_ptr.hbm [resolvable:$true] %s5037
          %5043 = dma.vmem_to_hbm [thread:$0]  %s5036, 512, %s5038, [#allocation4], 64, 64, 4
        $region128: #{decoder_forward.2} parent=107 // pred_fallthru
          _
        // Predicated region
        $region129: #{decoder_forward.2} parent=107 // pred_check
          %p5044 = pneg %p698
        $region130: #{decoder_forward.2} parent=107 // pred_check_branch
          %5046 = sbr.rel (%p5044) target = $region132
        $region131: #{decoder_forward.2} parent=107 // pred_region
          %s5047 = smul.u32 2, %s48
          %5049 = vsyncadd [#allocation9], 0
          %s5050 = smul.addr %s5047, 4
          %s5051 = smul.addr %s5050, 4
          %s5052 = scalar_lea.hbm %s24, %s5051
          %s5053 = sshll.u32 [#allocation8], 4
          %s5054 = int_to_ptr.vmem [resolvable:$true] %s5053
          %s5055 = sshll.u32 %s5052, 4
          %s5056 = int_to_ptr.hbm [resolvable:$true] %s5055
          %5061 = dma.vmem_to_hbm [thread:$0]  %s5054, 512, %s5056, [#allocation9], 64, 64, 4
        $region132: #{decoder_forward.2} parent=107 // pred_fallthru
          _
        // Predicated region
        $region133: #{decoder_forward.2} parent=107 // pred_check
          %p5062 = pneg %p646
        $region134: #{decoder_forward.2} parent=107 // pred_check_branch
          %5064 = sbr.rel (%p5062) target = $region136
        $region135: #{decoder_forward.2} parent=107 // pred_region
          %s5065 = smul.u32 2, %s48
          %p5066 = scmp.lt.s32.totalorder %s5065, 1
          %s5067 = scalar_select %p5066, %s5065, 1
          %s5068 = smul.addr %s5067, 8
          %s5069 = scalar_lea.vmem %s22, %s5068
        $region136: #{decoder_forward.2} parent=107 // pred_fallthru
          _
        // Predicated region
        $region137: #{decoder_forward.2} parent=107 // pred_check
          %p5070 = pneg %p672
        $region138: #{decoder_forward.2} parent=107 // pred_check_branch
          %5072 = sbr.rel (%p5070) target = $region140
        $region139: #{decoder_forward.2} parent=107 // pred_region
          %5074 = dma.done [#allocation4], 512
        $region140: #{decoder_forward.2} parent=107 // pred_fallthru
          _
        // Predicated region
        $region141: #{decoder_forward.2} parent=107 // pred_check
          %p5075 = pneg %p698
        $region142: #{decoder_forward.2} parent=107 // pred_check_branch
          %5077 = sbr.rel (%p5075) target = $region144
        $region143: #{decoder_forward.2} parent=107 // pred_region
          %5079 = dma.done [#allocation9], 512
        $region144: #{decoder_forward.2} parent=107 // pred_fallthru
          _
      $region108: #{decoder_forward.2} parent=5 // pred_fallthru
        _
      %p5080 = scmp.le.s32.totalorder 2, %s39
      // Predicated region
      $region145: #{decoder_forward.2} parent=5 // pred_check
        %p5081 = pneg %p5080
      $region146: #{decoder_forward.2} parent=5 // pred_check_branch
        %5083 = sbr.rel (%p5081) target = $region148
      $region147: #{decoder_forward.2} parent=5 // pred_region
        %s5084 = ssub.s32 %s39, 2
      $region148: #{decoder_forward.2} parent=5 // pred_fallthru
        _
    $region6: #{decoder_forward.2} parent=1 // loop_footer
      %s43 = sadd.s32 1, %s39
    $region7: #{decoder_forward.2} parent=1 // loop_footer_branch
      %38 = sbr.rel target = $region3
    $region8: #{decoder_forward.2} parent=1 // loop_exit
      _
    %5085 = vsyncpa [#allocation3], 1
    %s5086 = scalar_lea.sflag [#allocation3], 1
    %5087 = vsyncpa %s5086, 1
    %5088 = vsyncpa [#allocation6], 1
    %s5089 = scalar_lea.sflag [#allocation6], 1
    %5090 = vsyncpa %s5089, 1
    %5091 = vsyncpa [#allocation4], 1
    %s5092 = scalar_lea.sflag [#allocation4], 1
    %5093 = vsyncpa %s5092, 1
    %5094 = vsyncpa [#allocation9], 1

</llo_original>
